<compile_context>
chip_gen: v7x
topology: tpu7x:2x2x1
jax: 0.10.0
libtpu: 0.0.40
codegen_flags: <defaults>
</compile_context>

<pallas_src>
from functools import partial

import jax
import jax.numpy as jnp
from jax.experimental import pallas as pl
from jax.experimental.pallas import tpu as pltpu

# Padded (lane-aligned) sizes, fixed for this network.
CONV1_K_PAD = 128   # Cin*KH*KW = 3*5*5 = 75  -> 128
CONV2_K_PAD = 256   # Cin*KH*KW = 6*5*5 = 150 -> 256 (matches v6e MXU K)
C_PAD = 128         # all output-feature dims (6/16/120/84/10) -> 128 lanes
FC_IN_PAD = 512     # 16*5*5 = 400 -> 512

_VMEM_LIMIT = 32 * 1024 * 1024   # safe on v5e/v6e/v7x


def _round_up(x, m):
    return (x + m - 1) // m * m


# ---------------------------------------------------------------------------
# Pallas kernels
# ---------------------------------------------------------------------------
def _conv_relu_pool_kernel(p_ref, w_ref, b_ref, o_ref):
    """Fused conv (as matmul) + bias + ReLU + 2x2 max-pool for one M-tile.

    p_ref: (4, bm, Kp) bf16 -- im2col patches, leading dim = 2x2 pool parity.
    w_ref: (Kp, Cp)    bf16 -- zero-padded (KH*KW*Cin, Cout) weight.
    b_ref: (1, Cp)     f32  -- zero-padded bias.
    o_ref: (bm, Cp)    bf16 -- pooled, ReLU'd feature map (lane-dense store).
    """
    bm = o_ref.shape[0]
    # Single long MXU matmul over all 4 pool parities (one push/pop cadence).
    pp = jnp.concatenate([p_ref[0], p_ref[1], p_ref[2], p_ref[3]], axis=0)
    z = jnp.dot(pp, w_ref[...], preferred_element_type=jnp.float32)  # (4bm,Cp)
    # Max over the 4 positions of each 2x2 window (tile-aligned row slices).
    z = jnp.maximum(jnp.maximum(z[:bm], z[bm:2 * bm]),
                    jnp.maximum(z[2 * bm:3 * bm], z[3 * bm:]))
    # relu(max_d(z_d) + b) == max_d(relu(z_d + b)) since relu is monotone.
    o_ref[...] = jnp.maximum(z + b_ref[...], 0.0).astype(o_ref.dtype)


def _fc_stack_kernel(x_ref, w1_ref, b1_ref, w2_ref, b2_ref, w3_ref, b3_ref,
                     o_ref):
    """fc1 -> relu -> fc2 -> relu -> fc3, all intermediates in VMEM/vregs."""
    h = jnp.dot(x_ref[...], w1_ref[...], preferred_element_type=jnp.float32)
    h = jnp.maximum(h + b1_ref[...], 0.0)
    h = jnp.dot(h.astype(jnp.bfloat16), w2_ref[...],
                preferred_element_type=jnp.float32)
    h = jnp.maximum(h + b2_ref[...], 0.0)
    h = jnp.dot(h.astype(jnp.bfloat16), w3_ref[...],
                preferred_element_type=jnp.float32)
    o_ref[...] = h + b3_ref[...]


_VMEM_SPEC = pl.BlockSpec(memory_space=pltpu.MemorySpace.VMEM)


# ---------------------------------------------------------------------------
# Wrappers (plain-JAX glue + pallas_call)
# ---------------------------------------------------------------------------
def pool_im2col(x_nhwc, ksize):
    """im2col patches (bf16, NHWC input) grouped by 2x2-pool parity.

    Returns (patches, (N, P, Q)) with patches of shape (4, N*P*Q, k*k*C):
      patches[dh*2+dw, n*P*Q + p*Q + q, (kh*k + kw)*C + c]
          = x[n, 2p+dh+kh, 2q+dw+kw, c]
    Column order (kh, kw, c) matches the weight flatten in prepare_params.
    """
    N, H, W, C = x_nhwc.shape
    OH, OW = H - ksize + 1, W - ksize + 1
    P, Q = OH // 2, OW // 2
    groups = []
    for dh in range(2):
        for dw in range(2):
            taps = []
            for kh in range(ksize):
                for kw in range(ksize):
                    a, b = dh + kh, dw + kw
                    taps.append(x_nhwc[:, a:a + 2 * P:2, b:b + 2 * Q:2, :])
            t = jnp.stack(taps, axis=3)                    # (N,P,Q,k*k,C)
            groups.append(t.reshape(N * P * Q, ksize * ksize * C))
    return jnp.stack(groups, axis=0), (N, P, Q)


def conv_relu_pool(x_nhwc, w_pad, b_pad, *, bm=512):
    """One fused conv+relu+pool pallas_call, gridded over pooled positions.

    x_nhwc: (N, H, W, C) bf16.  Returns ((N*P*Q, C_PAD) bf16, (N, P, Q)).
    """
    patches, (N, P, Q) = pool_im2col(x_nhwc, 5)
    M, K = patches.shape[1], patches.shape[2]
    Kp, Cp = w_pad.shape
    # Tile size: multiple of 16 (bf16 sublane pack), capped at bm.
    bm = min(bm, _round_up(M, 16))
    Mp = _round_up(M, bm)
    patches = jnp.pad(patches, ((0, 0), (0, Mp - M), (0, Kp - K)))
    grid = (Mp // bm,)
    out = pl.pallas_call(
        _conv_relu_pool_kernel,
        out_shape=jax.ShapeDtypeStruct((Mp, Cp), jnp.bfloat16),
        grid=grid,
        in_specs=[
            pl.BlockSpec((4, bm, Kp), lambda i: (0, i, 0)),
            pl.BlockSpec((Kp, Cp), lambda i: (0, 0)),
            pl.BlockSpec((1, Cp), lambda i: (0, 0)),
        ],
        out_specs=pl.BlockSpec((bm, Cp), lambda i: (i, 0)),
        compiler_params=pltpu.CompilerParams(
            dimension_semantics=("parallel",),
            vmem_limit_bytes=_VMEM_LIMIT),
    )(patches, w_pad, b_pad)
    return out[:M], (N, P, Q)


def fc_stack(x_pad, prep):
    """fc1+relu+fc2+relu+fc3 in a single pallas_call (tiny operands)."""
    Np = x_pad.shape[0]
    return pl.pallas_call(
        _fc_stack_kernel,
        out_shape=jax.ShapeDtypeStruct((Np, C_PAD), jnp.float32),
        in_specs=[_VMEM_SPEC] * 7,
        out_specs=_VMEM_SPEC,
        compiler_params=pltpu.CompilerParams(vmem_limit_bytes=_VMEM_LIMIT),
    )(x_pad, prep["fc1_w"], prep["fc1_b"], prep["fc2_w"], prep["fc2_b"],
      prep["fc3_w"], prep["fc3_b"])


# ---------------------------------------------------------------------------
# Parameters (PyTorch-style init) + one-time layout preparation
# ---------------------------------------------------------------------------
def init_params(key):
    ks = jax.random.split(key, 10)

    def u(k, shape, fan_in):
        bound = 1.0 / jnp.sqrt(jnp.float32(fan_in))
        return jax.random.uniform(k, shape, jnp.float32, -bound, bound)

    return {
        "conv1_w": u(ks[0], (6, 3, 5, 5), 3 * 25),
        "conv1_b": u(ks[1], (6,), 3 * 25),
        "conv2_w": u(ks[2], (16, 6, 5, 5), 6 * 25),
        "conv2_b": u(ks[3], (16,), 6 * 25),
        "fc1_w": u(ks[4], (120, 400), 400),   # PyTorch Linear weight: (out, in)
        "fc1_b": u(ks[5], (120,), 400),
        "fc2_w": u(ks[6], (84, 120), 120),
        "fc2_b": u(ks[7], (84,), 120),
        "fc3_w": u(ks[8], (10, 84), 84),
        "fc3_b": u(ks[9], (10,), 84),
    }


def _pad2(a, rows, cols):
    r, c = a.shape
    return jnp.pad(a, ((0, rows - r), (0, cols - c)))


def prepare_params(p):
    """Hoisted, one-time weight layout transforms.

    * conv weights -> (KH*KW*Cin, Cout) with (kh, kw, ci) flatten order so the
      im2col runs directly on NHWC activations (no per-forward transpose).
    * fc1 weight rows permuted from PyTorch's NCHW-flatten (c,h,w) order to
      (h,w,c) order so the NHWC conv2 output flattens straight into fc1.
    * zero-pad to lane/sublane-aligned sizes; matmul operands cast to bf16.
    """
    w1 = jnp.transpose(p["conv1_w"], (2, 3, 1, 0)).reshape(25 * 3, 6)
    w2 = jnp.transpose(p["conv2_w"], (2, 3, 1, 0)).reshape(25 * 6, 16)
    fc1 = p["fc1_w"].reshape(120, 16, 5, 5)            # (out, c, h, w)
    fc1 = jnp.transpose(fc1, (0, 2, 3, 1)).reshape(120, 400)   # (out, h*w*c)
    return {
        "conv1_w": _pad2(w1, CONV1_K_PAD, C_PAD).astype(jnp.bfloat16),
        "conv1_b": _pad2(p["conv1_b"].reshape(1, 6), 1, C_PAD),
        "conv2_w": _pad2(w2, CONV2_K_PAD, C_PAD).astype(jnp.bfloat16),
        "conv2_b": _pad2(p["conv2_b"].reshape(1, 16), 1, C_PAD),
        "fc1_w": _pad2(fc1.T, FC_IN_PAD, C_PAD).astype(jnp.bfloat16),
        "fc1_b": _pad2(p["fc1_b"].reshape(1, 120), 1, C_PAD),
        "fc2_w": _pad2(p["fc2_w"].T, C_PAD, C_PAD).astype(jnp.bfloat16),
        "fc2_b": _pad2(p["fc2_b"].reshape(1, 84), 1, C_PAD),
        "fc3_w": _pad2(p["fc3_w"].T, C_PAD, C_PAD).astype(jnp.bfloat16),
        "fc3_b": _pad2(p["fc3_b"].reshape(1, 10), 1, C_PAD),
    }


# ---------------------------------------------------------------------------
# Forward pass (mirrors Net.forward)
# ---------------------------------------------------------------------------
@jax.jit
def net_forward(prep, x_nchw):
    N = x_nchw.shape[0]
    # Cast to bf16 BEFORE the 25x im2col inflation; one tiny input transpose
    # to NHWC (all downstream layout stays NHWC, no per-forward transposes).
    x = jnp.transpose(x_nchw.astype(jnp.bfloat16), (0, 2, 3, 1))   # (N,32,32,3)
    # x = maxpool2(relu(conv1(x)))   -- one fused kernel
    h, (_, P1, Q1) = conv_relu_pool(x, prep["conv1_w"], prep["conv1_b"])
    h = h[:, :6].reshape(N, P1, Q1, 6)                 # (N,14,14,6) NHWC bf16
    # x = maxpool2(relu(conv2(x)))   -- one fused kernel
    h, (_, P2, Q2) = conv_relu_pool(h, prep["conv2_w"], prep["conv2_b"])
    # x = x.view(N, -1): flatten NHWC directly; fc1_w rows were pre-permuted.
    h = h[:, :16].reshape(N, P2 * Q2 * 16)             # (N,400) bf16
    h = jnp.pad(h, ((0, 0), (0, FC_IN_PAD - h.shape[1])))
    # fc1 -> relu, fc2 -> relu, fc3   -- one fused kernel
    logits = fc_stack(h, prep)                         # (N,128), cols 10+ are 0
    return logits[:, :10]


if __name__ == "__main__":
    key = jax.random.PRNGKey(0)
    pkey, xkey = jax.random.split(key)
    params = init_params(pkey)
    prep = prepare_params(params)      # one-time weight layout prep (hoisted)
    # CIFAR-10 sized input (the network requires 32x32 spatial), small batch.
    x = jax.random.normal(xkey, (2, 3, 32, 32), jnp.float32)  # NCHW like PyTorch
    out = net_forward(prep, x)
    jax.block_until_ready(out)
    assert out.shape == (2, 10), out.shape
    print("KERNEL_OK")
</pallas_src>

<mosaic_0001>
module attributes {stable_mosaic.version = 11 : i64} {
  func.func @_conv_relu_pool_kernel(%arg0: i32, %arg1: memref<4x400x128xbf16, #tpu.memory_space<vmem>>, %arg2: memref<128x128xbf16, #tpu.memory_space<vmem>>, %arg3: memref<1x128xf32, #tpu.memory_space<vmem>>, %arg4: memref<400x128xbf16, #tpu.memory_space<vmem>>) attributes {dimension_semantics = [#tpu.dimension_semantics<parallel>], iteration_bounds = array<i64: 1>, scalar_prefetch = 0 : i64, scratch_operands = 0 : i64, tpu.core_type = #tpu.core_type<tc>, window_params = [{transform_indices = @transform_0, window_bounds = array<i64: 4, 400, 128>}, {pipeline_mode = #tpu.pipeline_mode<synchronous>, transform_indices = @transform_1, window_bounds = array<i64: 128, 128>}, {pipeline_mode = #tpu.pipeline_mode<synchronous>, transform_indices = @transform_2, window_bounds = array<i64: 1, 128>}, {transform_indices = @transform_3, window_bounds = array<i64: 400, 128>}]} {
    %c0 = arith.constant 0 : index
    %c0_0 = arith.constant 0 : index
    %c0_1 = arith.constant 0 : index
    %0 = vector.load %arg1[%c0, %c0_0, %c0_1] : memref<4x400x128xbf16, #tpu.memory_space<vmem>>, vector<1x400x128xbf16>
    %1 = vector.shape_cast %0 : vector<1x400x128xbf16> to vector<400x128xbf16>
    %c1 = arith.constant 1 : index
    %c0_2 = arith.constant 0 : index
    %c0_3 = arith.constant 0 : index
    %2 = vector.load %arg1[%c1, %c0_2, %c0_3] : memref<4x400x128xbf16, #tpu.memory_space<vmem>>, vector<1x400x128xbf16>
    %3 = vector.shape_cast %2 : vector<1x400x128xbf16> to vector<400x128xbf16>
    %c2 = arith.constant 2 : index
    %c0_4 = arith.constant 0 : index
    %c0_5 = arith.constant 0 : index
    %4 = vector.load %arg1[%c2, %c0_4, %c0_5] : memref<4x400x128xbf16, #tpu.memory_space<vmem>>, vector<1x400x128xbf16>
    %5 = vector.shape_cast %4 : vector<1x400x128xbf16> to vector<400x128xbf16>
    %c3 = arith.constant 3 : index
    %c0_6 = arith.constant 0 : index
    %c0_7 = arith.constant 0 : index
    %6 = vector.load %arg1[%c3, %c0_6, %c0_7] : memref<4x400x128xbf16, #tpu.memory_space<vmem>>, vector<1x400x128xbf16>
    %7 = vector.shape_cast %6 : vector<1x400x128xbf16> to vector<400x128xbf16>
    %8 = tpu.concatenate %1, %3, %5, %7 in 0 : vector<400x128xbf16>, vector<400x128xbf16>, vector<400x128xbf16>, vector<400x128xbf16> -> vector<1600x128xbf16>
    %c0_8 = arith.constant 0 : index
    %c0_9 = arith.constant 0 : index
    %9 = vector.load %arg2[%c0_8, %c0_9] : memref<128x128xbf16, #tpu.memory_space<vmem>>, vector<128x128xbf16>
    %cst = arith.constant dense<0.000000e+00> : vector<1600x128xf32>
    %10 = tpu.matmul %8, %9, %cst {dimension_numbers = #tpu.dot_dimension_numbers<[1], [0], [0], [1], [0, 0, 1, 1], [], []>} : vector<1600x128xbf16>, vector<128x128xbf16>, vector<1600x128xf32> -> vector<1600x128xf32>
    %11 = vector.extract_strided_slice %10 {offsets = [0, 0], sizes = [400, 128], strides = [1, 1]} : vector<1600x128xf32> to vector<400x128xf32>
    %12 = vector.extract_strided_slice %10 {offsets = [400, 0], sizes = [400, 128], strides = [1, 1]} : vector<1600x128xf32> to vector<400x128xf32>
    %13 = arith.maximumf %11, %12 : vector<400x128xf32>
    %14 = vector.extract_strided_slice %10 {offsets = [800, 0], sizes = [400, 128], strides = [1, 1]} : vector<1600x128xf32> to vector<400x128xf32>
    %15 = vector.extract_strided_slice %10 {offsets = [1200, 0], sizes = [400, 128], strides = [1, 1]} : vector<1600x128xf32> to vector<400x128xf32>
    %16 = arith.maximumf %14, %15 : vector<400x128xf32>
    %17 = arith.maximumf %13, %16 : vector<400x128xf32>
    %c0_10 = arith.constant 0 : index
    %c0_11 = arith.constant 0 : index
    %18 = vector.load %arg3[%c0_10, %c0_11] : memref<1x128xf32, #tpu.memory_space<vmem>>, vector<1x128xf32>
    %19 = vector.broadcast %18 : vector<1x128xf32> to vector<400x128xf32>
    %20 = arith.addf %17, %19 : vector<400x128xf32>
    %cst_12 = arith.constant 0.000000e+00 : f32
    %21 = vector.broadcast %cst_12 : f32 to vector<400x128xf32>
    %22 = arith.maximumf %20, %21 : vector<400x128xf32>
    %23 = arith.truncf %22 : vector<400x128xf32> to vector<400x128xbf16>
    %c0_13 = arith.constant 0 : index
    %c0_14 = arith.constant 0 : index
    %24 = vector.load %arg4[%c0_13, %c0_14] : memref<400x128xbf16, #tpu.memory_space<vmem>>, vector<400x128xbf16>
    tpu.vector_store %arg4[%c0_13, %c0_14], %23 {strides = array<i32>} : memref<400x128xbf16, #tpu.memory_space<vmem>>, vector<400x128xbf16>,
    return
  }
  func.func @transform_0(%arg0: i32) -> (i32, i32, i32) {
    %c0_i32 = arith.constant 0 : i32
    %c0_i32_0 = arith.constant 0 : i32
    %c0_i32_1 = arith.constant 0 : i32
    return %c0_i32, %arg0, %c0_i32_0 : i32, i32, i32
  }
  func.func @transform_1(%arg0: i32) -> (i32, i32) {
    %c0_i32 = arith.constant 0 : i32
    %c0_i32_0 = arith.constant 0 : i32
    %c0_i32_1 = arith.constant 0 : i32
    return %c0_i32, %c0_i32_0 : i32, i32
  }
  func.func @transform_2(%arg0: i32) -> (i32, i32) {
    %c0_i32 = arith.constant 0 : i32
    %c0_i32_0 = arith.constant 0 : i32
    %c0_i32_1 = arith.constant 0 : i32
    return %c0_i32, %c0_i32_0 : i32, i32
  }
  func.func @transform_3(%arg0: i32) -> (i32, i32) {
    %c0_i32 = arith.constant 0 : i32
    %c0_i32_0 = arith.constant 0 : i32
    return %arg0, %c0_i32 : i32, i32
  }
}

module attributes {stable_mosaic.version = 11 : i64} {
  func.func @_conv_relu_pool_kernel(%arg0: i32, %arg1: memref<4x64x256xbf16, #tpu.memory_space<vmem>>, %arg2: memref<256x128xbf16, #tpu.memory_space<vmem>>, %arg3: memref<1x128xf32, #tpu.memory_space<vmem>>, %arg4: memref<64x128xbf16, #tpu.memory_space<vmem>>) attributes {dimension_semantics = [#tpu.dimension_semantics<parallel>], iteration_bounds = array<i64: 1>, scalar_prefetch = 0 : i64, scratch_operands = 0 : i64, tpu.core_type = #tpu.core_type<tc>, window_params = [{transform_indices = @transform_0, window_bounds = array<i64: 4, 64, 256>}, {pipeline_mode = #tpu.pipeline_mode<synchronous>, transform_indices = @transform_1, window_bounds = array<i64: 256, 128>}, {pipeline_mode = #tpu.pipeline_mode<synchronous>, transform_indices = @transform_2, window_bounds = array<i64: 1, 128>}, {transform_indices = @transform_3, window_bounds = array<i64: 64, 128>}]} {
    %c0 = arith.constant 0 : index
    %c0_0 = arith.constant 0 : index
    %c0_1 = arith.constant 0 : index
    %0 = vector.load %arg1[%c0, %c0_0, %c0_1] : memref<4x64x256xbf16, #tpu.memory_space<vmem>>, vector<1x64x256xbf16>
    %1 = vector.shape_cast %0 : vector<1x64x256xbf16> to vector<64x256xbf16>
    %c1 = arith.constant 1 : index
    %c0_2 = arith.constant 0 : index
    %c0_3 = arith.constant 0 : index
    %2 = vector.load %arg1[%c1, %c0_2, %c0_3] : memref<4x64x256xbf16, #tpu.memory_space<vmem>>, vector<1x64x256xbf16>
    %3 = vector.shape_cast %2 : vector<1x64x256xbf16> to vector<64x256xbf16>
    %c2 = arith.constant 2 : index
    %c0_4 = arith.constant 0 : index
    %c0_5 = arith.constant 0 : index
    %4 = vector.load %arg1[%c2, %c0_4, %c0_5] : memref<4x64x256xbf16, #tpu.memory_space<vmem>>, vector<1x64x256xbf16>
    %5 = vector.shape_cast %4 : vector<1x64x256xbf16> to vector<64x256xbf16>
    %c3 = arith.constant 3 : index
    %c0_6 = arith.constant 0 : index
    %c0_7 = arith.constant 0 : index
    %6 = vector.load %arg1[%c3, %c0_6, %c0_7] : memref<4x64x256xbf16, #tpu.memory_space<vmem>>, vector<1x64x256xbf16>
    %7 = vector.shape_cast %6 : vector<1x64x256xbf16> to vector<64x256xbf16>
    %8 = tpu.concatenate %1, %3, %5, %7 in 0 : vector<64x256xbf16>, vector<64x256xbf16>, vector<64x256xbf16>, vector<64x256xbf16> -> vector<256x256xbf16>
    %c0_8 = arith.constant 0 : index
    %c0_9 = arith.constant 0 : index
    %9 = vector.load %arg2[%c0_8, %c0_9] : memref<256x128xbf16, #tpu.memory_space<vmem>>, vector<256x128xbf16>
    %cst = arith.constant dense<0.000000e+00> : vector<256x128xf32>
    %10 = tpu.matmul %8, %9, %cst {dimension_numbers = #tpu.dot_dimension_numbers<[1], [0], [0], [1], [0, 0, 1, 1], [], []>} : vector<256x256xbf16>, vector<256x128xbf16>, vector<256x128xf32> -> vector<256x128xf32>
    %11 = vector.extract_strided_slice %10 {offsets = [0, 0], sizes = [64, 128], strides = [1, 1]} : vector<256x128xf32> to vector<64x128xf32>
    %12 = vector.extract_strided_slice %10 {offsets = [64, 0], sizes = [64, 128], strides = [1, 1]} : vector<256x128xf32> to vector<64x128xf32>
    %13 = arith.maximumf %11, %12 : vector<64x128xf32>
    %14 = vector.extract_strided_slice %10 {offsets = [128, 0], sizes = [64, 128], strides = [1, 1]} : vector<256x128xf32> to vector<64x128xf32>
    %15 = vector.extract_strided_slice %10 {offsets = [192, 0], sizes = [64, 128], strides = [1, 1]} : vector<256x128xf32> to vector<64x128xf32>
    %16 = arith.maximumf %14, %15 : vector<64x128xf32>
    %17 = arith.maximumf %13, %16 : vector<64x128xf32>
    %c0_10 = arith.constant 0 : index
    %c0_11 = arith.constant 0 : index
    %18 = vector.load %arg3[%c0_10, %c0_11] : memref<1x128xf32, #tpu.memory_space<vmem>>, vector<1x128xf32>
    %19 = vector.broadcast %18 : vector<1x128xf32> to vector<64x128xf32>
    %20 = arith.addf %17, %19 : vector<64x128xf32>
    %cst_12 = arith.constant 0.000000e+00 : f32
    %21 = vector.broadcast %cst_12 : f32 to vector<64x128xf32>
    %22 = arith.maximumf %20, %21 : vector<64x128xf32>
    %23 = arith.truncf %22 : vector<64x128xf32> to vector<64x128xbf16>
    %c0_13 = arith.constant 0 : index
    %c0_14 = arith.constant 0 : index
    %24 = vector.load %arg4[%c0_13, %c0_14] : memref<64x128xbf16, #tpu.memory_space<vmem>>, vector<64x128xbf16>
    tpu.vector_store %arg4[%c0_13, %c0_14], %23 {strides = array<i32>} : memref<64x128xbf16, #tpu.memory_space<vmem>>, vector<64x128xbf16>,
    return
  }
  func.func @transform_0(%arg0: i32) -> (i32, i32, i32) {
    %c0_i32 = arith.constant 0 : i32
    %c0_i32_0 = arith.constant 0 : i32
    %c0_i32_1 = arith.constant 0 : i32
    return %c0_i32, %arg0, %c0_i32_0 : i32, i32, i32
  }
  func.func @transform_1(%arg0: i32) -> (i32, i32) {
    %c0_i32 = arith.constant 0 : i32
    %c0_i32_0 = arith.constant 0 : i32
    %c0_i32_1 = arith.constant 0 : i32
    return %c0_i32, %c0_i32_0 : i32, i32
  }
  func.func @transform_2(%arg0: i32) -> (i32, i32) {
    %c0_i32 = arith.constant 0 : i32
    %c0_i32_0 = arith.constant 0 : i32
    %c0_i32_1 = arith.constant 0 : i32
    return %c0_i32, %c0_i32_0 : i32, i32
  }
  func.func @transform_3(%arg0: i32) -> (i32, i32) {
    %c0_i32 = arith.constant 0 : i32
    %c0_i32_0 = arith.constant 0 : i32
    return %arg0, %c0_i32 : i32, i32
  }
}

module attributes {stable_mosaic.version = 11 : i64} {
  func.func @_fc_stack_kernel(%arg0: memref<2x512xbf16, #tpu.memory_space<vmem>>, %arg1: memref<512x128xbf16, #tpu.memory_space<vmem>>, %arg2: memref<1x128xf32, #tpu.memory_space<vmem>>, %arg3: memref<128x128xbf16, #tpu.memory_space<vmem>>, %arg4: memref<1x128xf32, #tpu.memory_space<vmem>>, %arg5: memref<128x128xbf16, #tpu.memory_space<vmem>>, %arg6: memref<1x128xf32, #tpu.memory_space<vmem>>, %arg7: memref<2x128xf32, #tpu.memory_space<vmem>>) attributes {dimension_semantics = [], scalar_prefetch = 0 : i64, scratch_operands = 0 : i64, tpu.core_type = #tpu.core_type<tc>} {
    %c0 = arith.constant 0 : index
    %c0_0 = arith.constant 0 : index
    %0 = vector.load %arg0[%c0, %c0_0] : memref<2x512xbf16, #tpu.memory_space<vmem>>, vector<2x512xbf16>
    %c0_1 = arith.constant 0 : index
    %c0_2 = arith.constant 0 : index
    %1 = vector.load %arg1[%c0_1, %c0_2] : memref<512x128xbf16, #tpu.memory_space<vmem>>, vector<512x128xbf16>
    %cst = arith.constant dense<0.000000e+00> : vector<2x128xf32>
    %2 = tpu.matmul %0, %1, %cst {dimension_numbers = #tpu.dot_dimension_numbers<[1], [0], [0], [1], [0, 0, 1, 1], [], []>} : vector<2x512xbf16>, vector<512x128xbf16>, vector<2x128xf32> -> vector<2x128xf32>
    %c0_3 = arith.constant 0 : index
    %c0_4 = arith.constant 0 : index
    %3 = vector.load %arg2[%c0_3, %c0_4] : memref<1x128xf32, #tpu.memory_space<vmem>>, vector<1x128xf32>
    %4 = vector.broadcast %3 : vector<1x128xf32> to vector<2x128xf32>
    %5 = arith.addf %2, %4 : vector<2x128xf32>
    %cst_5 = arith.constant 0.000000e+00 : f32
    %6 = vector.broadcast %cst_5 : f32 to vector<2x128xf32>
    %7 = arith.maximumf %5, %6 : vector<2x128xf32>
    %8 = arith.truncf %7 : vector<2x128xf32> to vector<2x128xbf16>
    %c0_6 = arith.constant 0 : index
    %c0_7 = arith.constant 0 : index
    %9 = vector.load %arg3[%c0_6, %c0_7] : memref<128x128xbf16, #tpu.memory_space<vmem>>, vector<128x128xbf16>
    %cst_8 = arith.constant dense<0.000000e+00> : vector<2x128xf32>
    %10 = tpu.matmul %8, %9, %cst_8 {dimension_numbers = #tpu.dot_dimension_numbers<[1], [0], [0], [1], [0, 0, 1, 1], [], []>} : vector<2x128xbf16>, vector<128x128xbf16>, vector<2x128xf32> -> vector<2x128xf32>
    %c0_9 = arith.constant 0 : index
    %c0_10 = arith.constant 0 : index
    %11 = vector.load %arg4[%c0_9, %c0_10] : memref<1x128xf32, #tpu.memory_space<vmem>>, vector<1x128xf32>
    %12 = vector.broadcast %11 : vector<1x128xf32> to vector<2x128xf32>
    %13 = arith.addf %10, %12 : vector<2x128xf32>
    %cst_11 = arith.constant 0.000000e+00 : f32
    %14 = vector.broadcast %cst_11 : f32 to vector<2x128xf32>
    %15 = arith.maximumf %13, %14 : vector<2x128xf32>
    %16 = arith.truncf %15 : vector<2x128xf32> to vector<2x128xbf16>
    %c0_12 = arith.constant 0 : index
    %c0_13 = arith.constant 0 : index
    %17 = vector.load %arg5[%c0_12, %c0_13] : memref<128x128xbf16, #tpu.memory_space<vmem>>, vector<128x128xbf16>
    %cst_14 = arith.constant dense<0.000000e+00> : vector<2x128xf32>
    %18 = tpu.matmul %16, %17, %cst_14 {dimension_numbers = #tpu.dot_dimension_numbers<[1], [0], [0], [1], [0, 0, 1, 1], [], []>} : vector<2x128xbf16>, vector<128x128xbf16>, vector<2x128xf32> -> vector<2x128xf32>
    %c0_15 = arith.constant 0 : index
    %c0_16 = arith.constant 0 : index
    %19 = vector.load %arg6[%c0_15, %c0_16] : memref<1x128xf32, #tpu.memory_space<vmem>>, vector<1x128xf32>
    %20 = vector.broadcast %19 : vector<1x128xf32> to vector<2x128xf32>
    %21 = arith.addf %18, %20 : vector<2x128xf32>
    %c0_17 = arith.constant 0 : index
    %c0_18 = arith.constant 0 : index
    %22 = vector.load %arg7[%c0_17, %c0_18] : memref<2x128xf32, #tpu.memory_space<vmem>>, vector<2x128xf32>
    tpu.vector_store %arg7[%c0_17, %c0_18], %21 {strides = array<i32>} : memref<2x128xf32, #tpu.memory_space<vmem>>, vector<2x128xf32>,
    return
  }
}

</mosaic_0001>

<llo_original>
// kernel: net_forward.3
$region0: #{net_forward.3}
  #allocation0 [shape = 'u32[]', space=smem, size = 0x4, offset = 0x4, fixed_abs, tag = 'smem constant byte address 0x4 - core index']
  #allocation1 [shape = 'u32[144,128]{1,0:T(1,128)}', space=vmem, size = 0x12000, scoped, tag = 'internal scratch']
  %s0 = inlined_call_operand.vmem [shape: bf16[4,400,128], index: 0, kind: input, shape index: {}]
  %s1 = inlined_call_operand.vmem [shape: bf16[128,128], index: 1, kind: input, shape index: {}]
  %s2 = inlined_call_operand.vmem [shape: f32[1,128], index: 2, kind: input, shape index: {}]
  %s3 = inlined_call_operand.vmem [shape: bf16[400,128], index: 3, kind: output, shape index: {}]
  %s4 = sld [smem:[#allocation0]]
  $region22: #{net_forward.3} parent=0
    _
  %s6 = ssub.s32 1, %s4
  %s7 = scalar_select 0, %s6, %s4
  // Predicated region
  $region2: #{net_forward.3} parent=0 // pred_check
    _
  $region3: #{net_forward.3} parent=0 // pred_check_branch
    %9 = sbr.rel (0) target = $region5
  $region4: #{net_forward.3} parent=0 // pred_region
    _
  $region5: #{net_forward.3} parent=0 // pred_fallthru
    _
  // Predicated region
  $region6: #{net_forward.3} parent=0 // pred_check
    _
  $region7: #{net_forward.3} parent=0 // pred_check_branch
    %11 = sbr.rel (0) target = $region9
  $region8: #{net_forward.3} parent=0 // pred_region
    _
  $region9: #{net_forward.3} parent=0 // pred_fallthru
    _
  // Predicated region
  $region10: #{net_forward.3} parent=0 // pred_check
    _
  $region11: #{net_forward.3} parent=0 // pred_check_branch
    %13 = sbr.rel (0) target = $region13
  $region12: #{net_forward.3} parent=0 // pred_region
    _
  $region13: #{net_forward.3} parent=0 // pred_fallthru
    _
  %v15 = vld [vmem:[%s0] sm:$0xf]
  %v16 = vld [vmem:[%s0 + $0x4] sm:$0xf]
  %v17 = vld [vmem:[%s0 + $0x8] sm:$0xf]
  %v18 = vld [vmem:[%s0 + $0xc] sm:$0xf]
  %v19 = vld [vmem:[%s0 + $0x10] sm:$0xf]
  %v20 = vld [vmem:[%s0 + $0x14] sm:$0xf]
  %v21 = vld [vmem:[%s0 + $0x18] sm:$0xf]
  %v22 = vld [vmem:[%s0 + $0x1c] sm:$0xf]
  %v23 = vld [vmem:[%s0 + $0x20] sm:$0xf]
  %v24 = vld [vmem:[%s0 + $0x24] sm:$0xf]
  %v25 = vld [vmem:[%s0 + $0x28] sm:$0xf]
  %v26 = vld [vmem:[%s0 + $0x2c] sm:$0xf]
  %v27 = vld [vmem:[%s0 + $0x30] sm:$0xf]
  %v28 = vld [vmem:[%s0 + $0x34] sm:$0xf]
  %v29 = vld [vmem:[%s0 + $0x38] sm:$0xf]
  %v30 = vld [vmem:[%s0 + $0x3c] sm:$0xf]
  %v31 = vld [vmem:[%s0 + $0x40] sm:$0xf]
  %v32 = vld [vmem:[%s0 + $0x44] sm:$0xf]
  %v33 = vld [vmem:[%s0 + $0x48] sm:$0xf]
  %v34 = vld [vmem:[%s0 + $0x4c] sm:$0xf]
  %v35 = vld [vmem:[%s0 + $0x50] sm:$0xf]
  %v36 = vld [vmem:[%s0 + $0x54] sm:$0xf]
  %v37 = vld [vmem:[%s0 + $0x58] sm:$0xf]
  %v38 = vld [vmem:[%s0 + $0x5c] sm:$0xf]
  %v39 = vld [vmem:[%s0 + $0x60] sm:$0xf]
  %v40 = vld [vmem:[%s0 + $0x64] sm:$0xf]
  %v41 = vld [vmem:[%s0 + $0x68] sm:$0xf]
  %v42 = vld [vmem:[%s0 + $0x6c] sm:$0xf]
  %v43 = vld [vmem:[%s0 + $0x70] sm:$0xf]
  %v44 = vld [vmem:[%s0 + $0x74] sm:$0xf]
  %v45 = vld [vmem:[%s0 + $0x78] sm:$0xf]
  %v46 = vld [vmem:[%s0 + $0x7c] sm:$0xf]
  %v47 = vld [vmem:[%s0 + $0x80] sm:$0xf]
  %v48 = vld [vmem:[%s0 + $0x84] sm:$0xf]
  %v49 = vld [vmem:[%s0 + $0x88] sm:$0xf]
  %v50 = vld [vmem:[%s0 + $0x8c] sm:$0xf]
  %v51 = vld [vmem:[%s0 + $0x90] sm:$0xf]
  %v52 = vld [vmem:[%s0 + $0x94] sm:$0xf]
  %v53 = vld [vmem:[%s0 + $0x98] sm:$0xf]
  %v54 = vld [vmem:[%s0 + $0x9c] sm:$0xf]
  %v55 = vld [vmem:[%s0 + $0xa0] sm:$0xf]
  %v56 = vld [vmem:[%s0 + $0xa4] sm:$0xf]
  %v57 = vld [vmem:[%s0 + $0xa8] sm:$0xf]
  %v58 = vld [vmem:[%s0 + $0xac] sm:$0xf]
  %v59 = vld [vmem:[%s0 + $0xb0] sm:$0xf]
  %v60 = vld [vmem:[%s0 + $0xb4] sm:$0xf]
  %v61 = vld [vmem:[%s0 + $0xb8] sm:$0xf]
  %v62 = vld [vmem:[%s0 + $0xbc] sm:$0xf]
  %v63 = vld [vmem:[%s0 + $0xc0] sm:$0xf]
  %v64 = vld [vmem:[%s0 + $0xc4] sm:$0xf]
  %s65 = scalar_lea.vmem %s0, 200
  %v66 = vld [vmem:[%s65] sm:$0xf]
  %v67 = vld [vmem:[%s65 + $0x4] sm:$0xf]
  %v68 = vld [vmem:[%s65 + $0x8] sm:$0xf]
  %v69 = vld [vmem:[%s65 + $0xc] sm:$0xf]
  %v70 = vld [vmem:[%s65 + $0x10] sm:$0xf]
  %v71 = vld [vmem:[%s65 + $0x14] sm:$0xf]
  %v72 = vld [vmem:[%s65 + $0x18] sm:$0xf]
  %v73 = vld [vmem:[%s65 + $0x1c] sm:$0xf]
  %v74 = vld [vmem:[%s65 + $0x20] sm:$0xf]
  %v75 = vld [vmem:[%s65 + $0x24] sm:$0xf]
  %v76 = vld [vmem:[%s65 + $0x28] sm:$0xf]
  %v77 = vld [vmem:[%s65 + $0x2c] sm:$0xf]
  %v78 = vld [vmem:[%s65 + $0x30] sm:$0xf]
  %v79 = vld [vmem:[%s65 + $0x34] sm:$0xf]
  %v80 = vld [vmem:[%s65 + $0x38] sm:$0xf]
  %v81 = vld [vmem:[%s65 + $0x3c] sm:$0xf]
  %v82 = vld [vmem:[%s65 + $0x40] sm:$0xf]
  %v83 = vld [vmem:[%s65 + $0x44] sm:$0xf]
  %v84 = vld [vmem:[%s65 + $0x48] sm:$0xf]
  %v85 = vld [vmem:[%s65 + $0x4c] sm:$0xf]
  %v86 = vld [vmem:[%s65 + $0x50] sm:$0xf]
  %v87 = vld [vmem:[%s65 + $0x54] sm:$0xf]
  %v88 = vld [vmem:[%s65 + $0x58] sm:$0xf]
  %v89 = vld [vmem:[%s65 + $0x5c] sm:$0xf]
  %v90 = vld [vmem:[%s65 + $0x60] sm:$0xf]
  %v91 = vld [vmem:[%s65 + $0x64] sm:$0xf]
  %v92 = vld [vmem:[%s65 + $0x68] sm:$0xf]
  %v93 = vld [vmem:[%s65 + $0x6c] sm:$0xf]
  %v94 = vld [vmem:[%s65 + $0x70] sm:$0xf]
  %v95 = vld [vmem:[%s65 + $0x74] sm:$0xf]
  %v96 = vld [vmem:[%s65 + $0x78] sm:$0xf]
  %v97 = vld [vmem:[%s65 + $0x7c] sm:$0xf]
  %v98 = vld [vmem:[%s65 + $0x80] sm:$0xf]
  %v99 = vld [vmem:[%s65 + $0x84] sm:$0xf]
  %v100 = vld [vmem:[%s65 + $0x88] sm:$0xf]
  %v101 = vld [vmem:[%s65 + $0x8c] sm:$0xf]
  %v102 = vld [vmem:[%s65 + $0x90] sm:$0xf]
  %v103 = vld [vmem:[%s65 + $0x94] sm:$0xf]
  %v104 = vld [vmem:[%s65 + $0x98] sm:$0xf]
  %v105 = vld [vmem:[%s65 + $0x9c] sm:$0xf]
  %v106 = vld [vmem:[%s65 + $0xa0] sm:$0xf]
  %v107 = vld [vmem:[%s65 + $0xa4] sm:$0xf]
  %v108 = vld [vmem:[%s65 + $0xa8] sm:$0xf]
  %v109 = vld [vmem:[%s65 + $0xac] sm:$0xf]
  %v110 = vld [vmem:[%s65 + $0xb0] sm:$0xf]
  %v111 = vld [vmem:[%s65 + $0xb4] sm:$0xf]
  %v112 = vld [vmem:[%s65 + $0xb8] sm:$0xf]
  %v113 = vld [vmem:[%s65 + $0xbc] sm:$0xf]
  %v114 = vld [vmem:[%s65 + $0xc0] sm:$0xf]
  %v115 = vld [vmem:[%s65 + $0xc4] sm:$0xf]
  %s116 = scalar_lea.vmem %s0, 400
  %v117 = vld [vmem:[%s116] sm:$0xf]
  %v118 = vld [vmem:[%s116 + $0x4] sm:$0xf]
  %v119 = vld [vmem:[%s116 + $0x8] sm:$0xf]
  %v120 = vld [vmem:[%s116 + $0xc] sm:$0xf]
  %v121 = vld [vmem:[%s116 + $0x10] sm:$0xf]
  %v122 = vld [vmem:[%s116 + $0x14] sm:$0xf]
  %v123 = vld [vmem:[%s116 + $0x18] sm:$0xf]
  %v124 = vld [vmem:[%s116 + $0x1c] sm:$0xf]
  %v125 = vld [vmem:[%s116 + $0x20] sm:$0xf]
  %v126 = vld [vmem:[%s116 + $0x24] sm:$0xf]
  %v127 = vld [vmem:[%s116 + $0x28] sm:$0xf]
  %v128 = vld [vmem:[%s116 + $0x2c] sm:$0xf]
  %v129 = vld [vmem:[%s116 + $0x30] sm:$0xf]
  %v130 = vld [vmem:[%s116 + $0x34] sm:$0xf]
  %v131 = vld [vmem:[%s116 + $0x38] sm:$0xf]
  %v132 = vld [vmem:[%s116 + $0x3c] sm:$0xf]
  %v133 = vld [vmem:[%s116 + $0x40] sm:$0xf]
  %v134 = vld [vmem:[%s116 + $0x44] sm:$0xf]
  %v135 = vld [vmem:[%s116 + $0x48] sm:$0xf]
  %v136 = vld [vmem:[%s116 + $0x4c] sm:$0xf]
  %v137 = vld [vmem:[%s116 + $0x50] sm:$0xf]
  %v138 = vld [vmem:[%s116 + $0x54] sm:$0xf]
  %v139 = vld [vmem:[%s116 + $0x58] sm:$0xf]
  %v140 = vld [vmem:[%s116 + $0x5c] sm:$0xf]
  %v141 = vld [vmem:[%s116 + $0x60] sm:$0xf]
  %v142 = vld [vmem:[%s116 + $0x64] sm:$0xf]
  %v143 = vld [vmem:[%s116 + $0x68] sm:$0xf]
  %v144 = vld [vmem:[%s116 + $0x6c] sm:$0xf]
  %v145 = vld [vmem:[%s116 + $0x70] sm:$0xf]
  %v146 = vld [vmem:[%s116 + $0x74] sm:$0xf]
  %v147 = vld [vmem:[%s116 + $0x78] sm:$0xf]
  %v148 = vld [vmem:[%s116 + $0x7c] sm:$0xf]
  %v149 = vld [vmem:[%s116 + $0x80] sm:$0xf]
  %v150 = vld [vmem:[%s116 + $0x84] sm:$0xf]
  %v151 = vld [vmem:[%s116 + $0x88] sm:$0xf]
  %v152 = vld [vmem:[%s116 + $0x8c] sm:$0xf]
  %v153 = vld [vmem:[%s116 + $0x90] sm:$0xf]
  %v154 = vld [vmem:[%s116 + $0x94] sm:$0xf]
  %v155 = vld [vmem:[%s116 + $0x98] sm:$0xf]
  %v156 = vld [vmem:[%s116 + $0x9c] sm:$0xf]
  %v157 = vld [vmem:[%s116 + $0xa0] sm:$0xf]
  %v158 = vld [vmem:[%s116 + $0xa4] sm:$0xf]
  %v159 = vld [vmem:[%s116 + $0xa8] sm:$0xf]
  %v160 = vld [vmem:[%s116 + $0xac] sm:$0xf]
  %v161 = vld [vmem:[%s116 + $0xb0] sm:$0xf]
  %v162 = vld [vmem:[%s116 + $0xb4] sm:$0xf]
  %v163 = vld [vmem:[%s116 + $0xb8] sm:$0xf]
  %v164 = vld [vmem:[%s116 + $0xbc] sm:$0xf]
  %v165 = vld [vmem:[%s116 + $0xc0] sm:$0xf]
  %v166 = vld [vmem:[%s116 + $0xc4] sm:$0xf]
  %s167 = scalar_lea.vmem %s0, 600
  %v168 = vld [vmem:[%s167] sm:$0xf]
  %v169 = vld [vmem:[%s167 + $0x4] sm:$0xf]
  %v170 = vld [vmem:[%s167 + $0x8] sm:$0xf]
  %v171 = vld [vmem:[%s167 + $0xc] sm:$0xf]
  %v172 = vld [vmem:[%s167 + $0x10] sm:$0xf]
  %v173 = vld [vmem:[%s167 + $0x14] sm:$0xf]
  %v174 = vld [vmem:[%s167 + $0x18] sm:$0xf]
  %v175 = vld [vmem:[%s167 + $0x1c] sm:$0xf]
  %v176 = vld [vmem:[%s167 + $0x20] sm:$0xf]
  %v177 = vld [vmem:[%s167 + $0x24] sm:$0xf]
  %v178 = vld [vmem:[%s167 + $0x28] sm:$0xf]
  %v179 = vld [vmem:[%s167 + $0x2c] sm:$0xf]
  %v180 = vld [vmem:[%s167 + $0x30] sm:$0xf]
  %v181 = vld [vmem:[%s167 + $0x34] sm:$0xf]
  %v182 = vld [vmem:[%s167 + $0x38] sm:$0xf]
  %v183 = vld [vmem:[%s167 + $0x3c] sm:$0xf]
  %v184 = vld [vmem:[%s167 + $0x40] sm:$0xf]
  %v185 = vld [vmem:[%s167 + $0x44] sm:$0xf]
  %v186 = vld [vmem:[%s167 + $0x48] sm:$0xf]
  %v187 = vld [vmem:[%s167 + $0x4c] sm:$0xf]
  %v188 = vld [vmem:[%s167 + $0x50] sm:$0xf]
  %v189 = vld [vmem:[%s167 + $0x54] sm:$0xf]
  %v190 = vld [vmem:[%s167 + $0x58] sm:$0xf]
  %v191 = vld [vmem:[%s167 + $0x5c] sm:$0xf]
  %v192 = vld [vmem:[%s167 + $0x60] sm:$0xf]
  %v193 = vld [vmem:[%s167 + $0x64] sm:$0xf]
  %v194 = vld [vmem:[%s167 + $0x68] sm:$0xf]
  %v195 = vld [vmem:[%s167 + $0x6c] sm:$0xf]
  %v196 = vld [vmem:[%s167 + $0x70] sm:$0xf]
  %v197 = vld [vmem:[%s167 + $0x74] sm:$0xf]
  %v198 = vld [vmem:[%s167 + $0x78] sm:$0xf]
  %v199 = vld [vmem:[%s167 + $0x7c] sm:$0xf]
  %v200 = vld [vmem:[%s167 + $0x80] sm:$0xf]
  %v201 = vld [vmem:[%s167 + $0x84] sm:$0xf]
  %v202 = vld [vmem:[%s167 + $0x88] sm:$0xf]
  %v203 = vld [vmem:[%s167 + $0x8c] sm:$0xf]
  %v204 = vld [vmem:[%s167 + $0x90] sm:$0xf]
  %v205 = vld [vmem:[%s167 + $0x94] sm:$0xf]
  %v206 = vld [vmem:[%s167 + $0x98] sm:$0xf]
  %v207 = vld [vmem:[%s167 + $0x9c] sm:$0xf]
  %v208 = vld [vmem:[%s167 + $0xa0] sm:$0xf]
  %v209 = vld [vmem:[%s167 + $0xa4] sm:$0xf]
  %v210 = vld [vmem:[%s167 + $0xa8] sm:$0xf]
  %v211 = vld [vmem:[%s167 + $0xac] sm:$0xf]
  %v212 = vld [vmem:[%s167 + $0xb0] sm:$0xf]
  %v213 = vld [vmem:[%s167 + $0xb4] sm:$0xf]
  %v214 = vld [vmem:[%s167 + $0xb8] sm:$0xf]
  %v215 = vld [vmem:[%s167 + $0xbc] sm:$0xf]
  %v216 = vld [vmem:[%s167 + $0xc0] sm:$0xf]
  %v217 = vld [vmem:[%s167 + $0xc4] sm:$0xf]
  %v268 = vunpack.c.l.b16 %v15
  %v269 = vunpack.c.l.b16 %v16
  %v270 = vunpack.c.l.b16 %v17
  %v271 = vunpack.c.l.b16 %v18
  %v272 = vunpack.c.l.b16 %v19
  %v273 = vunpack.c.l.b16 %v20
  %v274 = vunpack.c.l.b16 %v21
  %v275 = vunpack.c.l.b16 %v22
  %v276 = vunpack.c.l.b16 %v23
  %v277 = vunpack.c.l.b16 %v24
  %v278 = vunpack.c.l.b16 %v25
  %v279 = vunpack.c.l.b16 %v26
  %v280 = vunpack.c.l.b16 %v27
  %v281 = vunpack.c.l.b16 %v28
  %v282 = vunpack.c.l.b16 %v29
  %v283 = vunpack.c.l.b16 %v30
  %v284 = vunpack.c.l.b16 %v31
  %v285 = vunpack.c.l.b16 %v32
  %v286 = vunpack.c.l.b16 %v33
  %v287 = vunpack.c.l.b16 %v34
  %v288 = vunpack.c.l.b16 %v35
  %v289 = vunpack.c.l.b16 %v36
  %v290 = vunpack.c.l.b16 %v37
  %v291 = vunpack.c.l.b16 %v38
  %v292 = vunpack.c.l.b16 %v39
  %v293 = vunpack.c.l.b16 %v40
  %v294 = vunpack.c.l.b16 %v41
  %v295 = vunpack.c.l.b16 %v42
  %v296 = vunpack.c.l.b16 %v43
  %v297 = vunpack.c.l.b16 %v44
  %v298 = vunpack.c.l.b16 %v45
  %v299 = vunpack.c.l.b16 %v46
  %v300 = vunpack.c.l.b16 %v47
  %v301 = vunpack.c.l.b16 %v48
  %v302 = vunpack.c.l.b16 %v49
  %v303 = vunpack.c.l.b16 %v50
  %v304 = vunpack.c.l.b16 %v51
  %v305 = vunpack.c.l.b16 %v52
  %v306 = vunpack.c.l.b16 %v53
  %v307 = vunpack.c.l.b16 %v54
  %v308 = vunpack.c.l.b16 %v55
  %v309 = vunpack.c.l.b16 %v56
  %v310 = vunpack.c.l.b16 %v57
  %v311 = vunpack.c.l.b16 %v58
  %v312 = vunpack.c.l.b16 %v59
  %v313 = vunpack.c.l.b16 %v60
  %v314 = vunpack.c.l.b16 %v61
  %v315 = vunpack.c.l.b16 %v62
  %v316 = vunpack.c.l.b16 %v63
  %v317 = vunpack.c.l.b16 %v64
  %v318 = vpack.c.b16 %v269, %v268
  %v319 = vpack.c.b16 %v271, %v270
  %v320 = vpack.c.b16 %v273, %v272
  %v321 = vpack.c.b16 %v275, %v274
  %v322 = vpack.c.b16 %v277, %v276
  %v323 = vpack.c.b16 %v279, %v278
  %v324 = vpack.c.b16 %v281, %v280
  %v325 = vpack.c.b16 %v283, %v282
  %v326 = vpack.c.b16 %v285, %v284
  %v327 = vpack.c.b16 %v287, %v286
  %v328 = vpack.c.b16 %v289, %v288
  %v329 = vpack.c.b16 %v291, %v290
  %v330 = vpack.c.b16 %v293, %v292
  %v331 = vpack.c.b16 %v295, %v294
  %v332 = vpack.c.b16 %v297, %v296
  %v333 = vpack.c.b16 %v299, %v298
  %v334 = vpack.c.b16 %v301, %v300
  %v335 = vpack.c.b16 %v303, %v302
  %v336 = vpack.c.b16 %v305, %v304
  %v337 = vpack.c.b16 %v307, %v306
  %v338 = vpack.c.b16 %v309, %v308
  %v339 = vpack.c.b16 %v311, %v310
  %v340 = vpack.c.b16 %v313, %v312
  %v341 = vpack.c.b16 %v315, %v314
  %v342 = vpack.c.b16 %v317, %v316
  %v418 = vunpack.c.l.b16 %v66
  %v419 = vunpack.c.l.b16 %v67
  %v420 = vunpack.c.l.b16 %v68
  %v421 = vunpack.c.l.b16 %v69
  %v422 = vunpack.c.l.b16 %v70
  %v423 = vunpack.c.l.b16 %v71
  %v424 = vunpack.c.l.b16 %v72
  %v425 = vunpack.c.l.b16 %v73
  %v426 = vunpack.c.l.b16 %v74
  %v427 = vunpack.c.l.b16 %v75
  %v428 = vunpack.c.l.b16 %v76
  %v429 = vunpack.c.l.b16 %v77
  %v430 = vunpack.c.l.b16 %v78
  %v431 = vunpack.c.l.b16 %v79
  %v432 = vunpack.c.l.b16 %v80
  %v433 = vunpack.c.l.b16 %v81
  %v434 = vunpack.c.l.b16 %v82
  %v435 = vunpack.c.l.b16 %v83
  %v436 = vunpack.c.l.b16 %v84
  %v437 = vunpack.c.l.b16 %v85
  %v438 = vunpack.c.l.b16 %v86
  %v439 = vunpack.c.l.b16 %v87
  %v440 = vunpack.c.l.b16 %v88
  %v441 = vunpack.c.l.b16 %v89
  %v442 = vunpack.c.l.b16 %v90
  %v443 = vunpack.c.l.b16 %v91
  %v444 = vunpack.c.l.b16 %v92
  %v445 = vunpack.c.l.b16 %v93
  %v446 = vunpack.c.l.b16 %v94
  %v447 = vunpack.c.l.b16 %v95
  %v448 = vunpack.c.l.b16 %v96
  %v449 = vunpack.c.l.b16 %v97
  %v450 = vunpack.c.l.b16 %v98
  %v451 = vunpack.c.l.b16 %v99
  %v452 = vunpack.c.l.b16 %v100
  %v453 = vunpack.c.l.b16 %v101
  %v454 = vunpack.c.l.b16 %v102
  %v455 = vunpack.c.l.b16 %v103
  %v456 = vunpack.c.l.b16 %v104
  %v457 = vunpack.c.l.b16 %v105
  %v458 = vunpack.c.l.b16 %v106
  %v459 = vunpack.c.l.b16 %v107
  %v460 = vunpack.c.l.b16 %v108
  %v461 = vunpack.c.l.b16 %v109
  %v462 = vunpack.c.l.b16 %v110
  %v463 = vunpack.c.l.b16 %v111
  %v464 = vunpack.c.l.b16 %v112
  %v465 = vunpack.c.l.b16 %v113
  %v466 = vunpack.c.l.b16 %v114
  %v467 = vunpack.c.l.b16 %v115
  %v468 = vpack.c.b16 %v419, %v418
  %v469 = vpack.c.b16 %v421, %v420
  %v470 = vpack.c.b16 %v423, %v422
  %v471 = vpack.c.b16 %v425, %v424
  %v472 = vpack.c.b16 %v427, %v426
  %v473 = vpack.c.b16 %v429, %v428
  %v474 = vpack.c.b16 %v431, %v430
  %v475 = vpack.c.b16 %v433, %v432
  %v476 = vpack.c.b16 %v435, %v434
  %v477 = vpack.c.b16 %v437, %v436
  %v478 = vpack.c.b16 %v439, %v438
  %v479 = vpack.c.b16 %v441, %v440
  %v480 = vpack.c.b16 %v443, %v442
  %v481 = vpack.c.b16 %v445, %v444
  %v482 = vpack.c.b16 %v447, %v446
  %v483 = vpack.c.b16 %v449, %v448
  %v484 = vpack.c.b16 %v451, %v450
  %v485 = vpack.c.b16 %v453, %v452
  %v486 = vpack.c.b16 %v455, %v454
  %v487 = vpack.c.b16 %v457, %v456
  %v488 = vpack.c.b16 %v459, %v458
  %v489 = vpack.c.b16 %v461, %v460
  %v490 = vpack.c.b16 %v463, %v462
  %v491 = vpack.c.b16 %v465, %v464
  %v492 = vpack.c.b16 %v467, %v466
  %v568 = vunpack.c.l.b16 %v117
  %v569 = vunpack.c.l.b16 %v118
  %v570 = vunpack.c.l.b16 %v119
  %v571 = vunpack.c.l.b16 %v120
  %v572 = vunpack.c.l.b16 %v121
  %v573 = vunpack.c.l.b16 %v122
  %v574 = vunpack.c.l.b16 %v123
  %v575 = vunpack.c.l.b16 %v124
  %v576 = vunpack.c.l.b16 %v125
  %v577 = vunpack.c.l.b16 %v126
  %v578 = vunpack.c.l.b16 %v127
  %v579 = vunpack.c.l.b16 %v128
  %v580 = vunpack.c.l.b16 %v129
  %v581 = vunpack.c.l.b16 %v130
  %v582 = vunpack.c.l.b16 %v131
  %v583 = vunpack.c.l.b16 %v132
  %v584 = vunpack.c.l.b16 %v133
  %v585 = vunpack.c.l.b16 %v134
  %v586 = vunpack.c.l.b16 %v135
  %v587 = vunpack.c.l.b16 %v136
  %v588 = vunpack.c.l.b16 %v137
  %v589 = vunpack.c.l.b16 %v138
  %v590 = vunpack.c.l.b16 %v139
  %v591 = vunpack.c.l.b16 %v140
  %v592 = vunpack.c.l.b16 %v141
  %v593 = vunpack.c.l.b16 %v142
  %v594 = vunpack.c.l.b16 %v143
  %v595 = vunpack.c.l.b16 %v144
  %v596 = vunpack.c.l.b16 %v145
  %v597 = vunpack.c.l.b16 %v146
  %v598 = vunpack.c.l.b16 %v147
  %v599 = vunpack.c.l.b16 %v148
  %v600 = vunpack.c.l.b16 %v149
  %v601 = vunpack.c.l.b16 %v150
  %v602 = vunpack.c.l.b16 %v151
  %v603 = vunpack.c.l.b16 %v152
  %v604 = vunpack.c.l.b16 %v153
  %v605 = vunpack.c.l.b16 %v154
  %v606 = vunpack.c.l.b16 %v155
  %v607 = vunpack.c.l.b16 %v156
  %v608 = vunpack.c.l.b16 %v157
  %v609 = vunpack.c.l.b16 %v158
  %v610 = vunpack.c.l.b16 %v159
  %v611 = vunpack.c.l.b16 %v160
  %v612 = vunpack.c.l.b16 %v161
  %v613 = vunpack.c.l.b16 %v162
  %v614 = vunpack.c.l.b16 %v163
  %v615 = vunpack.c.l.b16 %v164
  %v616 = vunpack.c.l.b16 %v165
  %v617 = vunpack.c.l.b16 %v166
  %v618 = vpack.c.b16 %v569, %v568
  %v619 = vpack.c.b16 %v571, %v570
  %v620 = vpack.c.b16 %v573, %v572
  %v621 = vpack.c.b16 %v575, %v574
  %v622 = vpack.c.b16 %v577, %v576
  %v623 = vpack.c.b16 %v579, %v578
  %v624 = vpack.c.b16 %v581, %v580
  %v625 = vpack.c.b16 %v583, %v582
  %v626 = vpack.c.b16 %v585, %v584
  %v627 = vpack.c.b16 %v587, %v586
  %v628 = vpack.c.b16 %v589, %v588
  %v629 = vpack.c.b16 %v591, %v590
  %v630 = vpack.c.b16 %v593, %v592
  %v631 = vpack.c.b16 %v595, %v594
  %v632 = vpack.c.b16 %v597, %v596
  %v633 = vpack.c.b16 %v599, %v598
  %v634 = vpack.c.b16 %v601, %v600
  %v635 = vpack.c.b16 %v603, %v602
  %v636 = vpack.c.b16 %v605, %v604
  %v637 = vpack.c.b16 %v607, %v606
  %v638 = vpack.c.b16 %v609, %v608
  %v639 = vpack.c.b16 %v611, %v610
  %v640 = vpack.c.b16 %v613, %v612
  %v641 = vpack.c.b16 %v615, %v614
  %v642 = vpack.c.b16 %v617, %v616
  %v718 = vunpack.c.l.b16 %v168
  %v719 = vunpack.c.l.b16 %v169
  %v720 = vunpack.c.l.b16 %v170
  %v721 = vunpack.c.l.b16 %v171
  %v722 = vunpack.c.l.b16 %v172
  %v723 = vunpack.c.l.b16 %v173
  %v724 = vunpack.c.l.b16 %v174
  %v725 = vunpack.c.l.b16 %v175
  %v726 = vunpack.c.l.b16 %v176
  %v727 = vunpack.c.l.b16 %v177
  %v728 = vunpack.c.l.b16 %v178
  %v729 = vunpack.c.l.b16 %v179
  %v730 = vunpack.c.l.b16 %v180
  %v731 = vunpack.c.l.b16 %v181
  %v732 = vunpack.c.l.b16 %v182
  %v733 = vunpack.c.l.b16 %v183
  %v734 = vunpack.c.l.b16 %v184
  %v735 = vunpack.c.l.b16 %v185
  %v736 = vunpack.c.l.b16 %v186
  %v737 = vunpack.c.l.b16 %v187
  %v738 = vunpack.c.l.b16 %v188
  %v739 = vunpack.c.l.b16 %v189
  %v740 = vunpack.c.l.b16 %v190
  %v741 = vunpack.c.l.b16 %v191
  %v742 = vunpack.c.l.b16 %v192
  %v743 = vunpack.c.l.b16 %v193
  %v744 = vunpack.c.l.b16 %v194
  %v745 = vunpack.c.l.b16 %v195
  %v746 = vunpack.c.l.b16 %v196
  %v747 = vunpack.c.l.b16 %v197
  %v748 = vunpack.c.l.b16 %v198
  %v749 = vunpack.c.l.b16 %v199
  %v750 = vunpack.c.l.b16 %v200
  %v751 = vunpack.c.l.b16 %v201
  %v752 = vunpack.c.l.b16 %v202
  %v753 = vunpack.c.l.b16 %v203
  %v754 = vunpack.c.l.b16 %v204
  %v755 = vunpack.c.l.b16 %v205
  %v756 = vunpack.c.l.b16 %v206
  %v757 = vunpack.c.l.b16 %v207
  %v758 = vunpack.c.l.b16 %v208
  %v759 = vunpack.c.l.b16 %v209
  %v760 = vunpack.c.l.b16 %v210
  %v761 = vunpack.c.l.b16 %v211
  %v762 = vunpack.c.l.b16 %v212
  %v763 = vunpack.c.l.b16 %v213
  %v764 = vunpack.c.l.b16 %v214
  %v765 = vunpack.c.l.b16 %v215
  %v766 = vunpack.c.l.b16 %v216
  %v767 = vunpack.c.l.b16 %v217
  %v768 = vpack.c.b16 %v719, %v718
  %v769 = vpack.c.b16 %v721, %v720
  %v770 = vpack.c.b16 %v723, %v722
  %v771 = vpack.c.b16 %v725, %v724
  %v772 = vpack.c.b16 %v727, %v726
  %v773 = vpack.c.b16 %v729, %v728
  %v774 = vpack.c.b16 %v731, %v730
  %v775 = vpack.c.b16 %v733, %v732
  %v776 = vpack.c.b16 %v735, %v734
  %v777 = vpack.c.b16 %v737, %v736
  %v778 = vpack.c.b16 %v739, %v738
  %v779 = vpack.c.b16 %v741, %v740
  %v780 = vpack.c.b16 %v743, %v742
  %v781 = vpack.c.b16 %v745, %v744
  %v782 = vpack.c.b16 %v747, %v746
  %v783 = vpack.c.b16 %v749, %v748
  %v784 = vpack.c.b16 %v751, %v750
  %v785 = vpack.c.b16 %v753, %v752
  %v786 = vpack.c.b16 %v755, %v754
  %v787 = vpack.c.b16 %v757, %v756
  %v788 = vpack.c.b16 %v759, %v758
  %v789 = vpack.c.b16 %v761, %v760
  %v790 = vpack.c.b16 %v763, %v762
  %v791 = vpack.c.b16 %v765, %v764
  %v792 = vpack.c.b16 %v767, %v766
  %v818 = vld [vmem:[%s1] sm:$0xf]
  %v819 = vld [vmem:[%s1 + $0x4] sm:$0xf]
  %v820 = vld [vmem:[%s1 + $0x8] sm:$0xf]
  %v821 = vld [vmem:[%s1 + $0xc] sm:$0xf]
  %v822 = vld [vmem:[%s1 + $0x10] sm:$0xf]
  %v823 = vld [vmem:[%s1 + $0x14] sm:$0xf]
  %v824 = vld [vmem:[%s1 + $0x18] sm:$0xf]
  %v825 = vld [vmem:[%s1 + $0x1c] sm:$0xf]
  %v826 = vld [vmem:[%s1 + $0x20] sm:$0xf]
  %v827 = vld [vmem:[%s1 + $0x24] sm:$0xf]
  %v828 = vld [vmem:[%s1 + $0x28] sm:$0xf]
  %v829 = vld [vmem:[%s1 + $0x2c] sm:$0xf]
  %v830 = vld [vmem:[%s1 + $0x30] sm:$0xf]
  %v831 = vld [vmem:[%s1 + $0x34] sm:$0xf]
  %v832 = vld [vmem:[%s1 + $0x38] sm:$0xf]
  %v833 = vld [vmem:[%s1 + $0x3c] sm:$0xf]
  %v850 = vunpack.c.l.b16 %v818
  %v851 = vunpack.c.l.b16 %v819
  %v852 = vunpack.c.l.b16 %v820
  %v853 = vunpack.c.l.b16 %v821
  %v854 = vunpack.c.l.b16 %v822
  %v855 = vunpack.c.l.b16 %v823
  %v856 = vunpack.c.l.b16 %v824
  %v857 = vunpack.c.l.b16 %v825
  %v858 = vunpack.c.l.b16 %v826
  %v859 = vunpack.c.l.b16 %v827
  %v860 = vunpack.c.l.b16 %v828
  %v861 = vunpack.c.l.b16 %v829
  %v862 = vunpack.c.l.b16 %v830
  %v863 = vunpack.c.l.b16 %v831
  %v864 = vunpack.c.l.b16 %v832
  %v865 = vunpack.c.l.b16 %v833
  %v866 = vpack.c.b16 %v851, %v850
  %v867 = vpack.c.b16 %v853, %v852
  %v868 = vpack.c.b16 %v855, %v854
  %v869 = vpack.c.b16 %v857, %v856
  %v870 = vpack.c.b16 %v859, %v858
  %v871 = vpack.c.b16 %v861, %v860
  %v872 = vpack.c.b16 %v863, %v862
  %v873 = vpack.c.b16 %v865, %v864
  %882 = vmatprep.subr.bf16.mxu0 0
  %883 = vmatpush1.bf16.msra.mxu0 %v866
  %884 = vmatprep.subr.bf16.mxu0 0
  %885 = vmatpush1.bf16.msra.mxu0 %v867
  %886 = vmatprep.subr.bf16.mxu0 0
  %887 = vmatpush1.bf16.msra.mxu0 %v868
  %888 = vmatprep.subr.bf16.mxu0 0
  %889 = vmatpush1.bf16.msra.mxu0 %v869
  %890 = vmatprep.subr.bf16.mxu0 0
  %891 = vmatpush1.bf16.msra.mxu0 %v870
  %892 = vmatprep.subr.bf16.mxu0 0
  %893 = vmatpush1.bf16.msra.mxu0 %v871
  %894 = vmatprep.subr.bf16.mxu0 0
  %895 = vmatpush1.bf16.msra.mxu0 %v872
  %896 = vmatprep.subr.bf16.mxu0 0
  %897 = vmatpush1.bf16.msra.mxu0 %v873
  %898 = vmatprep.subr.bf16.mxu0 0
  %899 = vmatpush1.bf16.msra.mxu0 0
  %900 = vmatprep.subr.bf16.mxu0 0
  %901 = vmatpush1.bf16.msra.mxu0 0
  %902 = vmatprep.subr.bf16.mxu0 0
  %903 = vmatpush1.bf16.msra.mxu0 0
  %904 = vmatprep.subr.bf16.mxu0 0
  %905 = vmatpush1.bf16.msra.mxu0 0
  %906 = vmatprep.subr.bf16.mxu0 0
  %907 = vmatpush1.bf16.msra.mxu0 0
  %908 = vmatprep.subr.bf16.mxu0 0
  %909 = vmatpush1.bf16.msra.mxu0 0
  %910 = vmatprep.subr.bf16.mxu0 0
  %911 = vmatpush1.bf16.msra.mxu0 0
  %912 = vmatprep.subr.bf16.mxu0 0
  %913 = vmatpush1.bf16.msra.mxu0 0
  %914 = vmatprep.mubr.bf16.mxu0 0
  %915 = vmatmul.mubr.bf16.gmra.mrb[0].mxu0 %v318
  %v916 = vpop.f32.mrb[0].mxu0
  %v917 = vadd.f32 0.0, %v916
  %v918 = vpop.f32.mrb[0].mxu0
  %v919 = vpop.f32.mrb[0].mxu0
  %v920 = vadd.f32 0.0, %v919
  %v921 = vpop.f32.mrb[0].mxu0
  %922 = vmatprep.mubr.bf16.mxu0 0
  %923 = vmatmul.mubr.bf16.gmra.mrb[0].mxu0 %v319
  %v924 = vpop.f32.mrb[0].mxu0
  %v925 = vadd.f32 0.0, %v924
  %v926 = vpop.f32.mrb[0].mxu0
  %v927 = vpop.f32.mrb[0].mxu0
  %v928 = vadd.f32 0.0, %v927
  %v929 = vpop.f32.mrb[0].mxu0
  %930 = vmatprep.mubr.bf16.mxu0 0
  %931 = vmatmul.mubr.bf16.gmra.mrb[0].mxu0 %v320
  %v932 = vpop.f32.mrb[0].mxu0
  %v933 = vadd.f32 0.0, %v932
  %v934 = vpop.f32.mrb[0].mxu0
  %v935 = vpop.f32.mrb[0].mxu0
  %v936 = vadd.f32 0.0, %v935
  %v937 = vpop.f32.mrb[0].mxu0
  %938 = vmatprep.mubr.bf16.mxu0 0
  %939 = vmatmul.mubr.bf16.gmra.mrb[0].mxu0 %v321
  %v940 = vpop.f32.mrb[0].mxu0
  %v941 = vadd.f32 0.0, %v940
  %v942 = vpop.f32.mrb[0].mxu0
  %v943 = vpop.f32.mrb[0].mxu0
  %v944 = vadd.f32 0.0, %v943
  %v945 = vpop.f32.mrb[0].mxu0
  %946 = vmatprep.mubr.bf16.mxu0 0
  %947 = vmatmul.mubr.bf16.gmra.mrb[0].mxu0 %v322
  %v948 = vpop.f32.mrb[0].mxu0
  %v949 = vadd.f32 0.0, %v948
  %v950 = vpop.f32.mrb[0].mxu0
  %v951 = vpop.f32.mrb[0].mxu0
  %v952 = vadd.f32 0.0, %v951
  %v953 = vpop.f32.mrb[0].mxu0
  %954 = vmatprep.mubr.bf16.mxu0 0
  %955 = vmatmul.mubr.bf16.gmra.mrb[0].mxu0 %v323
  %v956 = vpop.f32.mrb[0].mxu0
  %v957 = vadd.f32 0.0, %v956
  %v958 = vpop.f32.mrb[0].mxu0
  %v959 = vpop.f32.mrb[0].mxu0
  %v960 = vadd.f32 0.0, %v959
  %v961 = vpop.f32.mrb[0].mxu0
  %962 = vmatprep.mubr.bf16.mxu0 0
  %963 = vmatmul.mubr.bf16.gmra.mrb[0].mxu0 %v324
  %v964 = vpop.f32.mrb[0].mxu0
  %v965 = vadd.f32 0.0, %v964
  %v966 = vpop.f32.mrb[0].mxu0
  %v967 = vpop.f32.mrb[0].mxu0
  %v968 = vadd.f32 0.0, %v967
  %v969 = vpop.f32.mrb[0].mxu0
  %970 = vmatprep.mubr.bf16.mxu0 0
  %971 = vmatmul.mubr.bf16.gmra.mrb[0].mxu0 %v325
  %v972 = vpop.f32.mrb[0].mxu0
  %v973 = vadd.f32 0.0, %v972
  %v974 = vpop.f32.mrb[0].mxu0
  %v975 = vpop.f32.mrb[0].mxu0
  %v976 = vadd.f32 0.0, %v975
  %v977 = vpop.f32.mrb[0].mxu0
  %978 = vmatprep.mubr.bf16.mxu0 0
  %979 = vmatmul.mubr.bf16.gmra.mrb[0].mxu0 %v326
  %v980 = vpop.f32.mrb[0].mxu0
  %v981 = vadd.f32 0.0, %v980
  %v982 = vpop.f32.mrb[0].mxu0
  %v983 = vpop.f32.mrb[0].mxu0
  %v984 = vadd.f32 0.0, %v983
  %v985 = vpop.f32.mrb[0].mxu0
  %986 = vmatprep.mubr.bf16.mxu0 0
  %987 = vmatmul.mubr.bf16.gmra.mrb[0].mxu0 %v327
  %v988 = vpop.f32.mrb[0].mxu0
  %v989 = vadd.f32 0.0, %v988
  %v990 = vpop.f32.mrb[0].mxu0
  %v991 = vpop.f32.mrb[0].mxu0
  %v992 = vadd.f32 0.0, %v991
  %v993 = vpop.f32.mrb[0].mxu0
  %994 = vmatprep.mubr.bf16.mxu0 0
  %995 = vmatmul.mubr.bf16.gmra.mrb[0].mxu0 %v328
  %v996 = vpop.f32.mrb[0].mxu0
  %v997 = vadd.f32 0.0, %v996
  %v998 = vpop.f32.mrb[0].mxu0
  %v999 = vpop.f32.mrb[0].mxu0
  %v1000 = vadd.f32 0.0, %v999
  %v1001 = vpop.f32.mrb[0].mxu0
  %1002 = vmatprep.mubr.bf16.mxu0 0
  %1003 = vmatmul.mubr.bf16.gmra.mrb[0].mxu0 %v329
  %v1004 = vpop.f32.mrb[0].mxu0
  %v1005 = vadd.f32 0.0, %v1004
  %v1006 = vpop.f32.mrb[0].mxu0
  %v1007 = vpop.f32.mrb[0].mxu0
  %v1008 = vadd.f32 0.0, %v1007
  %v1009 = vpop.f32.mrb[0].mxu0
  %1010 = vmatprep.mubr.bf16.mxu0 0
  %1011 = vmatmul.mubr.bf16.gmra.mrb[0].mxu0 %v330
  %v1012 = vpop.f32.mrb[0].mxu0
  %v1013 = vadd.f32 0.0, %v1012
  %v1014 = vpop.f32.mrb[0].mxu0
  %v1015 = vpop.f32.mrb[0].mxu0
  %v1016 = vadd.f32 0.0, %v1015
  %v1017 = vpop.f32.mrb[0].mxu0
  %1018 = vmatprep.mubr.bf16.mxu0 0
  %1019 = vmatmul.mubr.bf16.gmra.mrb[0].mxu0 %v331
  %v1020 = vpop.f32.mrb[0].mxu0
  %v1021 = vadd.f32 0.0, %v1020
  %v1022 = vpop.f32.mrb[0].mxu0
  %v1023 = vpop.f32.mrb[0].mxu0
  %v1024 = vadd.f32 0.0, %v1023
  %v1025 = vpop.f32.mrb[0].mxu0
  %1026 = vmatprep.mubr.bf16.mxu0 0
  %1027 = vmatmul.mubr.bf16.gmra.mrb[0].mxu0 %v332
  %v1028 = vpop.f32.mrb[0].mxu0
  %v1029 = vadd.f32 0.0, %v1028
  %v1030 = vpop.f32.mrb[0].mxu0
  %v1031 = vpop.f32.mrb[0].mxu0
  %v1032 = vadd.f32 0.0, %v1031
  %v1033 = vpop.f32.mrb[0].mxu0
  %1034 = vmatprep.mubr.bf16.mxu0 0
  %1035 = vmatmul.mubr.bf16.gmra.mrb[0].mxu0 %v333
  %v1036 = vpop.f32.mrb[0].mxu0
  %v1037 = vadd.f32 0.0, %v1036
  %v1038 = vpop.f32.mrb[0].mxu0
  %v1039 = vpop.f32.mrb[0].mxu0
  %v1040 = vadd.f32 0.0, %v1039
  %v1041 = vpop.f32.mrb[0].mxu0
  %1042 = vmatprep.mubr.bf16.mxu0 0
  %1043 = vmatmul.mubr.bf16.gmra.mrb[0].mxu0 %v334
  %v1044 = vpop.f32.mrb[0].mxu0
  %v1045 = vadd.f32 0.0, %v1044
  %v1046 = vpop.f32.mrb[0].mxu0
  %v1047 = vpop.f32.mrb[0].mxu0
  %v1048 = vadd.f32 0.0, %v1047
  %v1049 = vpop.f32.mrb[0].mxu0
  %1050 = vmatprep.mubr.bf16.mxu0 0
  %1051 = vmatmul.mubr.bf16.gmra.mrb[0].mxu0 %v335
  %v1052 = vpop.f32.mrb[0].mxu0
  %v1053 = vadd.f32 0.0, %v1052
  %v1054 = vpop.f32.mrb[0].mxu0
  %v1055 = vpop.f32.mrb[0].mxu0
  %v1056 = vadd.f32 0.0, %v1055
  %v1057 = vpop.f32.mrb[0].mxu0
  %1058 = vmatprep.mubr.bf16.mxu0 0
  %1059 = vmatmul.mubr.bf16.gmra.mrb[0].mxu0 %v336
  %v1060 = vpop.f32.mrb[0].mxu0
  %v1061 = vadd.f32 0.0, %v1060
  %v1062 = vpop.f32.mrb[0].mxu0
  %v1063 = vpop.f32.mrb[0].mxu0
  %v1064 = vadd.f32 0.0, %v1063
  %v1065 = vpop.f32.mrb[0].mxu0
  %1066 = vmatprep.mubr.bf16.mxu0 0
  %1067 = vmatmul.mubr.bf16.gmra.mrb[0].mxu0 %v337
  %v1068 = vpop.f32.mrb[0].mxu0
  %v1069 = vadd.f32 0.0, %v1068
  %v1070 = vpop.f32.mrb[0].mxu0
  %v1071 = vpop.f32.mrb[0].mxu0
  %v1072 = vadd.f32 0.0, %v1071
  %v1073 = vpop.f32.mrb[0].mxu0
  %1074 = vmatprep.mubr.bf16.mxu0 0
  %1075 = vmatmul.mubr.bf16.gmra.mrb[0].mxu0 %v338
  %v1076 = vpop.f32.mrb[0].mxu0
  %v1077 = vadd.f32 0.0, %v1076
  %v1078 = vpop.f32.mrb[0].mxu0
  %v1079 = vpop.f32.mrb[0].mxu0
  %v1080 = vadd.f32 0.0, %v1079
  %v1081 = vpop.f32.mrb[0].mxu0
  %1082 = vmatprep.mubr.bf16.mxu0 0
  %1083 = vmatmul.mubr.bf16.gmra.mrb[0].mxu0 %v339
  %v1084 = vpop.f32.mrb[0].mxu0
  %v1085 = vadd.f32 0.0, %v1084
  %v1086 = vpop.f32.mrb[0].mxu0
  %v1087 = vpop.f32.mrb[0].mxu0
  %v1088 = vadd.f32 0.0, %v1087
  %v1089 = vpop.f32.mrb[0].mxu0
  %1090 = vmatprep.mubr.bf16.mxu0 0
  %1091 = vmatmul.mubr.bf16.gmra.mrb[0].mxu0 %v340
  %v1092 = vpop.f32.mrb[0].mxu0
  %v1093 = vadd.f32 0.0, %v1092
  %v1094 = vpop.f32.mrb[0].mxu0
  %v1095 = vpop.f32.mrb[0].mxu0
  %v1096 = vadd.f32 0.0, %v1095
  %v1097 = vpop.f32.mrb[0].mxu0
  %1098 = vmatprep.mubr.bf16.mxu0 0
  %1099 = vmatmul.mubr.bf16.gmra.mrb[0].mxu0 %v341
  %v1100 = vpop.f32.mrb[0].mxu0
  %v1101 = vadd.f32 0.0, %v1100
  %v1102 = vpop.f32.mrb[0].mxu0
  %v1103 = vpop.f32.mrb[0].mxu0
  %v1104 = vadd.f32 0.0, %v1103
  %v1105 = vpop.f32.mrb[0].mxu0
  %1106 = vmatprep.mubr.bf16.mxu0 0
  %1107 = vmatmul.mubr.bf16.gmra.mrb[0].mxu0 %v342
  %v1108 = vpop.f32.mrb[0].mxu0
  %v1109 = vadd.f32 0.0, %v1108
  %v1110 = vpop.f32.mrb[0].mxu0
  %v1111 = vpop.f32.mrb[0].mxu0
  %v1112 = vadd.f32 0.0, %v1111
  %v1113 = vpop.f32.mrb[0].mxu0
  %1114 = vmatprep.mubr.bf16.mxu0 0
  %1115 = vmatmul.mubr.bf16.gmra.mrb[0].mxu0 %v468
  %v1116 = vpop.f32.mrb[0].mxu0
  %v1117 = vadd.f32 0.0, %v1116
  %v1118 = vpop.f32.mrb[0].mxu0
  %v1119 = vpop.f32.mrb[0].mxu0
  %v1120 = vadd.f32 0.0, %v1119
  %v1121 = vpop.f32.mrb[0].mxu0
  %1122 = vmatprep.mubr.bf16.mxu0 0
  %1123 = vmatmul.mubr.bf16.gmra.mrb[0].mxu0 %v469
  %v1124 = vpop.f32.mrb[0].mxu0
  %v1125 = vadd.f32 0.0, %v1124
  %v1126 = vpop.f32.mrb[0].mxu0
  %v1127 = vpop.f32.mrb[0].mxu0
  %v1128 = vadd.f32 0.0, %v1127
  %v1129 = vpop.f32.mrb[0].mxu0
  %1130 = vmatprep.mubr.bf16.mxu0 0
  %1131 = vmatmul.mubr.bf16.gmra.mrb[0].mxu0 %v470
  %v1132 = vpop.f32.mrb[0].mxu0
  %v1133 = vadd.f32 0.0, %v1132
  %v1134 = vpop.f32.mrb[0].mxu0
  %v1135 = vpop.f32.mrb[0].mxu0
  %v1136 = vadd.f32 0.0, %v1135
  %v1137 = vpop.f32.mrb[0].mxu0
  %1138 = vmatprep.mubr.bf16.mxu0 0
  %1139 = vmatmul.mubr.bf16.gmra.mrb[0].mxu0 %v471
  %v1140 = vpop.f32.mrb[0].mxu0
  %v1141 = vadd.f32 0.0, %v1140
  %v1142 = vpop.f32.mrb[0].mxu0
  %v1143 = vpop.f32.mrb[0].mxu0
  %v1144 = vadd.f32 0.0, %v1143
  %v1145 = vpop.f32.mrb[0].mxu0
  %1146 = vmatprep.mubr.bf16.mxu0 0
  %1147 = vmatmul.mubr.bf16.gmra.mrb[0].mxu0 %v472
  %v1148 = vpop.f32.mrb[0].mxu0
  %v1149 = vadd.f32 0.0, %v1148
  %v1150 = vpop.f32.mrb[0].mxu0
  %v1151 = vpop.f32.mrb[0].mxu0
  %v1152 = vadd.f32 0.0, %v1151
  %v1153 = vpop.f32.mrb[0].mxu0
  %1154 = vmatprep.mubr.bf16.mxu0 0
  %1155 = vmatmul.mubr.bf16.gmra.mrb[0].mxu0 %v473
  %v1156 = vpop.f32.mrb[0].mxu0
  %v1157 = vadd.f32 0.0, %v1156
  %v1158 = vpop.f32.mrb[0].mxu0
  %v1159 = vpop.f32.mrb[0].mxu0
  %v1160 = vadd.f32 0.0, %v1159
  %v1161 = vpop.f32.mrb[0].mxu0
  %1162 = vmatprep.mubr.bf16.mxu0 0
  %1163 = vmatmul.mubr.bf16.gmra.mrb[0].mxu0 %v474
  %v1164 = vpop.f32.mrb[0].mxu0
  %v1165 = vadd.f32 0.0, %v1164
  %v1166 = vpop.f32.mrb[0].mxu0
  %v1167 = vpop.f32.mrb[0].mxu0
  %v1168 = vadd.f32 0.0, %v1167
  %v1169 = vpop.f32.mrb[0].mxu0
  %1170 = vmatprep.mubr.bf16.mxu0 0
  %1171 = vmatmul.mubr.bf16.gmra.mrb[0].mxu0 %v475
  %v1172 = vpop.f32.mrb[0].mxu0
  %v1173 = vadd.f32 0.0, %v1172
  %v1174 = vpop.f32.mrb[0].mxu0
  %v1175 = vpop.f32.mrb[0].mxu0
  %v1176 = vadd.f32 0.0, %v1175
  %v1177 = vpop.f32.mrb[0].mxu0
  %1178 = vmatprep.mubr.bf16.mxu0 0
  %1179 = vmatmul.mubr.bf16.gmra.mrb[0].mxu0 %v476
  %v1180 = vpop.f32.mrb[0].mxu0
  %v1181 = vadd.f32 0.0, %v1180
  %v1182 = vpop.f32.mrb[0].mxu0
  %v1183 = vpop.f32.mrb[0].mxu0
  %v1184 = vadd.f32 0.0, %v1183
  %v1185 = vpop.f32.mrb[0].mxu0
  %1186 = vmatprep.mubr.bf16.mxu0 0
  %1187 = vmatmul.mubr.bf16.gmra.mrb[0].mxu0 %v477
  %v1188 = vpop.f32.mrb[0].mxu0
  %v1189 = vadd.f32 0.0, %v1188
  %v1190 = vpop.f32.mrb[0].mxu0
  %v1191 = vpop.f32.mrb[0].mxu0
  %v1192 = vadd.f32 0.0, %v1191
  %v1193 = vpop.f32.mrb[0].mxu0
  %1194 = vmatprep.mubr.bf16.mxu0 0
  %1195 = vmatmul.mubr.bf16.gmra.mrb[0].mxu0 %v478
  %v1196 = vpop.f32.mrb[0].mxu0
  %v1197 = vadd.f32 0.0, %v1196
  %v1198 = vpop.f32.mrb[0].mxu0
  %v1199 = vpop.f32.mrb[0].mxu0
  %v1200 = vadd.f32 0.0, %v1199
  %v1201 = vpop.f32.mrb[0].mxu0
  %1202 = vmatprep.mubr.bf16.mxu0 0
  %1203 = vmatmul.mubr.bf16.gmra.mrb[0].mxu0 %v479
  %v1204 = vpop.f32.mrb[0].mxu0
  %v1205 = vadd.f32 0.0, %v1204
  %v1206 = vpop.f32.mrb[0].mxu0
  %v1207 = vpop.f32.mrb[0].mxu0
  %v1208 = vadd.f32 0.0, %v1207
  %v1209 = vpop.f32.mrb[0].mxu0
  %1210 = vmatprep.mubr.bf16.mxu0 0
  %1211 = vmatmul.mubr.bf16.gmra.mrb[0].mxu0 %v480
  %v1212 = vpop.f32.mrb[0].mxu0
  %v1213 = vadd.f32 0.0, %v1212
  %v1214 = vpop.f32.mrb[0].mxu0
  %v1215 = vpop.f32.mrb[0].mxu0
  %v1216 = vadd.f32 0.0, %v1215
  %v1217 = vpop.f32.mrb[0].mxu0
  %1218 = vmatprep.mubr.bf16.mxu0 0
  %1219 = vmatmul.mubr.bf16.gmra.mrb[0].mxu0 %v481
  %v1220 = vpop.f32.mrb[0].mxu0
  %v1221 = vadd.f32 0.0, %v1220
  %v1222 = vpop.f32.mrb[0].mxu0
  %v1223 = vpop.f32.mrb[0].mxu0
  %v1224 = vadd.f32 0.0, %v1223
  %v1225 = vpop.f32.mrb[0].mxu0
  %1226 = vmatprep.mubr.bf16.mxu0 0
  %1227 = vmatmul.mubr.bf16.gmra.mrb[0].mxu0 %v482
  %v1228 = vpop.f32.mrb[0].mxu0
  %v1229 = vadd.f32 0.0, %v1228
  %v1230 = vpop.f32.mrb[0].mxu0
  %v1231 = vpop.f32.mrb[0].mxu0
  %v1232 = vadd.f32 0.0, %v1231
  %v1233 = vpop.f32.mrb[0].mxu0
  %1234 = vmatprep.mubr.bf16.mxu0 0
  %1235 = vmatmul.mubr.bf16.gmra.mrb[0].mxu0 %v483
  %v1236 = vpop.f32.mrb[0].mxu0
  %v1237 = vadd.f32 0.0, %v1236
  %v1238 = vpop.f32.mrb[0].mxu0
  %v1239 = vpop.f32.mrb[0].mxu0
  %v1240 = vadd.f32 0.0, %v1239
  %v1241 = vpop.f32.mrb[0].mxu0
  %1242 = vmatprep.mubr.bf16.mxu0 0
  %1243 = vmatmul.mubr.bf16.gmra.mrb[0].mxu0 %v484
  %v1244 = vpop.f32.mrb[0].mxu0
  %v1245 = vadd.f32 0.0, %v1244
  %v1246 = vpop.f32.mrb[0].mxu0
  %v1247 = vpop.f32.mrb[0].mxu0
  %v1248 = vadd.f32 0.0, %v1247
  %v1249 = vpop.f32.mrb[0].mxu0
  %1250 = vmatprep.mubr.bf16.mxu0 0
  %1251 = vmatmul.mubr.bf16.gmra.mrb[0].mxu0 %v485
  %v1252 = vpop.f32.mrb[0].mxu0
  %v1253 = vadd.f32 0.0, %v1252
  %v1254 = vpop.f32.mrb[0].mxu0
  %v1255 = vpop.f32.mrb[0].mxu0
  %v1256 = vadd.f32 0.0, %v1255
  %v1257 = vpop.f32.mrb[0].mxu0
  %1258 = vmatprep.mubr.bf16.mxu0 0
  %1259 = vmatmul.mubr.bf16.gmra.mrb[0].mxu0 %v486
  %v1260 = vpop.f32.mrb[0].mxu0
  %v1261 = vadd.f32 0.0, %v1260
  %v1262 = vpop.f32.mrb[0].mxu0
  %v1263 = vpop.f32.mrb[0].mxu0
  %v1264 = vadd.f32 0.0, %v1263
  %v1265 = vpop.f32.mrb[0].mxu0
  %1266 = vmatprep.mubr.bf16.mxu0 0
  %1267 = vmatmul.mubr.bf16.gmra.mrb[0].mxu0 %v487
  %v1268 = vpop.f32.mrb[0].mxu0
  %v1269 = vadd.f32 0.0, %v1268
  %v1270 = vpop.f32.mrb[0].mxu0
  %v1271 = vpop.f32.mrb[0].mxu0
  %v1272 = vadd.f32 0.0, %v1271
  %v1273 = vpop.f32.mrb[0].mxu0
  %1274 = vmatprep.mubr.bf16.mxu0 0
  %1275 = vmatmul.mubr.bf16.gmra.mrb[0].mxu0 %v488
  %v1276 = vpop.f32.mrb[0].mxu0
  %v1277 = vadd.f32 0.0, %v1276
  %v1278 = vpop.f32.mrb[0].mxu0
  %v1279 = vpop.f32.mrb[0].mxu0
  %v1280 = vadd.f32 0.0, %v1279
  %v1281 = vpop.f32.mrb[0].mxu0
  %1282 = vmatprep.mubr.bf16.mxu0 0
  %1283 = vmatmul.mubr.bf16.gmra.mrb[0].mxu0 %v489
  %v1284 = vpop.f32.mrb[0].mxu0
  %v1285 = vadd.f32 0.0, %v1284
  %v1286 = vpop.f32.mrb[0].mxu0
  %v1287 = vpop.f32.mrb[0].mxu0
  %v1288 = vadd.f32 0.0, %v1287
  %v1289 = vpop.f32.mrb[0].mxu0
  %1290 = vmatprep.mubr.bf16.mxu0 0
  %1291 = vmatmul.mubr.bf16.gmra.mrb[0].mxu0 %v490
  %v1292 = vpop.f32.mrb[0].mxu0
  %v1293 = vadd.f32 0.0, %v1292
  %v1294 = vpop.f32.mrb[0].mxu0
  %v1295 = vpop.f32.mrb[0].mxu0
  %v1296 = vadd.f32 0.0, %v1295
  %v1297 = vpop.f32.mrb[0].mxu0
  %1298 = vmatprep.mubr.bf16.mxu0 0
  %1299 = vmatmul.mubr.bf16.gmra.mrb[0].mxu0 %v491
  %v1300 = vpop.f32.mrb[0].mxu0
  %v1301 = vadd.f32 0.0, %v1300
  %v1302 = vpop.f32.mrb[0].mxu0
  %v1303 = vpop.f32.mrb[0].mxu0
  %v1304 = vadd.f32 0.0, %v1303
  %v1305 = vpop.f32.mrb[0].mxu0
  %1306 = vmatprep.mubr.bf16.mxu0 0
  %1307 = vmatmul.mubr.bf16.gmra.mrb[0].mxu0 %v492
  %v1308 = vpop.f32.mrb[0].mxu0
  %v1309 = vadd.f32 0.0, %v1308
  %v1310 = vpop.f32.mrb[0].mxu0
  %v1311 = vpop.f32.mrb[0].mxu0
  %v1312 = vadd.f32 0.0, %v1311
  %v1313 = vpop.f32.mrb[0].mxu0
  %1314 = vmatprep.mubr.bf16.mxu0 0
  %1315 = vmatmul.mubr.bf16.gmra.mrb[0].mxu0 %v618
  %v1316 = vpop.f32.mrb[0].mxu0
  %v1317 = vadd.f32 0.0, %v1316
  %v1318 = vpop.f32.mrb[0].mxu0
  %v1319 = vpop.f32.mrb[0].mxu0
  %v1320 = vadd.f32 0.0, %v1319
  %v1321 = vpop.f32.mrb[0].mxu0
  %1322 = vmatprep.mubr.bf16.mxu0 0
  %1323 = vmatmul.mubr.bf16.gmra.mrb[0].mxu0 %v619
  %v1324 = vpop.f32.mrb[0].mxu0
  %v1325 = vadd.f32 0.0, %v1324
  %v1326 = vpop.f32.mrb[0].mxu0
  %v1327 = vpop.f32.mrb[0].mxu0
  %v1328 = vadd.f32 0.0, %v1327
  %v1329 = vpop.f32.mrb[0].mxu0
  %1330 = vmatprep.mubr.bf16.mxu0 0
  %1331 = vmatmul.mubr.bf16.gmra.mrb[0].mxu0 %v620
  %v1332 = vpop.f32.mrb[0].mxu0
  %v1333 = vadd.f32 0.0, %v1332
  %v1334 = vpop.f32.mrb[0].mxu0
  %v1335 = vpop.f32.mrb[0].mxu0
  %v1336 = vadd.f32 0.0, %v1335
  %v1337 = vpop.f32.mrb[0].mxu0
  %1338 = vmatprep.mubr.bf16.mxu0 0
  %1339 = vmatmul.mubr.bf16.gmra.mrb[0].mxu0 %v621
  %v1340 = vpop.f32.mrb[0].mxu0
  %v1341 = vadd.f32 0.0, %v1340
  %v1342 = vpop.f32.mrb[0].mxu0
  %v1343 = vpop.f32.mrb[0].mxu0
  %v1344 = vadd.f32 0.0, %v1343
  %v1345 = vpop.f32.mrb[0].mxu0
  %1346 = vmatprep.mubr.bf16.mxu0 0
  %1347 = vmatmul.mubr.bf16.gmra.mrb[0].mxu0 %v622
  %v1348 = vpop.f32.mrb[0].mxu0
  %v1349 = vadd.f32 0.0, %v1348
  %v1350 = vpop.f32.mrb[0].mxu0
  %v1351 = vpop.f32.mrb[0].mxu0
  %v1352 = vadd.f32 0.0, %v1351
  %v1353 = vpop.f32.mrb[0].mxu0
  %1354 = vmatprep.mubr.bf16.mxu0 0
  %1355 = vmatmul.mubr.bf16.gmra.mrb[0].mxu0 %v623
  %v1356 = vpop.f32.mrb[0].mxu0
  %v1357 = vadd.f32 0.0, %v1356
  %v1358 = vpop.f32.mrb[0].mxu0
  %v1359 = vpop.f32.mrb[0].mxu0
  %v1360 = vadd.f32 0.0, %v1359
  %v1361 = vpop.f32.mrb[0].mxu0
  %1362 = vmatprep.mubr.bf16.mxu0 0
  %1363 = vmatmul.mubr.bf16.gmra.mrb[0].mxu0 %v624
  %v1364 = vpop.f32.mrb[0].mxu0
  %v1365 = vadd.f32 0.0, %v1364
  %v1366 = vpop.f32.mrb[0].mxu0
  %v1367 = vpop.f32.mrb[0].mxu0
  %v1368 = vadd.f32 0.0, %v1367
  %v1369 = vpop.f32.mrb[0].mxu0
  %1370 = vmatprep.mubr.bf16.mxu0 0
  %1371 = vmatmul.mubr.bf16.gmra.mrb[0].mxu0 %v625
  %v1372 = vpop.f32.mrb[0].mxu0
  %v1373 = vadd.f32 0.0, %v1372
  %v1374 = vpop.f32.mrb[0].mxu0
  %v1375 = vpop.f32.mrb[0].mxu0
  %v1376 = vadd.f32 0.0, %v1375
  %v1377 = vpop.f32.mrb[0].mxu0
  %1378 = vmatprep.mubr.bf16.mxu0 0
  %1379 = vmatmul.mubr.bf16.gmra.mrb[0].mxu0 %v626
  %v1380 = vpop.f32.mrb[0].mxu0
  %v1381 = vadd.f32 0.0, %v1380
  %v1382 = vpop.f32.mrb[0].mxu0
  %v1383 = vpop.f32.mrb[0].mxu0
  %v1384 = vadd.f32 0.0, %v1383
  %v1385 = vpop.f32.mrb[0].mxu0
  %1386 = vmatprep.mubr.bf16.mxu0 0
  %1387 = vmatmul.mubr.bf16.gmra.mrb[0].mxu0 %v627
  %v1388 = vpop.f32.mrb[0].mxu0
  %v1389 = vadd.f32 0.0, %v1388
  %v1390 = vpop.f32.mrb[0].mxu0
  %v1391 = vpop.f32.mrb[0].mxu0
  %v1392 = vadd.f32 0.0, %v1391
  %v1393 = vpop.f32.mrb[0].mxu0
  %1394 = vmatprep.mubr.bf16.mxu0 0
  %1395 = vmatmul.mubr.bf16.gmra.mrb[0].mxu0 %v628
  %v1396 = vpop.f32.mrb[0].mxu0
  %v1397 = vadd.f32 0.0, %v1396
  %v1398 = vpop.f32.mrb[0].mxu0
  %v1399 = vpop.f32.mrb[0].mxu0
  %v1400 = vadd.f32 0.0, %v1399
  %v1401 = vpop.f32.mrb[0].mxu0
  %1402 = vmatprep.mubr.bf16.mxu0 0
  %1403 = vmatmul.mubr.bf16.gmra.mrb[0].mxu0 %v629
  %v1404 = vpop.f32.mrb[0].mxu0
  %v1405 = vadd.f32 0.0, %v1404
  %v1406 = vpop.f32.mrb[0].mxu0
  %v1407 = vpop.f32.mrb[0].mxu0
  %v1408 = vadd.f32 0.0, %v1407
  %v1409 = vpop.f32.mrb[0].mxu0
  %1410 = vmatprep.mubr.bf16.mxu0 0
  %1411 = vmatmul.mubr.bf16.gmra.mrb[0].mxu0 %v630
  %v1412 = vpop.f32.mrb[0].mxu0
  %v1413 = vadd.f32 0.0, %v1412
  %v1414 = vpop.f32.mrb[0].mxu0
  %v1415 = vpop.f32.mrb[0].mxu0
  %v1416 = vadd.f32 0.0, %v1415
  %v1417 = vpop.f32.mrb[0].mxu0
  %1418 = vmatprep.mubr.bf16.mxu0 0
  %1419 = vmatmul.mubr.bf16.gmra.mrb[0].mxu0 %v631
  %v1420 = vpop.f32.mrb[0].mxu0
  %v1421 = vadd.f32 0.0, %v1420
  %v1422 = vpop.f32.mrb[0].mxu0
  %v1423 = vpop.f32.mrb[0].mxu0
  %v1424 = vadd.f32 0.0, %v1423
  %v1425 = vpop.f32.mrb[0].mxu0
  %1426 = vmatprep.mubr.bf16.mxu0 0
  %1427 = vmatmul.mubr.bf16.gmra.mrb[0].mxu0 %v632
  %v1428 = vpop.f32.mrb[0].mxu0
  %v1429 = vadd.f32 0.0, %v1428
  %v1430 = vpop.f32.mrb[0].mxu0
  %v1431 = vpop.f32.mrb[0].mxu0
  %v1432 = vadd.f32 0.0, %v1431
  %v1433 = vpop.f32.mrb[0].mxu0
  %1434 = vmatprep.mubr.bf16.mxu0 0
  %1435 = vmatmul.mubr.bf16.gmra.mrb[0].mxu0 %v633
  %v1436 = vpop.f32.mrb[0].mxu0
  %v1437 = vadd.f32 0.0, %v1436
  %v1438 = vpop.f32.mrb[0].mxu0
  %v1439 = vpop.f32.mrb[0].mxu0
  %v1440 = vadd.f32 0.0, %v1439
  %v1441 = vpop.f32.mrb[0].mxu0
  %1442 = vmatprep.mubr.bf16.mxu0 0
  %1443 = vmatmul.mubr.bf16.gmra.mrb[0].mxu0 %v634
  %v1444 = vpop.f32.mrb[0].mxu0
  %v1445 = vadd.f32 0.0, %v1444
  %v1446 = vpop.f32.mrb[0].mxu0
  %v1447 = vpop.f32.mrb[0].mxu0
  %v1448 = vadd.f32 0.0, %v1447
  %v1449 = vpop.f32.mrb[0].mxu0
  %1450 = vmatprep.mubr.bf16.mxu0 0
  %1451 = vmatmul.mubr.bf16.gmra.mrb[0].mxu0 %v635
  %v1452 = vpop.f32.mrb[0].mxu0
  %v1453 = vadd.f32 0.0, %v1452
  %v1454 = vpop.f32.mrb[0].mxu0
  %v1455 = vpop.f32.mrb[0].mxu0
  %v1456 = vadd.f32 0.0, %v1455
  %v1457 = vpop.f32.mrb[0].mxu0
  %1458 = vmatprep.mubr.bf16.mxu0 0
  %1459 = vmatmul.mubr.bf16.gmra.mrb[0].mxu0 %v636
  %v1460 = vpop.f32.mrb[0].mxu0
  %v1461 = vadd.f32 0.0, %v1460
  %v1462 = vpop.f32.mrb[0].mxu0
  %v1463 = vpop.f32.mrb[0].mxu0
  %v1464 = vadd.f32 0.0, %v1463
  %v1465 = vpop.f32.mrb[0].mxu0
  %1466 = vmatprep.mubr.bf16.mxu0 0
  %1467 = vmatmul.mubr.bf16.gmra.mrb[0].mxu0 %v637
  %v1468 = vpop.f32.mrb[0].mxu0
  %v1469 = vadd.f32 0.0, %v1468
  %v1470 = vpop.f32.mrb[0].mxu0
  %v1471 = vpop.f32.mrb[0].mxu0
  %v1472 = vadd.f32 0.0, %v1471
  %v1473 = vpop.f32.mrb[0].mxu0
  %1474 = vmatprep.mubr.bf16.mxu0 0
  %1475 = vmatmul.mubr.bf16.gmra.mrb[0].mxu0 %v638
  %v1476 = vpop.f32.mrb[0].mxu0
  %v1477 = vadd.f32 0.0, %v1476
  %v1478 = vpop.f32.mrb[0].mxu0
  %v1479 = vpop.f32.mrb[0].mxu0
  %v1480 = vadd.f32 0.0, %v1479
  %v1481 = vpop.f32.mrb[0].mxu0
  %1482 = vmatprep.mubr.bf16.mxu0 0
  %1483 = vmatmul.mubr.bf16.gmra.mrb[0].mxu0 %v639
  %v1484 = vpop.f32.mrb[0].mxu0
  %v1485 = vadd.f32 0.0, %v1484
  %v1486 = vpop.f32.mrb[0].mxu0
  %v1487 = vpop.f32.mrb[0].mxu0
  %v1488 = vadd.f32 0.0, %v1487
  %v1489 = vpop.f32.mrb[0].mxu0
  %1490 = vmatprep.mubr.bf16.mxu0 0
  %1491 = vmatmul.mubr.bf16.gmra.mrb[0].mxu0 %v640
  %v1492 = vpop.f32.mrb[0].mxu0
  %v1493 = vadd.f32 0.0, %v1492
  %v1494 = vpop.f32.mrb[0].mxu0
  %v1495 = vpop.f32.mrb[0].mxu0
  %v1496 = vadd.f32 0.0, %v1495
  %v1497 = vpop.f32.mrb[0].mxu0
  %1498 = vmatprep.mubr.bf16.mxu0 0
  %1499 = vmatmul.mubr.bf16.gmra.mrb[0].mxu0 %v641
  %v1500 = vpop.f32.mrb[0].mxu0
  %v1501 = vadd.f32 0.0, %v1500
  %v1502 = vpop.f32.mrb[0].mxu0
  %v1503 = vpop.f32.mrb[0].mxu0
  %v1504 = vadd.f32 0.0, %v1503
  %v1505 = vpop.f32.mrb[0].mxu0
  %1506 = vmatprep.mubr.bf16.mxu0 0
  %1507 = vmatmul.mubr.bf16.gmra.mrb[0].mxu0 %v642
  %v1508 = vpop.f32.mrb[0].mxu0
  %v1509 = vadd.f32 0.0, %v1508
  %v1510 = vpop.f32.mrb[0].mxu0
  %v1511 = vpop.f32.mrb[0].mxu0
  %v1512 = vadd.f32 0.0, %v1511
  %v1513 = vpop.f32.mrb[0].mxu0
  %1514 = vmatprep.mubr.bf16.mxu0 0
  %1515 = vmatmul.mubr.bf16.gmra.mrb[0].mxu0 %v768
  %v1516 = vpop.f32.mrb[0].mxu0
  %v1517 = vadd.f32 0.0, %v1516
  %v1518 = vpop.f32.mrb[0].mxu0
  %v1519 = vpop.f32.mrb[0].mxu0
  %v1520 = vadd.f32 0.0, %v1519
  %v1521 = vpop.f32.mrb[0].mxu0
  %1522 = vmatprep.mubr.bf16.mxu0 0
  %1523 = vmatmul.mubr.bf16.gmra.mrb[0].mxu0 %v769
  %v1524 = vpop.f32.mrb[0].mxu0
  %v1525 = vadd.f32 0.0, %v1524
  %v1526 = vpop.f32.mrb[0].mxu0
  %v1527 = vpop.f32.mrb[0].mxu0
  %v1528 = vadd.f32 0.0, %v1527
  %v1529 = vpop.f32.mrb[0].mxu0
  %1530 = vmatprep.mubr.bf16.mxu0 0
  %1531 = vmatmul.mubr.bf16.gmra.mrb[0].mxu0 %v770
  %v1532 = vpop.f32.mrb[0].mxu0
  %v1533 = vadd.f32 0.0, %v1532
  %v1534 = vpop.f32.mrb[0].mxu0
  %v1535 = vpop.f32.mrb[0].mxu0
  %v1536 = vadd.f32 0.0, %v1535
  %v1537 = vpop.f32.mrb[0].mxu0
  %1538 = vmatprep.mubr.bf16.mxu0 0
  %1539 = vmatmul.mubr.bf16.gmra.mrb[0].mxu0 %v771
  %v1540 = vpop.f32.mrb[0].mxu0
  %v1541 = vadd.f32 0.0, %v1540
  %v1542 = vpop.f32.mrb[0].mxu0
  %v1543 = vpop.f32.mrb[0].mxu0
  %v1544 = vadd.f32 0.0, %v1543
  %v1545 = vpop.f32.mrb[0].mxu0
  %1546 = vmatprep.mubr.bf16.mxu0 0
  %1547 = vmatmul.mubr.bf16.gmra.mrb[0].mxu0 %v772
  %v1548 = vpop.f32.mrb[0].mxu0
  %v1549 = vadd.f32 0.0, %v1548
  %v1550 = vpop.f32.mrb[0].mxu0
  %v1551 = vpop.f32.mrb[0].mxu0
  %v1552 = vadd.f32 0.0, %v1551
  %v1553 = vpop.f32.mrb[0].mxu0
  %1554 = vmatprep.mubr.bf16.mxu0 0
  %1555 = vmatmul.mubr.bf16.gmra.mrb[0].mxu0 %v773
  %v1556 = vpop.f32.mrb[0].mxu0
  %v1557 = vadd.f32 0.0, %v1556
  %v1558 = vpop.f32.mrb[0].mxu0
  %v1559 = vpop.f32.mrb[0].mxu0
  %v1560 = vadd.f32 0.0, %v1559
  %v1561 = vpop.f32.mrb[0].mxu0
  %1562 = vmatprep.mubr.bf16.mxu0 0
  %1563 = vmatmul.mubr.bf16.gmra.mrb[0].mxu0 %v774
  %v1564 = vpop.f32.mrb[0].mxu0
  %v1565 = vadd.f32 0.0, %v1564
  %v1566 = vpop.f32.mrb[0].mxu0
  %v1567 = vpop.f32.mrb[0].mxu0
  %v1568 = vadd.f32 0.0, %v1567
  %v1569 = vpop.f32.mrb[0].mxu0
  %1570 = vmatprep.mubr.bf16.mxu0 0
  %1571 = vmatmul.mubr.bf16.gmra.mrb[0].mxu0 %v775
  %v1572 = vpop.f32.mrb[0].mxu0
  %v1573 = vadd.f32 0.0, %v1572
  %v1574 = vpop.f32.mrb[0].mxu0
  %v1575 = vpop.f32.mrb[0].mxu0
  %v1576 = vadd.f32 0.0, %v1575
  %v1577 = vpop.f32.mrb[0].mxu0
  %1578 = vmatprep.mubr.bf16.mxu0 0
  %1579 = vmatmul.mubr.bf16.gmra.mrb[0].mxu0 %v776
  %v1580 = vpop.f32.mrb[0].mxu0
  %v1581 = vadd.f32 0.0, %v1580
  %v1582 = vpop.f32.mrb[0].mxu0
  %v1583 = vpop.f32.mrb[0].mxu0
  %v1584 = vadd.f32 0.0, %v1583
  %v1585 = vpop.f32.mrb[0].mxu0
  %1586 = vmatprep.mubr.bf16.mxu0 0
  %1587 = vmatmul.mubr.bf16.gmra.mrb[0].mxu0 %v777
  %v1588 = vpop.f32.mrb[0].mxu0
  %v1589 = vadd.f32 0.0, %v1588
  %v1590 = vpop.f32.mrb[0].mxu0
  %v1591 = vpop.f32.mrb[0].mxu0
  %v1592 = vadd.f32 0.0, %v1591
  %v1593 = vpop.f32.mrb[0].mxu0
  %1594 = vmatprep.mubr.bf16.mxu0 0
  %1595 = vmatmul.mubr.bf16.gmra.mrb[0].mxu0 %v778
  %v1596 = vpop.f32.mrb[0].mxu0
  %v1597 = vadd.f32 0.0, %v1596
  %v1598 = vpop.f32.mrb[0].mxu0
  %v1599 = vpop.f32.mrb[0].mxu0
  %v1600 = vadd.f32 0.0, %v1599
  %v1601 = vpop.f32.mrb[0].mxu0
  %1602 = vmatprep.mubr.bf16.mxu0 0
  %1603 = vmatmul.mubr.bf16.gmra.mrb[0].mxu0 %v779
  %v1604 = vpop.f32.mrb[0].mxu0
  %v1605 = vadd.f32 0.0, %v1604
  %v1606 = vpop.f32.mrb[0].mxu0
  %v1607 = vpop.f32.mrb[0].mxu0
  %v1608 = vadd.f32 0.0, %v1607
  %v1609 = vpop.f32.mrb[0].mxu0
  %1610 = vmatprep.mubr.bf16.mxu0 0
  %1611 = vmatmul.mubr.bf16.gmra.mrb[0].mxu0 %v780
  %v1612 = vpop.f32.mrb[0].mxu0
  %v1613 = vadd.f32 0.0, %v1612
  %v1614 = vpop.f32.mrb[0].mxu0
  %v1615 = vpop.f32.mrb[0].mxu0
  %v1616 = vadd.f32 0.0, %v1615
  %v1617 = vpop.f32.mrb[0].mxu0
  %1618 = vmatprep.mubr.bf16.mxu0 0
  %1619 = vmatmul.mubr.bf16.gmra.mrb[0].mxu0 %v781
  %v1620 = vpop.f32.mrb[0].mxu0
  %v1621 = vadd.f32 0.0, %v1620
  %v1622 = vpop.f32.mrb[0].mxu0
  %v1623 = vpop.f32.mrb[0].mxu0
  %v1624 = vadd.f32 0.0, %v1623
  %v1625 = vpop.f32.mrb[0].mxu0
  %1626 = vmatprep.mubr.bf16.mxu0 0
  %1627 = vmatmul.mubr.bf16.gmra.mrb[0].mxu0 %v782
  %v1628 = vpop.f32.mrb[0].mxu0
  %v1629 = vadd.f32 0.0, %v1628
  %v1630 = vpop.f32.mrb[0].mxu0
  %v1631 = vpop.f32.mrb[0].mxu0
  %v1632 = vadd.f32 0.0, %v1631
  %v1633 = vpop.f32.mrb[0].mxu0
  %1634 = vmatprep.mubr.bf16.mxu0 0
  %1635 = vmatmul.mubr.bf16.gmra.mrb[0].mxu0 %v783
  %v1636 = vpop.f32.mrb[0].mxu0
  %v1637 = vadd.f32 0.0, %v1636
  %v1638 = vpop.f32.mrb[0].mxu0
  %v1639 = vpop.f32.mrb[0].mxu0
  %v1640 = vadd.f32 0.0, %v1639
  %v1641 = vpop.f32.mrb[0].mxu0
  %1642 = vmatprep.mubr.bf16.mxu0 0
  %1643 = vmatmul.mubr.bf16.gmra.mrb[0].mxu0 %v784
  %v1644 = vpop.f32.mrb[0].mxu0
  %v1645 = vadd.f32 0.0, %v1644
  %v1646 = vpop.f32.mrb[0].mxu0
  %v1647 = vpop.f32.mrb[0].mxu0
  %v1648 = vadd.f32 0.0, %v1647
  %v1649 = vpop.f32.mrb[0].mxu0
  %1650 = vmatprep.mubr.bf16.mxu0 0
  %1651 = vmatmul.mubr.bf16.gmra.mrb[0].mxu0 %v785
  %v1652 = vpop.f32.mrb[0].mxu0
  %v1653 = vadd.f32 0.0, %v1652
  %v1654 = vpop.f32.mrb[0].mxu0
  %v1655 = vpop.f32.mrb[0].mxu0
  %v1656 = vadd.f32 0.0, %v1655
  %v1657 = vpop.f32.mrb[0].mxu0
  %1658 = vmatprep.mubr.bf16.mxu0 0
  %1659 = vmatmul.mubr.bf16.gmra.mrb[0].mxu0 %v786
  %v1660 = vpop.f32.mrb[0].mxu0
  %v1661 = vadd.f32 0.0, %v1660
  %v1662 = vpop.f32.mrb[0].mxu0
  %v1663 = vpop.f32.mrb[0].mxu0
  %v1664 = vadd.f32 0.0, %v1663
  %v1665 = vpop.f32.mrb[0].mxu0
  %1666 = vmatprep.mubr.bf16.mxu0 0
  %1667 = vmatmul.mubr.bf16.gmra.mrb[0].mxu0 %v787
  %v1668 = vpop.f32.mrb[0].mxu0
  %v1669 = vadd.f32 0.0, %v1668
  %v1670 = vpop.f32.mrb[0].mxu0
  %v1671 = vpop.f32.mrb[0].mxu0
  %v1672 = vadd.f32 0.0, %v1671
  %v1673 = vpop.f32.mrb[0].mxu0
  %1674 = vmatprep.mubr.bf16.mxu0 0
  %1675 = vmatmul.mubr.bf16.gmra.mrb[0].mxu0 %v788
  %v1676 = vpop.f32.mrb[0].mxu0
  %v1677 = vadd.f32 0.0, %v1676
  %v1678 = vpop.f32.mrb[0].mxu0
  %v1679 = vpop.f32.mrb[0].mxu0
  %v1680 = vadd.f32 0.0, %v1679
  %v1681 = vpop.f32.mrb[0].mxu0
  %1682 = vmatprep.mubr.bf16.mxu0 0
  %1683 = vmatmul.mubr.bf16.gmra.mrb[0].mxu0 %v789
  %v1684 = vpop.f32.mrb[0].mxu0
  %v1685 = vadd.f32 0.0, %v1684
  %v1686 = vpop.f32.mrb[0].mxu0
  %v1687 = vpop.f32.mrb[0].mxu0
  %v1688 = vadd.f32 0.0, %v1687
  %v1689 = vpop.f32.mrb[0].mxu0
  %1690 = vmatprep.mubr.bf16.mxu0 0
  %1691 = vmatmul.mubr.bf16.gmra.mrb[0].mxu0 %v790
  %v1692 = vpop.f32.mrb[0].mxu0
  %v1693 = vadd.f32 0.0, %v1692
  %v1694 = vpop.f32.mrb[0].mxu0
  %v1695 = vpop.f32.mrb[0].mxu0
  %v1696 = vadd.f32 0.0, %v1695
  %v1697 = vpop.f32.mrb[0].mxu0
  %1698 = vmatprep.mubr.bf16.mxu0 0
  %1699 = vmatmul.mubr.bf16.gmra.mrb[0].mxu0 %v791
  %v1700 = vpop.f32.mrb[0].mxu0
  %v1701 = vadd.f32 0.0, %v1700
  %v1702 = vpop.f32.mrb[0].mxu0
  %v1703 = vpop.f32.mrb[0].mxu0
  %v1704 = vadd.f32 0.0, %v1703
  %v1705 = vpop.f32.mrb[0].mxu0
  %1706 = vmatprep.mubr.bf16.mxu0 0
  %1707 = vmatmul.mubr.bf16.gmra.mrb[0].mxu0 %v792
  %v1708 = vpop.f32.mrb[0].mxu0
  %v1709 = vadd.f32 0.0, %v1708
  %v1710 = vpop.f32.mrb[0].mxu0
  %v1711 = vpop.f32.mrb[0].mxu0
  %v1712 = vadd.f32 0.0, %v1711
  %v1713 = vpop.f32.mrb[0].mxu0
  %1714 = vdwg.mxu0
  %v1715 = vmax.f32 %v917, %v1117
  %v1716 = vmax.f32 %v920, %v1120
  %v1717 = vmax.f32 %v925, %v1125
  %v1718 = vmax.f32 %v928, %v1128
  %v1719 = vmax.f32 %v933, %v1133
  %v1720 = vmax.f32 %v936, %v1136
  %v1721 = vmax.f32 %v941, %v1141
  %v1722 = vmax.f32 %v944, %v1144
  %v1723 = vmax.f32 %v949, %v1149
  %v1724 = vmax.f32 %v952, %v1152
  %v1725 = vmax.f32 %v957, %v1157
  %v1726 = vmax.f32 %v960, %v1160
  %v1727 = vmax.f32 %v965, %v1165
  %v1728 = vmax.f32 %v968, %v1168
  %v1729 = vmax.f32 %v973, %v1173
  %v1730 = vmax.f32 %v976, %v1176
  %v1731 = vmax.f32 %v981, %v1181
  %v1732 = vmax.f32 %v984, %v1184
  %v1733 = vmax.f32 %v989, %v1189
  %v1734 = vmax.f32 %v992, %v1192
  %v1735 = vmax.f32 %v997, %v1197
  %v1736 = vmax.f32 %v1000, %v1200
  %v1737 = vmax.f32 %v1005, %v1205
  %v1738 = vmax.f32 %v1008, %v1208
  %v1739 = vmax.f32 %v1013, %v1213
  %v1740 = vmax.f32 %v1016, %v1216
  %v1741 = vmax.f32 %v1021, %v1221
  %v1742 = vmax.f32 %v1024, %v1224
  %v1743 = vmax.f32 %v1029, %v1229
  %v1744 = vmax.f32 %v1032, %v1232
  %v1745 = vmax.f32 %v1037, %v1237
  %v1746 = vmax.f32 %v1040, %v1240
  %v1747 = vmax.f32 %v1045, %v1245
  %v1748 = vmax.f32 %v1048, %v1248
  %v1749 = vmax.f32 %v1053, %v1253
  %v1750 = vmax.f32 %v1056, %v1256
  %v1751 = vmax.f32 %v1061, %v1261
  %v1752 = vmax.f32 %v1064, %v1264
  %v1753 = vmax.f32 %v1069, %v1269
  %v1754 = vmax.f32 %v1072, %v1272
  %v1755 = vmax.f32 %v1077, %v1277
  %v1756 = vmax.f32 %v1080, %v1280
  %v1757 = vmax.f32 %v1085, %v1285
  %v1758 = vmax.f32 %v1088, %v1288
  %v1759 = vmax.f32 %v1093, %v1293
  %v1760 = vmax.f32 %v1096, %v1296
  %v1761 = vmax.f32 %v1101, %v1301
  %v1762 = vmax.f32 %v1104, %v1304
  %v1763 = vmax.f32 %v1109, %v1309
  %v1764 = vmax.f32 %v1112, %v1312
  %v1765 = vmax.f32 %v1317, %v1517
  %v1766 = vmax.f32 %v1320, %v1520
  %v1767 = vmax.f32 %v1325, %v1525
  %v1768 = vmax.f32 %v1328, %v1528
  %v1769 = vmax.f32 %v1333, %v1533
  %v1770 = vmax.f32 %v1336, %v1536
  %v1771 = vmax.f32 %v1341, %v1541
  %v1772 = vmax.f32 %v1344, %v1544
  %v1773 = vmax.f32 %v1349, %v1549
  %v1774 = vmax.f32 %v1352, %v1552
  %v1775 = vmax.f32 %v1357, %v1557
  %v1776 = vmax.f32 %v1360, %v1560
  %v1777 = vmax.f32 %v1365, %v1565
  %v1778 = vmax.f32 %v1368, %v1568
  %v1779 = vmax.f32 %v1373, %v1573
  %v1780 = vmax.f32 %v1376, %v1576
  %v1781 = vmax.f32 %v1381, %v1581
  %v1782 = vmax.f32 %v1384, %v1584
  %v1783 = vmax.f32 %v1389, %v1589
  %v1784 = vmax.f32 %v1392, %v1592
  %v1785 = vmax.f32 %v1397, %v1597
  %v1786 = vmax.f32 %v1400, %v1600
  %v1787 = vmax.f32 %v1405, %v1605
  %v1788 = vmax.f32 %v1408, %v1608
  %v1789 = vmax.f32 %v1413, %v1613
  %v1790 = vmax.f32 %v1416, %v1616
  %v1791 = vmax.f32 %v1421, %v1621
  %v1792 = vmax.f32 %v1424, %v1624
  %v1793 = vmax.f32 %v1429, %v1629
  %v1794 = vmax.f32 %v1432, %v1632
  %v1795 = vmax.f32 %v1437, %v1637
  %v1796 = vmax.f32 %v1440, %v1640
  %v1797 = vmax.f32 %v1445, %v1645
  %v1798 = vmax.f32 %v1448, %v1648
  %v1799 = vmax.f32 %v1453, %v1653
  %v1800 = vmax.f32 %v1456, %v1656
  %v1801 = vmax.f32 %v1461, %v1661
  %v1802 = vmax.f32 %v1464, %v1664
  %v1803 = vmax.f32 %v1469, %v1669
  %v1804 = vmax.f32 %v1472, %v1672
  %v1805 = vmax.f32 %v1477, %v1677
  %v1806 = vmax.f32 %v1480, %v1680
  %v1807 = vmax.f32 %v1485, %v1685
  %v1808 = vmax.f32 %v1488, %v1688
  %v1809 = vmax.f32 %v1493, %v1693
  %v1810 = vmax.f32 %v1496, %v1696
  %v1811 = vmax.f32 %v1501, %v1701
  %v1812 = vmax.f32 %v1504, %v1704
  %v1813 = vmax.f32 %v1509, %v1709
  %v1814 = vmax.f32 %v1512, %v1712
  %v1815 = vmax.f32 %v1715, %v1765
  %v1816 = vmax.f32 %v1716, %v1766
  %v1817 = vmax.f32 %v1717, %v1767
  %v1818 = vmax.f32 %v1718, %v1768
  %v1819 = vmax.f32 %v1719, %v1769
  %v1820 = vmax.f32 %v1720, %v1770
  %v1821 = vmax.f32 %v1721, %v1771
  %v1822 = vmax.f32 %v1722, %v1772
  %v1823 = vmax.f32 %v1723, %v1773
  %v1824 = vmax.f32 %v1724, %v1774
  %v1825 = vmax.f32 %v1725, %v1775
  %v1826 = vmax.f32 %v1726, %v1776
  %v1827 = vmax.f32 %v1727, %v1777
  %v1828 = vmax.f32 %v1728, %v1778
  %v1829 = vmax.f32 %v1729, %v1779
  %v1830 = vmax.f32 %v1730, %v1780
  %v1831 = vmax.f32 %v1731, %v1781
  %v1832 = vmax.f32 %v1732, %v1782
  %v1833 = vmax.f32 %v1733, %v1783
  %v1834 = vmax.f32 %v1734, %v1784
  %v1835 = vmax.f32 %v1735, %v1785
  %v1836 = vmax.f32 %v1736, %v1786
  %v1837 = vmax.f32 %v1737, %v1787
  %v1838 = vmax.f32 %v1738, %v1788
  %v1839 = vmax.f32 %v1739, %v1789
  %v1840 = vmax.f32 %v1740, %v1790
  %v1841 = vmax.f32 %v1741, %v1791
  %v1842 = vmax.f32 %v1742, %v1792
  %v1843 = vmax.f32 %v1743, %v1793
  %v1844 = vmax.f32 %v1744, %v1794
  %v1845 = vmax.f32 %v1745, %v1795
  %v1846 = vmax.f32 %v1746, %v1796
  %v1847 = vmax.f32 %v1747, %v1797
  %v1848 = vmax.f32 %v1748, %v1798
  %v1849 = vmax.f32 %v1749, %v1799
  %v1850 = vmax.f32 %v1750, %v1800
  %v1851 = vmax.f32 %v1751, %v1801
  %v1852 = vmax.f32 %v1752, %v1802
  %v1853 = vmax.f32 %v1753, %v1803
  %v1854 = vmax.f32 %v1754, %v1804
  %v1855 = vmax.f32 %v1755, %v1805
  %v1856 = vmax.f32 %v1756, %v1806
  %v1857 = vmax.f32 %v1757, %v1807
  %v1858 = vmax.f32 %v1758, %v1808
  %v1859 = vmax.f32 %v1759, %v1809
  %v1860 = vmax.f32 %v1760, %v1810
  %v1861 = vmax.f32 %v1761, %v1811
  %v1862 = vmax.f32 %v1762, %v1812
  %v1863 = vmax.f32 %v1763, %v1813
  %v1864 = vmax.f32 %v1764, %v1814
  %v1865 = vld [vmem:[%s2] sm:$0x1]
  %v1867 = vlaneseq
  %v1868 = vshrl.u32 %v1867, 7
  %v1869 = vsub.s32 0, %v1868
  %v1870 = vrot.slane %v1865, %v1869
  %v1872 = vadd.f32 %v1815, %v1870
  %v1873 = vadd.f32 %v1816, %v1870
  %v1874 = vadd.f32 %v1817, %v1870
  %v1875 = vadd.f32 %v1818, %v1870
  %v1876 = vadd.f32 %v1819, %v1870
  %v1877 = vadd.f32 %v1820, %v1870
  %v1878 = vadd.f32 %v1821, %v1870
  %v1879 = vadd.f32 %v1822, %v1870
  %v1880 = vadd.f32 %v1823, %v1870
  %v1881 = vadd.f32 %v1824, %v1870
  %v1882 = vadd.f32 %v1825, %v1870
  %v1883 = vadd.f32 %v1826, %v1870
  %v1884 = vadd.f32 %v1827, %v1870
  %v1885 = vadd.f32 %v1828, %v1870
  %v1886 = vadd.f32 %v1829, %v1870
  %v1887 = vadd.f32 %v1830, %v1870
  %v1888 = vadd.f32 %v1831, %v1870
  %v1889 = vadd.f32 %v1832, %v1870
  %v1890 = vadd.f32 %v1833, %v1870
  %v1891 = vadd.f32 %v1834, %v1870
  %v1892 = vadd.f32 %v1835, %v1870
  %v1893 = vadd.f32 %v1836, %v1870
  %v1894 = vadd.f32 %v1837, %v1870
  %v1895 = vadd.f32 %v1838, %v1870
  %v1896 = vadd.f32 %v1839, %v1870
  %v1897 = vadd.f32 %v1840, %v1870
  %v1898 = vadd.f32 %v1841, %v1870
  %v1899 = vadd.f32 %v1842, %v1870
  %v1900 = vadd.f32 %v1843, %v1870
  %v1901 = vadd.f32 %v1844, %v1870
  %v1902 = vadd.f32 %v1845, %v1870
  %v1903 = vadd.f32 %v1846, %v1870
  %v1904 = vadd.f32 %v1847, %v1870
  %v1905 = vadd.f32 %v1848, %v1870
  %v1906 = vadd.f32 %v1849, %v1870
  %v1907 = vadd.f32 %v1850, %v1870
  %v1908 = vadd.f32 %v1851, %v1870
  %v1909 = vadd.f32 %v1852, %v1870
  %v1910 = vadd.f32 %v1853, %v1870
  %v1911 = vadd.f32 %v1854, %v1870
  %v1912 = vadd.f32 %v1855, %v1870
  %v1913 = vadd.f32 %v1856, %v1870
  %v1914 = vadd.f32 %v1857, %v1870
  %v1915 = vadd.f32 %v1858, %v1870
  %v1916 = vadd.f32 %v1859, %v1870
  %v1917 = vadd.f32 %v1860, %v1870
  %v1918 = vadd.f32 %v1861, %v1870
  %v1919 = vadd.f32 %v1862, %v1870
  %v1920 = vadd.f32 %v1863, %v1870
  %v1921 = vadd.f32 %v1864, %v1870
  %v1922 = vmax.f32 %v1872, 0.0
  %v1923 = vmax.f32 %v1873, 0.0
  %v1924 = vmax.f32 %v1874, 0.0
  %v1925 = vmax.f32 %v1875, 0.0
  %v1926 = vmax.f32 %v1876, 0.0
  %v1927 = vmax.f32 %v1877, 0.0
  %v1928 = vmax.f32 %v1878, 0.0
  %v1929 = vmax.f32 %v1879, 0.0
  %v1930 = vmax.f32 %v1880, 0.0
  %v1931 = vmax.f32 %v1881, 0.0
  %v1932 = vmax.f32 %v1882, 0.0
  %v1933 = vmax.f32 %v1883, 0.0
  %v1934 = vmax.f32 %v1884, 0.0
  %v1935 = vmax.f32 %v1885, 0.0
  %v1936 = vmax.f32 %v1886, 0.0
  %v1937 = vmax.f32 %v1887, 0.0
  %v1938 = vmax.f32 %v1888, 0.0
  %v1939 = vmax.f32 %v1889, 0.0
  %v1940 = vmax.f32 %v1890, 0.0
  %v1941 = vmax.f32 %v1891, 0.0
  %v1942 = vmax.f32 %v1892, 0.0
  %v1943 = vmax.f32 %v1893, 0.0
  %v1944 = vmax.f32 %v1894, 0.0
  %v1945 = vmax.f32 %v1895, 0.0
  %v1946 = vmax.f32 %v1896, 0.0
  %v1947 = vmax.f32 %v1897, 0.0
  %v1948 = vmax.f32 %v1898, 0.0
  %v1949 = vmax.f32 %v1899, 0.0
  %v1950 = vmax.f32 %v1900, 0.0
  %v1951 = vmax.f32 %v1901, 0.0
  %v1952 = vmax.f32 %v1902, 0.0
  %v1953 = vmax.f32 %v1903, 0.0
  %v1954 = vmax.f32 %v1904, 0.0
  %v1955 = vmax.f32 %v1905, 0.0
  %v1956 = vmax.f32 %v1906, 0.0
  %v1957 = vmax.f32 %v1907, 0.0
  %v1958 = vmax.f32 %v1908, 0.0
  %v1959 = vmax.f32 %v1909, 0.0
  %v1960 = vmax.f32 %v1910, 0.0
  %v1961 = vmax.f32 %v1911, 0.0
  %v1962 = vmax.f32 %v1912, 0.0
  %v1963 = vmax.f32 %v1913, 0.0
  %v1964 = vmax.f32 %v1914, 0.0
  %v1965 = vmax.f32 %v1915, 0.0
  %v1966 = vmax.f32 %v1916, 0.0
  %v1967 = vmax.f32 %v1917, 0.0
  %v1968 = vmax.f32 %v1918, 0.0
  %v1969 = vmax.f32 %v1919, 0.0
  %v1970 = vmax.f32 %v1920, 0.0
  %v1971 = vmax.f32 %v1921, 0.0
  %v1972 = vpack.c.bf16 %v1923, %v1922
  %v1973 = vpack.c.bf16 %v1925, %v1924
  %v1974 = vpack.c.bf16 %v1927, %v1926
  %v1975 = vpack.c.bf16 %v1929, %v1928
  %v1976 = vpack.c.bf16 %v1931, %v1930
  %v1977 = vpack.c.bf16 %v1933, %v1932
  %v1978 = vpack.c.bf16 %v1935, %v1934
  %v1979 = vpack.c.bf16 %v1937, %v1936
  %v1980 = vpack.c.bf16 %v1939, %v1938
  %v1981 = vpack.c.bf16 %v1941, %v1940
  %v1982 = vpack.c.bf16 %v1943, %v1942
  %v1983 = vpack.c.bf16 %v1945, %v1944
  %v1984 = vpack.c.bf16 %v1947, %v1946
  %v1985 = vpack.c.bf16 %v1949, %v1948
  %v1986 = vpack.c.bf16 %v1951, %v1950
  %v1987 = vpack.c.bf16 %v1953, %v1952
  %v1988 = vpack.c.bf16 %v1955, %v1954
  %v1989 = vpack.c.bf16 %v1957, %v1956
  %v1990 = vpack.c.bf16 %v1959, %v1958
  %v1991 = vpack.c.bf16 %v1961, %v1960
  %v1992 = vpack.c.bf16 %v1963, %v1962
  %v1993 = vpack.c.bf16 %v1965, %v1964
  %v1994 = vpack.c.bf16 %v1967, %v1966
  %v1995 = vpack.c.bf16 %v1969, %v1968
  %v1996 = vpack.c.bf16 %v1971, %v1970
  %v2022 = vunpack.c.l.b16 %v1972
  %v2023 = vunpack.c.h.b16 %v1972
  %v2024 = vunpack.c.l.b16 %v1973
  %v2025 = vunpack.c.h.b16 %v1973
  %v2026 = vunpack.c.l.b16 %v1974
  %v2027 = vunpack.c.h.b16 %v1974
  %v2028 = vunpack.c.l.b16 %v1975
  %v2029 = vunpack.c.h.b16 %v1975
  %v2030 = vunpack.c.l.b16 %v1976
  %v2031 = vunpack.c.h.b16 %v1976
  %v2032 = vunpack.c.l.b16 %v1977
  %v2033 = vunpack.c.h.b16 %v1977
  %v2034 = vunpack.c.l.b16 %v1978
  %v2035 = vunpack.c.h.b16 %v1978
  %v2036 = vunpack.c.l.b16 %v1979
  %v2037 = vunpack.c.h.b16 %v1979
  %v2038 = vunpack.c.l.b16 %v1980
  %v2039 = vunpack.c.h.b16 %v1980
  %v2040 = vunpack.c.l.b16 %v1981
  %v2041 = vunpack.c.h.b16 %v1981
  %v2042 = vunpack.c.l.b16 %v1982
  %v2043 = vunpack.c.h.b16 %v1982
  %v2044 = vunpack.c.l.b16 %v1983
  %v2045 = vunpack.c.h.b16 %v1983
  %v2046 = vunpack.c.l.b16 %v1984
  %v2047 = vunpack.c.h.b16 %v1984
  %v2048 = vunpack.c.l.b16 %v1985
  %v2049 = vunpack.c.h.b16 %v1985
  %v2050 = vunpack.c.l.b16 %v1986
  %v2051 = vunpack.c.h.b16 %v1986
  %v2052 = vunpack.c.l.b16 %v1987
  %v2053 = vunpack.c.h.b16 %v1987
  %v2054 = vunpack.c.l.b16 %v1988
  %v2055 = vunpack.c.h.b16 %v1988
  %v2056 = vunpack.c.l.b16 %v1989
  %v2057 = vunpack.c.h.b16 %v1989
  %v2058 = vunpack.c.l.b16 %v1990
  %v2059 = vunpack.c.h.b16 %v1990
  %v2060 = vunpack.c.l.b16 %v1991
  %v2061 = vunpack.c.h.b16 %v1991
  %v2062 = vunpack.c.l.b16 %v1992
  %v2063 = vunpack.c.h.b16 %v1992
  %v2064 = vunpack.c.l.b16 %v1993
  %v2065 = vunpack.c.h.b16 %v1993
  %v2066 = vunpack.c.l.b16 %v1994
  %v2067 = vunpack.c.h.b16 %v1994
  %v2068 = vunpack.c.l.b16 %v1995
  %v2069 = vunpack.c.h.b16 %v1995
  %v2070 = vunpack.c.l.b16 %v1996
  %v2071 = vunpack.c.h.b16 %v1996
  %v2072 = vpack.c.b16 %v2022, %v2022
  %v2073 = vpack.c.b16 %v2023, %v2023
  %v2074 = vpack.c.b16 %v2024, %v2024
  %v2075 = vpack.c.b16 %v2025, %v2025
  %v2076 = vpack.c.b16 %v2026, %v2026
  %v2077 = vpack.c.b16 %v2027, %v2027
  %v2078 = vpack.c.b16 %v2028, %v2028
  %v2079 = vpack.c.b16 %v2029, %v2029
  %v2080 = vpack.c.b16 %v2030, %v2030
  %v2081 = vpack.c.b16 %v2031, %v2031
  %v2082 = vpack.c.b16 %v2032, %v2032
  %v2083 = vpack.c.b16 %v2033, %v2033
  %v2084 = vpack.c.b16 %v2034, %v2034
  %v2085 = vpack.c.b16 %v2035, %v2035
  %v2086 = vpack.c.b16 %v2036, %v2036
  %v2087 = vpack.c.b16 %v2037, %v2037
  %v2088 = vpack.c.b16 %v2038, %v2038
  %v2089 = vpack.c.b16 %v2039, %v2039
  %v2090 = vpack.c.b16 %v2040, %v2040
  %v2091 = vpack.c.b16 %v2041, %v2041
  %v2092 = vpack.c.b16 %v2042, %v2042
  %v2093 = vpack.c.b16 %v2043, %v2043
  %v2094 = vpack.c.b16 %v2044, %v2044
  %v2095 = vpack.c.b16 %v2045, %v2045
  %v2096 = vpack.c.b16 %v2046, %v2046
  %v2097 = vpack.c.b16 %v2047, %v2047
  %v2098 = vpack.c.b16 %v2048, %v2048
  %v2099 = vpack.c.b16 %v2049, %v2049
  %v2100 = vpack.c.b16 %v2050, %v2050
  %v2101 = vpack.c.b16 %v2051, %v2051
  %v2102 = vpack.c.b16 %v2052, %v2052
  %v2103 = vpack.c.b16 %v2053, %v2053
  %v2104 = vpack.c.b16 %v2054, %v2054
  %v2105 = vpack.c.b16 %v2055, %v2055
  %v2106 = vpack.c.b16 %v2056, %v2056
  %v2107 = vpack.c.b16 %v2057, %v2057
  %v2108 = vpack.c.b16 %v2058, %v2058
  %v2109 = vpack.c.b16 %v2059, %v2059
  %v2110 = vpack.c.b16 %v2060, %v2060
  %v2111 = vpack.c.b16 %v2061, %v2061
  %v2112 = vpack.c.b16 %v2062, %v2062
  %v2113 = vpack.c.b16 %v2063, %v2063
  %v2114 = vpack.c.b16 %v2064, %v2064
  %v2115 = vpack.c.b16 %v2065, %v2065
  %v2116 = vpack.c.b16 %v2066, %v2066
  %v2117 = vpack.c.b16 %v2067, %v2067
  %v2118 = vpack.c.b16 %v2068, %v2068
  %v2119 = vpack.c.b16 %v2069, %v2069
  %v2120 = vpack.c.b16 %v2070, %v2070
  %v2121 = vpack.c.b16 %v2071, %v2071
  %2172 = vst [vmem:[%s3] sm:$0xf] %v2072
  %2173 = vst [vmem:[%s3 + $0x4] sm:$0xf] %v2073
  %2174 = vst [vmem:[%s3 + $0x8] sm:$0xf] %v2074
  %2175 = vst [vmem:[%s3 + $0xc] sm:$0xf] %v2075
  %2176 = vst [vmem:[%s3 + $0x10] sm:$0xf] %v2076
  %2177 = vst [vmem:[%s3 + $0x14] sm:$0xf] %v2077
  %2178 = vst [vmem:[%s3 + $0x18] sm:$0xf] %v2078
  %2179 = vst [vmem:[%s3 + $0x1c] sm:$0xf] %v2079
  %2180 = vst [vmem:[%s3 + $0x20] sm:$0xf] %v2080
  %2181 = vst [vmem:[%s3 + $0x24] sm:$0xf] %v2081
  %2182 = vst [vmem:[%s3 + $0x28] sm:$0xf] %v2082
  %2183 = vst [vmem:[%s3 + $0x2c] sm:$0xf] %v2083
  %2184 = vst [vmem:[%s3 + $0x30] sm:$0xf] %v2084
  %2185 = vst [vmem:[%s3 + $0x34] sm:$0xf] %v2085
  %2186 = vst [vmem:[%s3 + $0x38] sm:$0xf] %v2086
  %2187 = vst [vmem:[%s3 + $0x3c] sm:$0xf] %v2087
  %2188 = vst [vmem:[%s3 + $0x40] sm:$0xf] %v2088
  %2189 = vst [vmem:[%s3 + $0x44] sm:$0xf] %v2089
  %2190 = vst [vmem:[%s3 + $0x48] sm:$0xf] %v2090
  %2191 = vst [vmem:[%s3 + $0x4c] sm:$0xf] %v2091
  %2192 = vst [vmem:[%s3 + $0x50] sm:$0xf] %v2092
  %2193 = vst [vmem:[%s3 + $0x54] sm:$0xf] %v2093
  %2194 = vst [vmem:[%s3 + $0x58] sm:$0xf] %v2094
  %2195 = vst [vmem:[%s3 + $0x5c] sm:$0xf] %v2095
  %2196 = vst [vmem:[%s3 + $0x60] sm:$0xf] %v2096
  %2197 = vst [vmem:[%s3 + $0x64] sm:$0xf] %v2097
  %2198 = vst [vmem:[%s3 + $0x68] sm:$0xf] %v2098
  %2199 = vst [vmem:[%s3 + $0x6c] sm:$0xf] %v2099
  %2200 = vst [vmem:[%s3 + $0x70] sm:$0xf] %v2100
  %2201 = vst [vmem:[%s3 + $0x74] sm:$0xf] %v2101
  %2202 = vst [vmem:[%s3 + $0x78] sm:$0xf] %v2102
  %2203 = vst [vmem:[%s3 + $0x7c] sm:$0xf] %v2103
  %2204 = vst [vmem:[%s3 + $0x80] sm:$0xf] %v2104
  %2205 = vst [vmem:[%s3 + $0x84] sm:$0xf] %v2105
  %2206 = vst [vmem:[%s3 + $0x88] sm:$0xf] %v2106
  %2207 = vst [vmem:[%s3 + $0x8c] sm:$0xf] %v2107
  %2208 = vst [vmem:[%s3 + $0x90] sm:$0xf] %v2108
  %2209 = vst [vmem:[%s3 + $0x94] sm:$0xf] %v2109
  %2210 = vst [vmem:[%s3 + $0x98] sm:$0xf] %v2110
  %2211 = vst [vmem:[%s3 + $0x9c] sm:$0xf] %v2111
  %2212 = vst [vmem:[%s3 + $0xa0] sm:$0xf] %v2112
  %2213 = vst [vmem:[%s3 + $0xa4] sm:$0xf] %v2113
  %2214 = vst [vmem:[%s3 + $0xa8] sm:$0xf] %v2114
  %2215 = vst [vmem:[%s3 + $0xac] sm:$0xf] %v2115
  %2216 = vst [vmem:[%s3 + $0xb0] sm:$0xf] %v2116
  %2217 = vst [vmem:[%s3 + $0xb4] sm:$0xf] %v2117
  %2218 = vst [vmem:[%s3 + $0xb8] sm:$0xf] %v2118
  %2219 = vst [vmem:[%s3 + $0xbc] sm:$0xf] %v2119
  %2220 = vst [vmem:[%s3 + $0xc0] sm:$0xf] %v2120
  %2221 = vst [vmem:[%s3 + $0xc4] sm:$0xf] %v2121
  // Predicated region
  $region14: #{net_forward.3} parent=0 // pred_check
    _
  $region15: #{net_forward.3} parent=0 // pred_check_branch
    %2223 = sbr.rel (0) target = $region17
  $region16: #{net_forward.3} parent=0 // pred_region
    _
  $region17: #{net_forward.3} parent=0 // pred_fallthru
    _
  // Predicated region
  $region18: #{net_forward.3} parent=0 // pred_check
    _
  $region19: #{net_forward.3} parent=0 // pred_check_branch
    %2225 = sbr.rel (0) target = $region21
  $region20: #{net_forward.3} parent=0 // pred_region
    _
  $region21: #{net_forward.3} parent=0 // pred_fallthru
    _

// kernel: net_forward.4
$region0: #{net_forward.4}
  #allocation0 [shape = 'u32[]', space=smem, size = 0x4, offset = 0x4, fixed_abs, tag = 'smem constant byte address 0x4 - core index']
  #allocation1 [shape = 'u32[144,128]{1,0:T(1,128)}', space=vmem, size = 0x12000, scoped, tag = 'internal scratch']
  %s0 = inlined_call_operand.vmem [shape: bf16[4,64,256], index: 0, kind: input, shape index: {}]
  %s1 = inlined_call_operand.vmem [shape: bf16[256,128], index: 1, kind: input, shape index: {}]
  %s2 = inlined_call_operand.vmem [shape: f32[1,128], index: 2, kind: input, shape index: {}]
  %s3 = inlined_call_operand.vmem [shape: bf16[64,128], index: 3, kind: output, shape index: {}]
  %s4 = sld [smem:[#allocation0]]
  $region22: #{net_forward.4} parent=0
    _
  %s6 = ssub.s32 1, %s4
  %s7 = scalar_select 0, %s6, %s4
  // Predicated region
  $region2: #{net_forward.4} parent=0 // pred_check
    _
  $region3: #{net_forward.4} parent=0 // pred_check_branch
    %9 = sbr.rel (0) target = $region5
  $region4: #{net_forward.4} parent=0 // pred_region
    _
  $region5: #{net_forward.4} parent=0 // pred_fallthru
    _
  // Predicated region
  $region6: #{net_forward.4} parent=0 // pred_check
    _
  $region7: #{net_forward.4} parent=0 // pred_check_branch
    %11 = sbr.rel (0) target = $region9
  $region8: #{net_forward.4} parent=0 // pred_region
    _
  $region9: #{net_forward.4} parent=0 // pred_fallthru
    _
  // Predicated region
  $region10: #{net_forward.4} parent=0 // pred_check
    _
  $region11: #{net_forward.4} parent=0 // pred_check_branch
    %13 = sbr.rel (0) target = $region13
  $region12: #{net_forward.4} parent=0 // pred_region
    _
  $region13: #{net_forward.4} parent=0 // pred_fallthru
    _
  %v15 = vld [vmem:[%s0] sm:$0xff]
  %v16 = vld [vmem:[%s0 + $0x8] sm:$0xff]
  %v17 = vld [vmem:[%s0 + $0x10] sm:$0xff]
  %v18 = vld [vmem:[%s0 + $0x18] sm:$0xff]
  %v19 = vld [vmem:[%s0 + $0x20] sm:$0xff]
  %v20 = vld [vmem:[%s0 + $0x28] sm:$0xff]
  %v21 = vld [vmem:[%s0 + $0x30] sm:$0xff]
  %v22 = vld [vmem:[%s0 + $0x38] sm:$0xff]
  %s23 = scalar_lea.vmem %s0, 64
  %v24 = vld [vmem:[%s23] sm:$0xff]
  %v25 = vld [vmem:[%s23 + $0x8] sm:$0xff]
  %v26 = vld [vmem:[%s23 + $0x10] sm:$0xff]
  %v27 = vld [vmem:[%s23 + $0x18] sm:$0xff]
  %v28 = vld [vmem:[%s23 + $0x20] sm:$0xff]
  %v29 = vld [vmem:[%s23 + $0x28] sm:$0xff]
  %v30 = vld [vmem:[%s23 + $0x30] sm:$0xff]
  %v31 = vld [vmem:[%s23 + $0x38] sm:$0xff]
  %s32 = scalar_lea.vmem %s0, 128
  %v33 = vld [vmem:[%s32] sm:$0xff]
  %v34 = vld [vmem:[%s32 + $0x8] sm:$0xff]
  %v35 = vld [vmem:[%s32 + $0x10] sm:$0xff]
  %v36 = vld [vmem:[%s32 + $0x18] sm:$0xff]
  %v37 = vld [vmem:[%s32 + $0x20] sm:$0xff]
  %v38 = vld [vmem:[%s32 + $0x28] sm:$0xff]
  %v39 = vld [vmem:[%s32 + $0x30] sm:$0xff]
  %v40 = vld [vmem:[%s32 + $0x38] sm:$0xff]
  %s41 = scalar_lea.vmem %s0, 192
  %v42 = vld [vmem:[%s41] sm:$0xff]
  %v43 = vld [vmem:[%s41 + $0x8] sm:$0xff]
  %v44 = vld [vmem:[%s41 + $0x10] sm:$0xff]
  %v45 = vld [vmem:[%s41 + $0x18] sm:$0xff]
  %v46 = vld [vmem:[%s41 + $0x20] sm:$0xff]
  %v47 = vld [vmem:[%s41 + $0x28] sm:$0xff]
  %v48 = vld [vmem:[%s41 + $0x30] sm:$0xff]
  %v49 = vld [vmem:[%s41 + $0x38] sm:$0xff]
  %v58 = vunpack.c.l.b16 %v15
  %v59 = vunpack.c.h.b16 %v15
  %v60 = vunpack.c.l.b16 %v16
  %v61 = vunpack.c.h.b16 %v16
  %v62 = vunpack.c.l.b16 %v17
  %v63 = vunpack.c.h.b16 %v17
  %v64 = vunpack.c.l.b16 %v18
  %v65 = vunpack.c.h.b16 %v18
  %v66 = vunpack.c.l.b16 %v19
  %v67 = vunpack.c.h.b16 %v19
  %v68 = vunpack.c.l.b16 %v20
  %v69 = vunpack.c.h.b16 %v20
  %v70 = vunpack.c.l.b16 %v21
  %v71 = vunpack.c.h.b16 %v21
  %v72 = vunpack.c.l.b16 %v22
  %v73 = vunpack.c.h.b16 %v22
  %v74 = vpack.c.b16 %v60, %v58
  %v75 = vpack.c.b16 %v61, %v59
  %v76 = vpack.c.b16 %v64, %v62
  %v77 = vpack.c.b16 %v65, %v63
  %v78 = vpack.c.b16 %v68, %v66
  %v79 = vpack.c.b16 %v69, %v67
  %v80 = vpack.c.b16 %v72, %v70
  %v81 = vpack.c.b16 %v73, %v71
  %v98 = vunpack.c.l.b16 %v24
  %v99 = vunpack.c.h.b16 %v24
  %v100 = vunpack.c.l.b16 %v25
  %v101 = vunpack.c.h.b16 %v25
  %v102 = vunpack.c.l.b16 %v26
  %v103 = vunpack.c.h.b16 %v26
  %v104 = vunpack.c.l.b16 %v27
  %v105 = vunpack.c.h.b16 %v27
  %v106 = vunpack.c.l.b16 %v28
  %v107 = vunpack.c.h.b16 %v28
  %v108 = vunpack.c.l.b16 %v29
  %v109 = vunpack.c.h.b16 %v29
  %v110 = vunpack.c.l.b16 %v30
  %v111 = vunpack.c.h.b16 %v30
  %v112 = vunpack.c.l.b16 %v31
  %v113 = vunpack.c.h.b16 %v31
  %v114 = vpack.c.b16 %v100, %v98
  %v115 = vpack.c.b16 %v101, %v99
  %v116 = vpack.c.b16 %v104, %v102
  %v117 = vpack.c.b16 %v105, %v103
  %v118 = vpack.c.b16 %v108, %v106
  %v119 = vpack.c.b16 %v109, %v107
  %v120 = vpack.c.b16 %v112, %v110
  %v121 = vpack.c.b16 %v113, %v111
  %v138 = vunpack.c.l.b16 %v33
  %v139 = vunpack.c.h.b16 %v33
  %v140 = vunpack.c.l.b16 %v34
  %v141 = vunpack.c.h.b16 %v34
  %v142 = vunpack.c.l.b16 %v35
  %v143 = vunpack.c.h.b16 %v35
  %v144 = vunpack.c.l.b16 %v36
  %v145 = vunpack.c.h.b16 %v36
  %v146 = vunpack.c.l.b16 %v37
  %v147 = vunpack.c.h.b16 %v37
  %v148 = vunpack.c.l.b16 %v38
  %v149 = vunpack.c.h.b16 %v38
  %v150 = vunpack.c.l.b16 %v39
  %v151 = vunpack.c.h.b16 %v39
  %v152 = vunpack.c.l.b16 %v40
  %v153 = vunpack.c.h.b16 %v40
  %v154 = vpack.c.b16 %v140, %v138
  %v155 = vpack.c.b16 %v141, %v139
  %v156 = vpack.c.b16 %v144, %v142
  %v157 = vpack.c.b16 %v145, %v143
  %v158 = vpack.c.b16 %v148, %v146
  %v159 = vpack.c.b16 %v149, %v147
  %v160 = vpack.c.b16 %v152, %v150
  %v161 = vpack.c.b16 %v153, %v151
  %v178 = vunpack.c.l.b16 %v42
  %v179 = vunpack.c.h.b16 %v42
  %v180 = vunpack.c.l.b16 %v43
  %v181 = vunpack.c.h.b16 %v43
  %v182 = vunpack.c.l.b16 %v44
  %v183 = vunpack.c.h.b16 %v44
  %v184 = vunpack.c.l.b16 %v45
  %v185 = vunpack.c.h.b16 %v45
  %v186 = vunpack.c.l.b16 %v46
  %v187 = vunpack.c.h.b16 %v46
  %v188 = vunpack.c.l.b16 %v47
  %v189 = vunpack.c.h.b16 %v47
  %v190 = vunpack.c.l.b16 %v48
  %v191 = vunpack.c.h.b16 %v48
  %v192 = vunpack.c.l.b16 %v49
  %v193 = vunpack.c.h.b16 %v49
  %v194 = vpack.c.b16 %v180, %v178
  %v195 = vpack.c.b16 %v181, %v179
  %v196 = vpack.c.b16 %v184, %v182
  %v197 = vpack.c.b16 %v185, %v183
  %v198 = vpack.c.b16 %v188, %v186
  %v199 = vpack.c.b16 %v189, %v187
  %v200 = vpack.c.b16 %v192, %v190
  %v201 = vpack.c.b16 %v193, %v191
  %v210 = vld [vmem:[%s1] sm:$0xf]
  %v211 = vld [vmem:[%s1 + $0x4] sm:$0xf]
  %v212 = vld [vmem:[%s1 + $0x8] sm:$0xf]
  %v213 = vld [vmem:[%s1 + $0xc] sm:$0xf]
  %v214 = vld [vmem:[%s1 + $0x10] sm:$0xf]
  %v215 = vld [vmem:[%s1 + $0x14] sm:$0xf]
  %v216 = vld [vmem:[%s1 + $0x18] sm:$0xf]
  %v217 = vld [vmem:[%s1 + $0x1c] sm:$0xf]
  %v218 = vld [vmem:[%s1 + $0x20] sm:$0xf]
  %v219 = vld [vmem:[%s1 + $0x24] sm:$0xf]
  %v220 = vld [vmem:[%s1 + $0x28] sm:$0xf]
  %v221 = vld [vmem:[%s1 + $0x2c] sm:$0xf]
  %v222 = vld [vmem:[%s1 + $0x30] sm:$0xf]
  %v223 = vld [vmem:[%s1 + $0x34] sm:$0xf]
  %v224 = vld [vmem:[%s1 + $0x38] sm:$0xf]
  %v225 = vld [vmem:[%s1 + $0x3c] sm:$0xf]
  %v226 = vld [vmem:[%s1 + $0x40] sm:$0xf]
  %v227 = vld [vmem:[%s1 + $0x44] sm:$0xf]
  %v228 = vld [vmem:[%s1 + $0x48] sm:$0xf]
  %v229 = vld [vmem:[%s1 + $0x4c] sm:$0xf]
  %v230 = vld [vmem:[%s1 + $0x50] sm:$0xf]
  %v231 = vld [vmem:[%s1 + $0x54] sm:$0xf]
  %v232 = vld [vmem:[%s1 + $0x58] sm:$0xf]
  %v233 = vld [vmem:[%s1 + $0x5c] sm:$0xf]
  %v234 = vld [vmem:[%s1 + $0x60] sm:$0xf]
  %v235 = vld [vmem:[%s1 + $0x64] sm:$0xf]
  %v236 = vld [vmem:[%s1 + $0x68] sm:$0xf]
  %v237 = vld [vmem:[%s1 + $0x6c] sm:$0xf]
  %v238 = vld [vmem:[%s1 + $0x70] sm:$0xf]
  %v239 = vld [vmem:[%s1 + $0x74] sm:$0xf]
  %v240 = vld [vmem:[%s1 + $0x78] sm:$0xf]
  %v241 = vld [vmem:[%s1 + $0x7c] sm:$0xf]
  %v274 = vunpack.c.l.b16 %v210
  %v275 = vunpack.c.l.b16 %v211
  %v276 = vunpack.c.l.b16 %v212
  %v277 = vunpack.c.l.b16 %v213
  %v278 = vunpack.c.l.b16 %v214
  %v279 = vunpack.c.l.b16 %v215
  %v280 = vunpack.c.l.b16 %v216
  %v281 = vunpack.c.l.b16 %v217
  %v282 = vunpack.c.l.b16 %v218
  %v283 = vunpack.c.l.b16 %v219
  %v284 = vunpack.c.l.b16 %v220
  %v285 = vunpack.c.l.b16 %v221
  %v286 = vunpack.c.l.b16 %v222
  %v287 = vunpack.c.l.b16 %v223
  %v288 = vunpack.c.l.b16 %v224
  %v289 = vunpack.c.l.b16 %v225
  %v290 = vunpack.c.l.b16 %v226
  %v291 = vunpack.c.l.b16 %v227
  %v292 = vunpack.c.l.b16 %v228
  %v293 = vunpack.c.l.b16 %v229
  %v294 = vunpack.c.l.b16 %v230
  %v295 = vunpack.c.l.b16 %v231
  %v296 = vunpack.c.l.b16 %v232
  %v297 = vunpack.c.l.b16 %v233
  %v298 = vunpack.c.l.b16 %v234
  %v299 = vunpack.c.l.b16 %v235
  %v300 = vunpack.c.l.b16 %v236
  %v301 = vunpack.c.l.b16 %v237
  %v302 = vunpack.c.l.b16 %v238
  %v303 = vunpack.c.l.b16 %v239
  %v304 = vunpack.c.l.b16 %v240
  %v305 = vunpack.c.l.b16 %v241
  %v306 = vpack.c.b16 %v275, %v274
  %v307 = vpack.c.b16 %v277, %v276
  %v308 = vpack.c.b16 %v279, %v278
  %v309 = vpack.c.b16 %v281, %v280
  %v310 = vpack.c.b16 %v283, %v282
  %v311 = vpack.c.b16 %v285, %v284
  %v312 = vpack.c.b16 %v287, %v286
  %v313 = vpack.c.b16 %v289, %v288
  %v314 = vpack.c.b16 %v291, %v290
  %v315 = vpack.c.b16 %v293, %v292
  %v316 = vpack.c.b16 %v295, %v294
  %v317 = vpack.c.b16 %v297, %v296
  %v318 = vpack.c.b16 %v299, %v298
  %v319 = vpack.c.b16 %v301, %v300
  %v320 = vpack.c.b16 %v303, %v302
  %v321 = vpack.c.b16 %v305, %v304
  %338 = vmatprep.subr.bf16.mxu0 0
  %339 = vmatpush1.bf16.msra.mxu0 %v306
  %340 = vmatprep.subr.bf16.mxu0 0
  %341 = vmatpush1.bf16.msra.mxu0 %v307
  %342 = vmatprep.subr.bf16.mxu0 0
  %343 = vmatpush1.bf16.msra.mxu0 %v308
  %344 = vmatprep.subr.bf16.mxu0 0
  %345 = vmatpush1.bf16.msra.mxu0 %v309
  %346 = vmatprep.subr.bf16.mxu0 0
  %347 = vmatpush1.bf16.msra.mxu0 %v310
  %348 = vmatprep.subr.bf16.mxu0 0
  %349 = vmatpush1.bf16.msra.mxu0 %v311
  %350 = vmatprep.subr.bf16.mxu0 0
  %351 = vmatpush1.bf16.msra.mxu0 %v312
  %352 = vmatprep.subr.bf16.mxu0 0
  %353 = vmatpush1.bf16.msra.mxu0 %v313
  %354 = vmatprep.subr.bf16.mxu0 0
  %355 = vmatpush1.bf16.msra.mxu0 %v314
  %356 = vmatprep.subr.bf16.mxu0 0
  %357 = vmatpush1.bf16.msra.mxu0 %v315
  %358 = vmatprep.subr.bf16.mxu0 0
  %359 = vmatpush1.bf16.msra.mxu0 %v316
  %360 = vmatprep.subr.bf16.mxu0 0
  %361 = vmatpush1.bf16.msra.mxu0 %v317
  %362 = vmatprep.subr.bf16.mxu0 0
  %363 = vmatpush1.bf16.msra.mxu0 %v318
  %364 = vmatprep.subr.bf16.mxu0 0
  %365 = vmatpush1.bf16.msra.mxu0 %v319
  %366 = vmatprep.subr.bf16.mxu0 0
  %367 = vmatpush1.bf16.msra.mxu0 %v320
  %368 = vmatprep.subr.bf16.mxu0 0
  %369 = vmatpush1.bf16.msra.mxu0 %v321
  %370 = vmatprep.mubr.bf16.mxu0 %v75
  %371 = vmatmul.mubr.bf16.gmra.mrb[0].mxu0 %v74
  %v372 = vpop.f32.mrb[0].mxu0
  %v373 = vadd.f32 0.0, %v372
  %v374 = vpop.f32.mrb[0].mxu0
  %v375 = vpop.f32.mrb[0].mxu0
  %v376 = vadd.f32 0.0, %v375
  %v377 = vpop.f32.mrb[0].mxu0
  %378 = vmatprep.mubr.bf16.mxu0 %v77
  %379 = vmatmul.mubr.bf16.gmra.mrb[0].mxu0 %v76
  %v380 = vpop.f32.mrb[0].mxu0
  %v381 = vadd.f32 0.0, %v380
  %v382 = vpop.f32.mrb[0].mxu0
  %v383 = vpop.f32.mrb[0].mxu0
  %v384 = vadd.f32 0.0, %v383
  %v385 = vpop.f32.mrb[0].mxu0
  %386 = vmatprep.mubr.bf16.mxu0 %v79
  %387 = vmatmul.mubr.bf16.gmra.mrb[0].mxu0 %v78
  %v388 = vpop.f32.mrb[0].mxu0
  %v389 = vadd.f32 0.0, %v388
  %v390 = vpop.f32.mrb[0].mxu0
  %v391 = vpop.f32.mrb[0].mxu0
  %v392 = vadd.f32 0.0, %v391
  %v393 = vpop.f32.mrb[0].mxu0
  %394 = vmatprep.mubr.bf16.mxu0 %v81
  %395 = vmatmul.mubr.bf16.gmra.mrb[0].mxu0 %v80
  %v396 = vpop.f32.mrb[0].mxu0
  %v397 = vadd.f32 0.0, %v396
  %v398 = vpop.f32.mrb[0].mxu0
  %v399 = vpop.f32.mrb[0].mxu0
  %v400 = vadd.f32 0.0, %v399
  %v401 = vpop.f32.mrb[0].mxu0
  %402 = vmatprep.mubr.bf16.mxu0 %v115
  %403 = vmatmul.mubr.bf16.gmra.mrb[0].mxu0 %v114
  %v404 = vpop.f32.mrb[0].mxu0
  %v405 = vadd.f32 0.0, %v404
  %v406 = vpop.f32.mrb[0].mxu0
  %v407 = vpop.f32.mrb[0].mxu0
  %v408 = vadd.f32 0.0, %v407
  %v409 = vpop.f32.mrb[0].mxu0
  %410 = vmatprep.mubr.bf16.mxu0 %v117
  %411 = vmatmul.mubr.bf16.gmra.mrb[0].mxu0 %v116
  %v412 = vpop.f32.mrb[0].mxu0
  %v413 = vadd.f32 0.0, %v412
  %v414 = vpop.f32.mrb[0].mxu0
  %v415 = vpop.f32.mrb[0].mxu0
  %v416 = vadd.f32 0.0, %v415
  %v417 = vpop.f32.mrb[0].mxu0
  %418 = vmatprep.mubr.bf16.mxu0 %v119
  %419 = vmatmul.mubr.bf16.gmra.mrb[0].mxu0 %v118
  %v420 = vpop.f32.mrb[0].mxu0
  %v421 = vadd.f32 0.0, %v420
  %v422 = vpop.f32.mrb[0].mxu0
  %v423 = vpop.f32.mrb[0].mxu0
  %v424 = vadd.f32 0.0, %v423
  %v425 = vpop.f32.mrb[0].mxu0
  %426 = vmatprep.mubr.bf16.mxu0 %v121
  %427 = vmatmul.mubr.bf16.gmra.mrb[0].mxu0 %v120
  %v428 = vpop.f32.mrb[0].mxu0
  %v429 = vadd.f32 0.0, %v428
  %v430 = vpop.f32.mrb[0].mxu0
  %v431 = vpop.f32.mrb[0].mxu0
  %v432 = vadd.f32 0.0, %v431
  %v433 = vpop.f32.mrb[0].mxu0
  %434 = vmatprep.mubr.bf16.mxu0 %v155
  %435 = vmatmul.mubr.bf16.gmra.mrb[0].mxu0 %v154
  %v436 = vpop.f32.mrb[0].mxu0
  %v437 = vadd.f32 0.0, %v436
  %v438 = vpop.f32.mrb[0].mxu0
  %v439 = vpop.f32.mrb[0].mxu0
  %v440 = vadd.f32 0.0, %v439
  %v441 = vpop.f32.mrb[0].mxu0
  %442 = vmatprep.mubr.bf16.mxu0 %v157
  %443 = vmatmul.mubr.bf16.gmra.mrb[0].mxu0 %v156
  %v444 = vpop.f32.mrb[0].mxu0
  %v445 = vadd.f32 0.0, %v444
  %v446 = vpop.f32.mrb[0].mxu0
  %v447 = vpop.f32.mrb[0].mxu0
  %v448 = vadd.f32 0.0, %v447
  %v449 = vpop.f32.mrb[0].mxu0
  %450 = vmatprep.mubr.bf16.mxu0 %v159
  %451 = vmatmul.mubr.bf16.gmra.mrb[0].mxu0 %v158
  %v452 = vpop.f32.mrb[0].mxu0
  %v453 = vadd.f32 0.0, %v452
  %v454 = vpop.f32.mrb[0].mxu0
  %v455 = vpop.f32.mrb[0].mxu0
  %v456 = vadd.f32 0.0, %v455
  %v457 = vpop.f32.mrb[0].mxu0
  %458 = vmatprep.mubr.bf16.mxu0 %v161
  %459 = vmatmul.mubr.bf16.gmra.mrb[0].mxu0 %v160
  %v460 = vpop.f32.mrb[0].mxu0
  %v461 = vadd.f32 0.0, %v460
  %v462 = vpop.f32.mrb[0].mxu0
  %v463 = vpop.f32.mrb[0].mxu0
  %v464 = vadd.f32 0.0, %v463
  %v465 = vpop.f32.mrb[0].mxu0
  %466 = vmatprep.mubr.bf16.mxu0 %v195
  %467 = vmatmul.mubr.bf16.gmra.mrb[0].mxu0 %v194
  %v468 = vpop.f32.mrb[0].mxu0
  %v469 = vadd.f32 0.0, %v468
  %v470 = vpop.f32.mrb[0].mxu0
  %v471 = vpop.f32.mrb[0].mxu0
  %v472 = vadd.f32 0.0, %v471
  %v473 = vpop.f32.mrb[0].mxu0
  %474 = vmatprep.mubr.bf16.mxu0 %v197
  %475 = vmatmul.mubr.bf16.gmra.mrb[0].mxu0 %v196
  %v476 = vpop.f32.mrb[0].mxu0
  %v477 = vadd.f32 0.0, %v476
  %v478 = vpop.f32.mrb[0].mxu0
  %v479 = vpop.f32.mrb[0].mxu0
  %v480 = vadd.f32 0.0, %v479
  %v481 = vpop.f32.mrb[0].mxu0
  %482 = vmatprep.mubr.bf16.mxu0 %v199
  %483 = vmatmul.mubr.bf16.gmra.mrb[0].mxu0 %v198
  %v484 = vpop.f32.mrb[0].mxu0
  %v485 = vadd.f32 0.0, %v484
  %v486 = vpop.f32.mrb[0].mxu0
  %v487 = vpop.f32.mrb[0].mxu0
  %v488 = vadd.f32 0.0, %v487
  %v489 = vpop.f32.mrb[0].mxu0
  %490 = vmatprep.mubr.bf16.mxu0 %v201
  %491 = vmatmul.mubr.bf16.gmra.mrb[0].mxu0 %v200
  %v492 = vpop.f32.mrb[0].mxu0
  %v493 = vadd.f32 0.0, %v492
  %v494 = vpop.f32.mrb[0].mxu0
  %v495 = vpop.f32.mrb[0].mxu0
  %v496 = vadd.f32 0.0, %v495
  %v497 = vpop.f32.mrb[0].mxu0
  %498 = vdwg.mxu0
  %v499 = vmax.f32 %v373, %v405
  %v500 = vmax.f32 %v376, %v408
  %v501 = vmax.f32 %v381, %v413
  %v502 = vmax.f32 %v384, %v416
  %v503 = vmax.f32 %v389, %v421
  %v504 = vmax.f32 %v392, %v424
  %v505 = vmax.f32 %v397, %v429
  %v506 = vmax.f32 %v400, %v432
  %v507 = vmax.f32 %v437, %v469
  %v508 = vmax.f32 %v440, %v472
  %v509 = vmax.f32 %v445, %v477
  %v510 = vmax.f32 %v448, %v480
  %v511 = vmax.f32 %v453, %v485
  %v512 = vmax.f32 %v456, %v488
  %v513 = vmax.f32 %v461, %v493
  %v514 = vmax.f32 %v464, %v496
  %v515 = vmax.f32 %v499, %v507
  %v516 = vmax.f32 %v500, %v508
  %v517 = vmax.f32 %v501, %v509
  %v518 = vmax.f32 %v502, %v510
  %v519 = vmax.f32 %v503, %v511
  %v520 = vmax.f32 %v504, %v512
  %v521 = vmax.f32 %v505, %v513
  %v522 = vmax.f32 %v506, %v514
  %v523 = vld [vmem:[%s2] sm:$0x1]
  %v525 = vlaneseq
  %v526 = vshrl.u32 %v525, 7
  %v527 = vsub.s32 0, %v526
  %v528 = vrot.slane %v523, %v527
  %v530 = vadd.f32 %v515, %v528
  %v531 = vadd.f32 %v516, %v528
  %v532 = vadd.f32 %v517, %v528
  %v533 = vadd.f32 %v518, %v528
  %v534 = vadd.f32 %v519, %v528
  %v535 = vadd.f32 %v520, %v528
  %v536 = vadd.f32 %v521, %v528
  %v537 = vadd.f32 %v522, %v528
  %v538 = vmax.f32 %v530, 0.0
  %v539 = vmax.f32 %v531, 0.0
  %v540 = vmax.f32 %v532, 0.0
  %v541 = vmax.f32 %v533, 0.0
  %v542 = vmax.f32 %v534, 0.0
  %v543 = vmax.f32 %v535, 0.0
  %v544 = vmax.f32 %v536, 0.0
  %v545 = vmax.f32 %v537, 0.0
  %v546 = vpack.c.bf16 %v539, %v538
  %v547 = vpack.c.bf16 %v541, %v540
  %v548 = vpack.c.bf16 %v543, %v542
  %v549 = vpack.c.bf16 %v545, %v544
  %v554 = vunpack.c.l.b16 %v546
  %v555 = vunpack.c.h.b16 %v546
  %v556 = vunpack.c.l.b16 %v547
  %v557 = vunpack.c.h.b16 %v547
  %v558 = vunpack.c.l.b16 %v548
  %v559 = vunpack.c.h.b16 %v548
  %v560 = vunpack.c.l.b16 %v549
  %v561 = vunpack.c.h.b16 %v549
  %v562 = vpack.c.b16 %v554, %v554
  %v563 = vpack.c.b16 %v555, %v555
  %v564 = vpack.c.b16 %v556, %v556
  %v565 = vpack.c.b16 %v557, %v557
  %v566 = vpack.c.b16 %v558, %v558
  %v567 = vpack.c.b16 %v559, %v559
  %v568 = vpack.c.b16 %v560, %v560
  %v569 = vpack.c.b16 %v561, %v561
  %578 = vst [vmem:[%s3] sm:$0xf] %v562
  %579 = vst [vmem:[%s3 + $0x4] sm:$0xf] %v563
  %580 = vst [vmem:[%s3 + $0x8] sm:$0xf] %v564
  %581 = vst [vmem:[%s3 + $0xc] sm:$0xf] %v565
  %582 = vst [vmem:[%s3 + $0x10] sm:$0xf] %v566
  %583 = vst [vmem:[%s3 + $0x14] sm:$0xf] %v567
  %584 = vst [vmem:[%s3 + $0x18] sm:$0xf] %v568
  %585 = vst [vmem:[%s3 + $0x1c] sm:$0xf] %v569
  // Predicated region
  $region14: #{net_forward.4} parent=0 // pred_check
    _
  $region15: #{net_forward.4} parent=0 // pred_check_branch
    %587 = sbr.rel (0) target = $region17
  $region16: #{net_forward.4} parent=0 // pred_region
    _
  $region17: #{net_forward.4} parent=0 // pred_fallthru
    _
  // Predicated region
  $region18: #{net_forward.4} parent=0 // pred_check
    _
  $region19: #{net_forward.4} parent=0 // pred_check_branch
    %589 = sbr.rel (0) target = $region21
  $region20: #{net_forward.4} parent=0 // pred_region
    _
  $region21: #{net_forward.4} parent=0 // pred_fallthru
    _

// kernel: net_forward.5
$region0: #{net_forward.5}
  #allocation0 [shape = 'u32[]', space=smem, size = 0x4, offset = 0x4, fixed_abs, tag = 'smem constant byte address 0x4 - core index']
  #allocation1 [shape = 'u32[144,128]{1,0:T(1,128)}', space=vmem, size = 0x12000, scoped, tag = 'internal scratch']
  %s0 = inlined_call_operand.vmem [shape: bf16[2,512], index: 0, kind: input, shape index: {}]
  %s1 = inlined_call_operand.vmem [shape: bf16[512,128], index: 1, kind: input, shape index: {}]
  %s2 = inlined_call_operand.vmem [shape: f32[1,128], index: 2, kind: input, shape index: {}]
  %s3 = inlined_call_operand.vmem [shape: bf16[128,128], index: 3, kind: input, shape index: {}]
  %s4 = inlined_call_operand.vmem [shape: f32[1,128], index: 4, kind: input, shape index: {}]
  %s5 = inlined_call_operand.vmem [shape: bf16[128,128], index: 5, kind: input, shape index: {}]
  %s6 = inlined_call_operand.vmem [shape: f32[1,128], index: 6, kind: input, shape index: {}]
  %s7 = inlined_call_operand.hbm [shape: f32[2,128], index: 7, kind: output, shape index: {}]
  %s8 = sld [smem:[#allocation0]]
  $region38: #{net_forward.5} parent=0
    _
  %s10 = ssub.s32 1, %s8
  %s11 = scalar_select 0, %s10, %s8
  $region1: #{net_forward.5} parent=0
    #allocation2 [shape = 'u8[1024]{0}', space=vmem, size = 0x400, scoped, tag = 'output window, operand 0, single buffered']
    #allocation3 [shape = 's32[1]{0}', space=sflag, size = 0x4, scoped, tag = 'scoped memory for net_forward.5']
    %12 = vsyncpa [#allocation3], 0
    // Predicated region
    $region2: #{net_forward.5} parent=1 // pred_check
      _
    $region3: #{net_forward.5} parent=1 // pred_check_branch
      %14 = sbr.rel (0) target = $region5
    $region4: #{net_forward.5} parent=1 // pred_region
      _
    $region5: #{net_forward.5} parent=1 // pred_fallthru
      _
    // Predicated region
    $region6: #{net_forward.5} parent=1 // pred_check
      _
    $region7: #{net_forward.5} parent=1 // pred_check_branch
      %16 = sbr.rel (0) target = $region9
    $region8: #{net_forward.5} parent=1 // pred_region
      _
    $region9: #{net_forward.5} parent=1 // pred_fallthru
      _
    // Predicated region
    $region10: #{net_forward.5} parent=1 // pred_check
      _
    $region11: #{net_forward.5} parent=1 // pred_check_branch
      %18 = sbr.rel (0) target = $region13
    $region12: #{net_forward.5} parent=1 // pred_region
      _
    $region13: #{net_forward.5} parent=1 // pred_fallthru
      _
    // Predicated region
    $region14: #{net_forward.5} parent=1 // pred_check
      _
    $region15: #{net_forward.5} parent=1 // pred_check_branch
      %20 = sbr.rel (0) target = $region17
    $region16: #{net_forward.5} parent=1 // pred_region
      _
    $region17: #{net_forward.5} parent=1 // pred_fallthru
      _
    // Predicated region
    $region18: #{net_forward.5} parent=1 // pred_check
      _
    $region19: #{net_forward.5} parent=1 // pred_check_branch
      %22 = sbr.rel (0) target = $region21
    $region20: #{net_forward.5} parent=1 // pred_region
      _
    $region21: #{net_forward.5} parent=1 // pred_fallthru
      _
    // Predicated region
    $region22: #{net_forward.5} parent=1 // pred_check
      _
    $region23: #{net_forward.5} parent=1 // pred_check_branch
      %24 = sbr.rel (0) target = $region25
    $region24: #{net_forward.5} parent=1 // pred_region
      _
    $region25: #{net_forward.5} parent=1 // pred_fallthru
      _
    // Predicated region
    $region26: #{net_forward.5} parent=1 // pred_check
      _
    $region27: #{net_forward.5} parent=1 // pred_check_branch
      %26 = sbr.rel (0) target = $region29
    $region28: #{net_forward.5} parent=1 // pred_region
      _
    $region29: #{net_forward.5} parent=1 // pred_fallthru
      _
    %v28 = vld [vmem:[%s0] sm:$0xf]
    %v29 = vld [vmem:[%s1] sm:$0xf]
    %v30 = vld [vmem:[%s1 + $0x4] sm:$0xf]
    %v31 = vld [vmem:[%s1 + $0x8] sm:$0xf]
    %v32 = vld [vmem:[%s1 + $0xc] sm:$0xf]
    %v33 = vld [vmem:[%s1 + $0x10] sm:$0xf]
    %v34 = vld [vmem:[%s1 + $0x14] sm:$0xf]
    %v35 = vld [vmem:[%s1 + $0x18] sm:$0xf]
    %v36 = vld [vmem:[%s1 + $0x1c] sm:$0xf]
    %v37 = vld [vmem:[%s1 + $0x20] sm:$0xf]
    %v38 = vld [vmem:[%s1 + $0x24] sm:$0xf]
    %v39 = vld [vmem:[%s1 + $0x28] sm:$0xf]
    %v40 = vld [vmem:[%s1 + $0x2c] sm:$0xf]
    %v41 = vld [vmem:[%s1 + $0x30] sm:$0xf]
    %v42 = vld [vmem:[%s1 + $0x34] sm:$0xf]
    %v43 = vld [vmem:[%s1 + $0x38] sm:$0xf]
    %v44 = vld [vmem:[%s1 + $0x3c] sm:$0xf]
    %v45 = vld [vmem:[%s1 + $0x40] sm:$0xf]
    %v46 = vld [vmem:[%s1 + $0x44] sm:$0xf]
    %v47 = vld [vmem:[%s1 + $0x48] sm:$0xf]
    %v48 = vld [vmem:[%s1 + $0x4c] sm:$0xf]
    %v49 = vld [vmem:[%s1 + $0x50] sm:$0xf]
    %v50 = vld [vmem:[%s1 + $0x54] sm:$0xf]
    %v51 = vld [vmem:[%s1 + $0x58] sm:$0xf]
    %v52 = vld [vmem:[%s1 + $0x5c] sm:$0xf]
    %v53 = vld [vmem:[%s1 + $0x60] sm:$0xf]
    %v54 = vld [vmem:[%s1 + $0x64] sm:$0xf]
    %v55 = vld [vmem:[%s1 + $0x68] sm:$0xf]
    %v56 = vld [vmem:[%s1 + $0x6c] sm:$0xf]
    %v57 = vld [vmem:[%s1 + $0x70] sm:$0xf]
    %v58 = vld [vmem:[%s1 + $0x74] sm:$0xf]
    %v59 = vld [vmem:[%s1 + $0x78] sm:$0xf]
    %v60 = vld [vmem:[%s1 + $0x7c] sm:$0xf]
    %v61 = vld [vmem:[%s1 + $0x80] sm:$0xf]
    %v62 = vld [vmem:[%s1 + $0x84] sm:$0xf]
    %v63 = vld [vmem:[%s1 + $0x88] sm:$0xf]
    %v64 = vld [vmem:[%s1 + $0x8c] sm:$0xf]
    %v65 = vld [vmem:[%s1 + $0x90] sm:$0xf]
    %v66 = vld [vmem:[%s1 + $0x94] sm:$0xf]
    %v67 = vld [vmem:[%s1 + $0x98] sm:$0xf]
    %v68 = vld [vmem:[%s1 + $0x9c] sm:$0xf]
    %v69 = vld [vmem:[%s1 + $0xa0] sm:$0xf]
    %v70 = vld [vmem:[%s1 + $0xa4] sm:$0xf]
    %v71 = vld [vmem:[%s1 + $0xa8] sm:$0xf]
    %v72 = vld [vmem:[%s1 + $0xac] sm:$0xf]
    %v73 = vld [vmem:[%s1 + $0xb0] sm:$0xf]
    %v74 = vld [vmem:[%s1 + $0xb4] sm:$0xf]
    %v75 = vld [vmem:[%s1 + $0xb8] sm:$0xf]
    %v76 = vld [vmem:[%s1 + $0xbc] sm:$0xf]
    %v77 = vld [vmem:[%s1 + $0xc0] sm:$0xf]
    %v78 = vld [vmem:[%s1 + $0xc4] sm:$0xf]
    %v79 = vld [vmem:[%s1 + $0xc8] sm:$0xf]
    %v80 = vld [vmem:[%s1 + $0xcc] sm:$0xf]
    %v81 = vld [vmem:[%s1 + $0xd0] sm:$0xf]
    %v82 = vld [vmem:[%s1 + $0xd4] sm:$0xf]
    %v83 = vld [vmem:[%s1 + $0xd8] sm:$0xf]
    %v84 = vld [vmem:[%s1 + $0xdc] sm:$0xf]
    %v85 = vld [vmem:[%s1 + $0xe0] sm:$0xf]
    %v86 = vld [vmem:[%s1 + $0xe4] sm:$0xf]
    %v87 = vld [vmem:[%s1 + $0xe8] sm:$0xf]
    %v88 = vld [vmem:[%s1 + $0xec] sm:$0xf]
    %v89 = vld [vmem:[%s1 + $0xf0] sm:$0xf]
    %v90 = vld [vmem:[%s1 + $0xf4] sm:$0xf]
    %v91 = vld [vmem:[%s1 + $0xf8] sm:$0xf]
    %v92 = vld [vmem:[%s1 + $0xfc] sm:$0xf]
    %v93 = vld [vmem:[%s2] sm:$0x1]
    %v95 = vlaneseq
    %v96 = vshrl.u32 %v95, 7
    %v97 = vsub.s32 0, %v96
    %v98 = vrot.slane %v93, %v97
    %v102 = vunpack.c.l.s4 1966171168
    %v103 = vunpack.c.0.s8 %v102
    %v104 = vlaneseq
    %v105 = vshrl.u32 %v104, 7
    %v106 = vsub.s32 %v103, %v105
    %v107 = vrot.slane %v28, %v106
    %v108 = vcombine.high %v107, %v107
    %v110 = vunpack.c.l.s4 1966171168
    %v111 = vunpack.c.0.s8 %v110
    %v112 = vlaneseq
    %v113 = vshrl.u32 %v112, 7
    %v114 = vsub.s32 %v111, %v113
    %v115 = vrot.slane %v107, %v114
    %v117 = vunpack.c.l.s4 1966171168
    %v118 = vunpack.c.0.s8 %v117
    %v119 = vlaneseq
    %v120 = vshrl.u32 %v119, 7
    %v121 = vsub.s32 %v118, %v120
    %v122 = vrot.slane %v108, %v121
    %v123 = vcombine.high %v115, %v115
    %v124 = vcombine.high %v122, %v122
    %v193 = vunpack.c.l.b16 %v29
    %v194 = vunpack.c.l.b16 %v30
    %v195 = vunpack.c.l.b16 %v31
    %v196 = vunpack.c.l.b16 %v32
    %v197 = vunpack.c.l.b16 %v33
    %v198 = vunpack.c.l.b16 %v34
    %v199 = vunpack.c.l.b16 %v35
    %v200 = vunpack.c.l.b16 %v36
    %v201 = vunpack.c.l.b16 %v37
    %v202 = vunpack.c.l.b16 %v38
    %v203 = vunpack.c.l.b16 %v39
    %v204 = vunpack.c.l.b16 %v40
    %v205 = vunpack.c.l.b16 %v41
    %v206 = vunpack.c.l.b16 %v42
    %v207 = vunpack.c.l.b16 %v43
    %v208 = vunpack.c.l.b16 %v44
    %v209 = vunpack.c.l.b16 %v45
    %v210 = vunpack.c.l.b16 %v46
    %v211 = vunpack.c.l.b16 %v47
    %v212 = vunpack.c.l.b16 %v48
    %v213 = vunpack.c.l.b16 %v49
    %v214 = vunpack.c.l.b16 %v50
    %v215 = vunpack.c.l.b16 %v51
    %v216 = vunpack.c.l.b16 %v52
    %v217 = vunpack.c.l.b16 %v53
    %v218 = vunpack.c.l.b16 %v54
    %v219 = vunpack.c.l.b16 %v55
    %v220 = vunpack.c.l.b16 %v56
    %v221 = vunpack.c.l.b16 %v57
    %v222 = vunpack.c.l.b16 %v58
    %v223 = vunpack.c.l.b16 %v59
    %v224 = vunpack.c.l.b16 %v60
    %v225 = vunpack.c.l.b16 %v61
    %v226 = vunpack.c.l.b16 %v62
    %v227 = vunpack.c.l.b16 %v63
    %v228 = vunpack.c.l.b16 %v64
    %v229 = vunpack.c.l.b16 %v65
    %v230 = vunpack.c.l.b16 %v66
    %v231 = vunpack.c.l.b16 %v67
    %v232 = vunpack.c.l.b16 %v68
    %v233 = vunpack.c.l.b16 %v69
    %v234 = vunpack.c.l.b16 %v70
    %v235 = vunpack.c.l.b16 %v71
    %v236 = vunpack.c.l.b16 %v72
    %v237 = vunpack.c.l.b16 %v73
    %v238 = vunpack.c.l.b16 %v74
    %v239 = vunpack.c.l.b16 %v75
    %v240 = vunpack.c.l.b16 %v76
    %v241 = vunpack.c.l.b16 %v77
    %v242 = vunpack.c.l.b16 %v78
    %v243 = vunpack.c.l.b16 %v79
    %v244 = vunpack.c.l.b16 %v80
    %v245 = vunpack.c.l.b16 %v81
    %v246 = vunpack.c.l.b16 %v82
    %v247 = vunpack.c.l.b16 %v83
    %v248 = vunpack.c.l.b16 %v84
    %v249 = vunpack.c.l.b16 %v85
    %v250 = vunpack.c.l.b16 %v86
    %v251 = vunpack.c.l.b16 %v87
    %v252 = vunpack.c.l.b16 %v88
    %v253 = vunpack.c.l.b16 %v89
    %v254 = vunpack.c.l.b16 %v90
    %v255 = vunpack.c.l.b16 %v91
    %v256 = vunpack.c.l.b16 %v92
    %v257 = vpack.c.b16 %v194, %v193
    %v258 = vpack.c.b16 %v196, %v195
    %v259 = vpack.c.b16 %v198, %v197
    %v260 = vpack.c.b16 %v200, %v199
    %v261 = vpack.c.b16 %v202, %v201
    %v262 = vpack.c.b16 %v204, %v203
    %v263 = vpack.c.b16 %v206, %v205
    %v264 = vpack.c.b16 %v208, %v207
    %v265 = vpack.c.b16 %v210, %v209
    %v266 = vpack.c.b16 %v212, %v211
    %v267 = vpack.c.b16 %v214, %v213
    %v268 = vpack.c.b16 %v216, %v215
    %v269 = vpack.c.b16 %v218, %v217
    %v270 = vpack.c.b16 %v220, %v219
    %v271 = vpack.c.b16 %v222, %v221
    %v272 = vpack.c.b16 %v224, %v223
    %v273 = vpack.c.b16 %v226, %v225
    %v274 = vpack.c.b16 %v228, %v227
    %v275 = vpack.c.b16 %v230, %v229
    %v276 = vpack.c.b16 %v232, %v231
    %v277 = vpack.c.b16 %v234, %v233
    %v278 = vpack.c.b16 %v236, %v235
    %v279 = vpack.c.b16 %v238, %v237
    %v280 = vpack.c.b16 %v240, %v239
    %v281 = vpack.c.b16 %v242, %v241
    %v282 = vpack.c.b16 %v244, %v243
    %v283 = vpack.c.b16 %v246, %v245
    %v284 = vpack.c.b16 %v248, %v247
    %v285 = vpack.c.b16 %v250, %v249
    %v286 = vpack.c.b16 %v252, %v251
    %v287 = vpack.c.b16 %v254, %v253
    %v288 = vpack.c.b16 %v256, %v255
    %321 = vmatprep.subr.bf16.mxu0 0
    %322 = vmatpush1.bf16.msra.mxu0 %v257
    %323 = vmatprep.subr.bf16.mxu0 0
    %324 = vmatpush1.bf16.msra.mxu0 %v258
    %325 = vmatprep.subr.bf16.mxu0 0
    %326 = vmatpush1.bf16.msra.mxu0 %v259
    %327 = vmatprep.subr.bf16.mxu0 0
    %328 = vmatpush1.bf16.msra.mxu0 %v260
    %329 = vmatprep.subr.bf16.mxu0 0
    %330 = vmatpush1.bf16.msra.mxu0 %v261
    %331 = vmatprep.subr.bf16.mxu0 0
    %332 = vmatpush1.bf16.msra.mxu0 %v262
    %333 = vmatprep.subr.bf16.mxu0 0
    %334 = vmatpush1.bf16.msra.mxu0 %v263
    %335 = vmatprep.subr.bf16.mxu0 0
    %336 = vmatpush1.bf16.msra.mxu0 %v264
    %337 = vmatprep.subr.bf16.mxu0 0
    %338 = vmatpush1.bf16.msra.mxu0 %v265
    %339 = vmatprep.subr.bf16.mxu0 0
    %340 = vmatpush1.bf16.msra.mxu0 %v266
    %341 = vmatprep.subr.bf16.mxu0 0
    %342 = vmatpush1.bf16.msra.mxu0 %v267
    %343 = vmatprep.subr.bf16.mxu0 0
    %344 = vmatpush1.bf16.msra.mxu0 %v268
    %345 = vmatprep.subr.bf16.mxu0 0
    %346 = vmatpush1.bf16.msra.mxu0 %v269
    %347 = vmatprep.subr.bf16.mxu0 0
    %348 = vmatpush1.bf16.msra.mxu0 %v270
    %349 = vmatprep.subr.bf16.mxu0 0
    %350 = vmatpush1.bf16.msra.mxu0 %v271
    %351 = vmatprep.subr.bf16.mxu0 0
    %352 = vmatpush1.bf16.msra.mxu0 %v272
    %353 = vmatprep.mubr.bf16.mxu0 %v122
    %354 = vmatmul.mubr.bf16.gmra.mrb[0].mxu0 %v115
    %v355 = vpop.f32.mrb[0].mxu0
    %v356 = vadd.f32 %v98, %v355
    %v357 = vpop.f32.mrb[0].mxu0
    %v358 = vpop.f32.mrb[0].mxu0
    %v359 = vpop.f32.mrb[0].mxu0
    %360 = vdwg.mxu0
    %361 = vmatprep.subr.bf16.mxu0 0
    %362 = vmatpush1.bf16.msra.mxu0 %v273
    %363 = vmatprep.subr.bf16.mxu0 0
    %364 = vmatpush1.bf16.msra.mxu0 %v274
    %365 = vmatprep.subr.bf16.mxu0 0
    %366 = vmatpush1.bf16.msra.mxu0 %v275
    %367 = vmatprep.subr.bf16.mxu0 0
    %368 = vmatpush1.bf16.msra.mxu0 %v276
    %369 = vmatprep.subr.bf16.mxu0 0
    %370 = vmatpush1.bf16.msra.mxu0 %v277
    %371 = vmatprep.subr.bf16.mxu0 0
    %372 = vmatpush1.bf16.msra.mxu0 %v278
    %373 = vmatprep.subr.bf16.mxu0 0
    %374 = vmatpush1.bf16.msra.mxu0 %v279
    %375 = vmatprep.subr.bf16.mxu0 0
    %376 = vmatpush1.bf16.msra.mxu0 %v280
    %377 = vmatprep.subr.bf16.mxu0 0
    %378 = vmatpush1.bf16.msra.mxu0 %v281
    %379 = vmatprep.subr.bf16.mxu0 0
    %380 = vmatpush1.bf16.msra.mxu0 %v282
    %381 = vmatprep.subr.bf16.mxu0 0
    %382 = vmatpush1.bf16.msra.mxu0 %v283
    %383 = vmatprep.subr.bf16.mxu0 0
    %384 = vmatpush1.bf16.msra.mxu0 %v284
    %385 = vmatprep.subr.bf16.mxu0 0
    %386 = vmatpush1.bf16.msra.mxu0 %v285
    %387 = vmatprep.subr.bf16.mxu0 0
    %388 = vmatpush1.bf16.msra.mxu0 %v286
    %389 = vmatprep.subr.bf16.mxu0 0
    %390 = vmatpush1.bf16.msra.mxu0 %v287
    %391 = vmatprep.subr.bf16.mxu0 0
    %392 = vmatpush1.bf16.msra.mxu0 %v288
    %393 = vmatprep.mubr.bf16.mxu0 %v124
    %394 = vmatmul.mubr.bf16.gmra.mrb[0].mxu0 %v123
    %v395 = vpop.f32.mrb[0].mxu0
    %v396 = vadd.f32 %v356, %v395
    %v397 = vpop.f32.mrb[0].mxu0
    %v398 = vpop.f32.mrb[0].mxu0
    %v399 = vpop.f32.mrb[0].mxu0
    %400 = vdwg.mxu0
    %v401 = vmax.f32 %v396, 0.0
    %v402 = vpack.c.bf16 %v401, %v401
    %v403 = vld [vmem:[%s3] sm:$0xf]
    %v404 = vld [vmem:[%s3 + $0x4] sm:$0xf]
    %v405 = vld [vmem:[%s3 + $0x8] sm:$0xf]
    %v406 = vld [vmem:[%s3 + $0xc] sm:$0xf]
    %v407 = vld [vmem:[%s3 + $0x10] sm:$0xf]
    %v408 = vld [vmem:[%s3 + $0x14] sm:$0xf]
    %v409 = vld [vmem:[%s3 + $0x18] sm:$0xf]
    %v410 = vld [vmem:[%s3 + $0x1c] sm:$0xf]
    %v411 = vld [vmem:[%s3 + $0x20] sm:$0xf]
    %v412 = vld [vmem:[%s3 + $0x24] sm:$0xf]
    %v413 = vld [vmem:[%s3 + $0x28] sm:$0xf]
    %v414 = vld [vmem:[%s3 + $0x2c] sm:$0xf]
    %v415 = vld [vmem:[%s3 + $0x30] sm:$0xf]
    %v416 = vld [vmem:[%s3 + $0x34] sm:$0xf]
    %v417 = vld [vmem:[%s3 + $0x38] sm:$0xf]
    %v418 = vld [vmem:[%s3 + $0x3c] sm:$0xf]
    %v419 = vld [vmem:[%s4] sm:$0x1]
    %v421 = vlaneseq
    %v422 = vshrl.u32 %v421, 7
    %v423 = vsub.s32 0, %v422
    %v424 = vrot.slane %v419, %v423
    %v442 = vunpack.c.l.b16 %v403
    %v443 = vunpack.c.l.b16 %v404
    %v444 = vunpack.c.l.b16 %v405
    %v445 = vunpack.c.l.b16 %v406
    %v446 = vunpack.c.l.b16 %v407
    %v447 = vunpack.c.l.b16 %v408
    %v448 = vunpack.c.l.b16 %v409
    %v449 = vunpack.c.l.b16 %v410
    %v450 = vunpack.c.l.b16 %v411
    %v451 = vunpack.c.l.b16 %v412
    %v452 = vunpack.c.l.b16 %v413
    %v453 = vunpack.c.l.b16 %v414
    %v454 = vunpack.c.l.b16 %v415
    %v455 = vunpack.c.l.b16 %v416
    %v456 = vunpack.c.l.b16 %v417
    %v457 = vunpack.c.l.b16 %v418
    %v458 = vpack.c.b16 %v443, %v442
    %v459 = vpack.c.b16 %v445, %v444
    %v460 = vpack.c.b16 %v447, %v446
    %v461 = vpack.c.b16 %v449, %v448
    %v462 = vpack.c.b16 %v451, %v450
    %v463 = vpack.c.b16 %v453, %v452
    %v464 = vpack.c.b16 %v455, %v454
    %v465 = vpack.c.b16 %v457, %v456
    %474 = vmatprep.subr.bf16.mxu0 0
    %475 = vmatpush1.bf16.msra.mxu0 %v458
    %476 = vmatprep.subr.bf16.mxu0 0
    %477 = vmatpush1.bf16.msra.mxu0 %v459
    %478 = vmatprep.subr.bf16.mxu0 0
    %479 = vmatpush1.bf16.msra.mxu0 %v460
    %480 = vmatprep.subr.bf16.mxu0 0
    %481 = vmatpush1.bf16.msra.mxu0 %v461
    %482 = vmatprep.subr.bf16.mxu0 0
    %483 = vmatpush1.bf16.msra.mxu0 %v462
    %484 = vmatprep.subr.bf16.mxu0 0
    %485 = vmatpush1.bf16.msra.mxu0 %v463
    %486 = vmatprep.subr.bf16.mxu0 0
    %487 = vmatpush1.bf16.msra.mxu0 %v464
    %488 = vmatprep.subr.bf16.mxu0 0
    %489 = vmatpush1.bf16.msra.mxu0 %v465
    %490 = vmatprep.subr.bf16.mxu0 0
    %491 = vmatpush1.bf16.msra.mxu0 0
    %492 = vmatprep.subr.bf16.mxu0 0
    %493 = vmatpush1.bf16.msra.mxu0 0
    %494 = vmatprep.subr.bf16.mxu0 0
    %495 = vmatpush1.bf16.msra.mxu0 0
    %496 = vmatprep.subr.bf16.mxu0 0
    %497 = vmatpush1.bf16.msra.mxu0 0
    %498 = vmatprep.subr.bf16.mxu0 0
    %499 = vmatpush1.bf16.msra.mxu0 0
    %500 = vmatprep.subr.bf16.mxu0 0
    %501 = vmatpush1.bf16.msra.mxu0 0
    %502 = vmatprep.subr.bf16.mxu0 0
    %503 = vmatpush1.bf16.msra.mxu0 0
    %504 = vmatprep.subr.bf16.mxu0 0
    %505 = vmatpush1.bf16.msra.mxu0 0
    %506 = vmatprep.mubr.bf16.mxu0 0
    %507 = vmatmul.mubr.bf16.gmra.mrb[0].mxu0 %v402
    %v508 = vpop.f32.mrb[0].mxu0
    %v509 = vadd.f32 %v424, %v508
    %v510 = vpop.f32.mrb[0].mxu0
    %v511 = vpop.f32.mrb[0].mxu0
    %v512 = vpop.f32.mrb[0].mxu0
    %513 = vdwg.mxu0
    %v514 = vmax.f32 %v509, 0.0
    %v515 = vpack.c.bf16 %v514, %v514
    %v516 = vld [vmem:[%s5] sm:$0xf]
    %v517 = vld [vmem:[%s5 + $0x4] sm:$0xf]
    %v518 = vld [vmem:[%s5 + $0x8] sm:$0xf]
    %v519 = vld [vmem:[%s5 + $0xc] sm:$0xf]
    %v520 = vld [vmem:[%s5 + $0x10] sm:$0xf]
    %v521 = vld [vmem:[%s5 + $0x14] sm:$0xf]
    %v522 = vld [vmem:[%s5 + $0x18] sm:$0xf]
    %v523 = vld [vmem:[%s5 + $0x1c] sm:$0xf]
    %v524 = vld [vmem:[%s5 + $0x20] sm:$0xf]
    %v525 = vld [vmem:[%s5 + $0x24] sm:$0xf]
    %v526 = vld [vmem:[%s5 + $0x28] sm:$0xf]
    %v527 = vld [vmem:[%s5 + $0x2c] sm:$0xf]
    %v528 = vld [vmem:[%s5 + $0x30] sm:$0xf]
    %v529 = vld [vmem:[%s5 + $0x34] sm:$0xf]
    %v530 = vld [vmem:[%s5 + $0x38] sm:$0xf]
    %v531 = vld [vmem:[%s5 + $0x3c] sm:$0xf]
    %v532 = vld [vmem:[%s6] sm:$0x1]
    %v534 = vlaneseq
    %v535 = vshrl.u32 %v534, 7
    %v536 = vsub.s32 0, %v535
    %v537 = vrot.slane %v532, %v536
    %v555 = vunpack.c.l.b16 %v516
    %v556 = vunpack.c.l.b16 %v517
    %v557 = vunpack.c.l.b16 %v518
    %v558 = vunpack.c.l.b16 %v519
    %v559 = vunpack.c.l.b16 %v520
    %v560 = vunpack.c.l.b16 %v521
    %v561 = vunpack.c.l.b16 %v522
    %v562 = vunpack.c.l.b16 %v523
    %v563 = vunpack.c.l.b16 %v524
    %v564 = vunpack.c.l.b16 %v525
    %v565 = vunpack.c.l.b16 %v526
    %v566 = vunpack.c.l.b16 %v527
    %v567 = vunpack.c.l.b16 %v528
    %v568 = vunpack.c.l.b16 %v529
    %v569 = vunpack.c.l.b16 %v530
    %v570 = vunpack.c.l.b16 %v531
    %v571 = vpack.c.b16 %v556, %v555
    %v572 = vpack.c.b16 %v558, %v557
    %v573 = vpack.c.b16 %v560, %v559
    %v574 = vpack.c.b16 %v562, %v561
    %v575 = vpack.c.b16 %v564, %v563
    %v576 = vpack.c.b16 %v566, %v565
    %v577 = vpack.c.b16 %v568, %v567
    %v578 = vpack.c.b16 %v570, %v569
    %587 = vmatprep.subr.bf16.mxu0 0
    %588 = vmatpush1.bf16.msra.mxu0 %v571
    %589 = vmatprep.subr.bf16.mxu0 0
    %590 = vmatpush1.bf16.msra.mxu0 %v572
    %591 = vmatprep.subr.bf16.mxu0 0
    %592 = vmatpush1.bf16.msra.mxu0 %v573
    %593 = vmatprep.subr.bf16.mxu0 0
    %594 = vmatpush1.bf16.msra.mxu0 %v574
    %595 = vmatprep.subr.bf16.mxu0 0
    %596 = vmatpush1.bf16.msra.mxu0 %v575
    %597 = vmatprep.subr.bf16.mxu0 0
    %598 = vmatpush1.bf16.msra.mxu0 %v576
    %599 = vmatprep.subr.bf16.mxu0 0
    %600 = vmatpush1.bf16.msra.mxu0 %v577
    %601 = vmatprep.subr.bf16.mxu0 0
    %602 = vmatpush1.bf16.msra.mxu0 %v578
    %603 = vmatprep.subr.bf16.mxu0 0
    %604 = vmatpush1.bf16.msra.mxu0 0
    %605 = vmatprep.subr.bf16.mxu0 0
    %606 = vmatpush1.bf16.msra.mxu0 0
    %607 = vmatprep.subr.bf16.mxu0 0
    %608 = vmatpush1.bf16.msra.mxu0 0
    %609 = vmatprep.subr.bf16.mxu0 0
    %610 = vmatpush1.bf16.msra.mxu0 0
    %611 = vmatprep.subr.bf16.mxu0 0
    %612 = vmatpush1.bf16.msra.mxu0 0
    %613 = vmatprep.subr.bf16.mxu0 0
    %614 = vmatpush1.bf16.msra.mxu0 0
    %615 = vmatprep.subr.bf16.mxu0 0
    %616 = vmatpush1.bf16.msra.mxu0 0
    %617 = vmatprep.subr.bf16.mxu0 0
    %618 = vmatpush1.bf16.msra.mxu0 0
    %619 = vmatprep.mubr.bf16.mxu0 0
    %620 = vmatmul.mubr.bf16.gmra.mrb[0].mxu0 %v515
    %v621 = vpop.f32.mrb[0].mxu0
    %v622 = vadd.f32 %v537, %v621
    %v623 = vpop.f32.mrb[0].mxu0
    %v624 = vpop.f32.mrb[0].mxu0
    %v625 = vpop.f32.mrb[0].mxu0
    %626 = vdwg.mxu0
    %627 = vst [vmem:[#allocation2] sm:$0x3] %v622
    // Predicated region
    $region30: #{net_forward.5} parent=1 // pred_check
      _
    $region31: #{net_forward.5} parent=1 // pred_check_branch
      %629 = sbr.rel (0) target = $region33
    $region32: #{net_forward.5} parent=1 // pred_region
      %s631 = ssub.s32 32, 32
      %632 = vsyncadd [#allocation3], %s631
      %s634 = sshll.u32 [#allocation2], 4
      %s635 = int_to_ptr.vmem [resolvable:$true] %s634
      %637 = dma.vmem_to_hbm [thread:$0]  %s635, 32, %s7, [#allocation3]
    $region33: #{net_forward.5} parent=1 // pred_fallthru
      _
    // Predicated region
    $region34: #{net_forward.5} parent=1 // pred_check
      _
    $region35: #{net_forward.5} parent=1 // pred_check_branch
      %639 = sbr.rel (0) target = $region37
    $region36: #{net_forward.5} parent=1 // pred_region
      %640 = dma.done [#allocation3], 32
    $region37: #{net_forward.5} parent=1 // pred_fallthru
      _
    %641 = vsyncpa [#allocation3], 1

</llo_original>
